<compile_context>
chip_gen: v7x
topology: tpu7x:2x2x1
jax: 0.10.0
libtpu: 0.0.40
codegen_flags: <defaults>
</compile_context>

<pallas_src>
import functools
import math

import jax
import jax.numpy as jnp
from jax import lax
from jax.experimental import pallas as pl
from jax.experimental.pallas import tpu as pltpu


def _layernorm(z, w, b, eps=1e-5):
    mu = jnp.mean(z, axis=-1, keepdims=True)
    var = jnp.mean((z - mu) ** 2, axis=-1, keepdims=True)
    return (z - mu) * lax.rsqrt(var + eps) * w + b


def _new_gelu(x):
    c = math.sqrt(2.0 / math.pi)
    return 0.5 * x * (1.0 + jnp.tanh(c * (x + 0.044715 * x ** 3)))


def block_kernel(n_head,
                 x_ref, bias_ref,
                 ln1w_ref, ln1b_ref,
                 wqkv_ref, bqkv_ref,
                 wproj_ref, bproj_ref,
                 ln2w_ref, ln2b_ref,
                 wfc_ref, bfc_ref, wmp_ref, bmp_ref,
                 o_ref):
    x = x_ref[...]                                   # (T, C) f32
    T, C = x.shape
    hs = C // n_head
    scale = 1.0 / math.sqrt(hs)

    # ---- ln_1 ----
    h = _layernorm(x, ln1w_ref[...], ln1b_ref[...])

    # ---- fused QKV projection: one full-width (T,C)@(C,3C) MXU matmul ----
    qkv = jnp.dot(h.astype(jnp.bfloat16), wqkv_ref[...],
                  preferred_element_type=jnp.float32) + bqkv_ref[...]

    def to_heads(t):                                 # (T, C) -> (n_head, T, hs) bf16
        return jnp.transpose(t.astype(jnp.bfloat16).reshape(T, n_head, hs),
                             (1, 0, 2))

    q = to_heads(qkv[:, :C])
    k = to_heads(qkv[:, C:2 * C])
    v = to_heads(qkv[:, 2 * C:])

    # ---- causal self-attention, batched over heads ----
    att = jnp.einsum('htd,hsd->hts', q, k, preferred_element_type=jnp.float32)
    att = att * scale + bias_ref[...][None, :, :]    # precomputed additive causal bias
    m = jnp.max(att, axis=-1, keepdims=True)
    p = jnp.exp(att - m)                             # unnormalized probs, f32
    denom = jnp.sum(p, axis=-1, keepdims=True)       # (n_head, T, 1)
    y = jnp.einsum('hts,hsd->htd', p.astype(jnp.bfloat16), v,
                   preferred_element_type=jnp.float32)
    y = y * pl.reciprocal(denom, approx=True)        # fold softmax denom (EUP slot)

    # ---- re-assemble heads lane-dense; one (T,C)@(C,C) output projection ----
    y_tc = jnp.transpose(y, (1, 0, 2)).reshape(T, C)
    proj = jnp.dot(y_tc.astype(jnp.bfloat16), wproj_ref[...],
                   preferred_element_type=jnp.float32) + bproj_ref[...]
    x1 = x + proj                                    # residual 1 (dropout = identity)

    # ---- ln_2 + MLP ----
    h2 = _layernorm(x1, ln2w_ref[...], ln2b_ref[...])
    ff = jnp.dot(h2.astype(jnp.bfloat16), wfc_ref[...],
                 preferred_element_type=jnp.float32) + bfc_ref[...]
    ff = _new_gelu(ff)
    ff = jnp.dot(ff.astype(jnp.bfloat16), wmp_ref[...],
                 preferred_element_type=jnp.float32) + bmp_ref[...]

    o_ref[...] = x1 + ff                             # residual 2 (dropout = identity)


def prepare_block_operands(params, block_size):
    """Cast weights to bf16 and build the causal bias ONCE (outside the per-call path)."""
    (ln1w, ln1b, wqkv, bqkv, wap, bap, ln2w, ln2b, wfc, bfc, wmp, bmp) = params
    T = block_size
    bf16 = jnp.bfloat16
    f32 = jnp.float32

    row = lax.broadcasted_iota(jnp.int32, (T, T), 0)
    col = lax.broadcasted_iota(jnp.int32, (T, T), 1)
    causal_bias = jnp.where(col <= row, 0.0, -1e30).astype(f32)

    return (
        causal_bias,
        ln1w.astype(f32), ln1b.astype(f32),
        wqkv.astype(bf16), bqkv.astype(f32),          # fused QKV weight, original layout
        wap.astype(bf16), bap.astype(f32),             # output projection (C, C)
        ln2w.astype(f32), ln2b.astype(f32),
        wfc.astype(bf16), bfc.astype(f32),
        wmp.astype(bf16), bmp.astype(f32),
    )


def _vmem_limit_bytes():
    """Size the VMEM budget per chip generation (75% of physical, capped)."""
    try:
        cap = int(pltpu.get_tpu_info().vmem_capacity_bytes)
    except Exception:
        return 48 * 1024 * 1024
    return min((cap * 3) // 4, 100 * 1024 * 1024)


def block_forward(x, operands, n_head):
    B, T, C = x.shape
    kernel = functools.partial(block_kernel, n_head)
    vmem_limit = _vmem_limit_bytes()

    def run(single_buffer_weights):
        def const_spec(a):
            nd = a.ndim
            if single_buffer_weights:
                # grid-invariant operand: no need for double buffering
                return pl.BlockSpec(a.shape, lambda b, _nd=nd: (0,) * _nd,
                                    pipeline_mode=pl.Buffered(1))
            return pl.BlockSpec(a.shape, lambda b, _nd=nd: (0,) * _nd)

        grid_spec = pltpu.PrefetchScalarGridSpec(
            num_scalar_prefetch=0,
            grid=(B,),
            in_specs=[pl.BlockSpec((pl.Squeezed(), T, C), lambda b: (b, 0, 0))]
                    + [const_spec(a) for a in operands],
            out_specs=pl.BlockSpec((pl.Squeezed(), T, C), lambda b: (b, 0, 0)),
        )
        out = pl.pallas_call(
            kernel,
            out_shape=jax.ShapeDtypeStruct((B, T, C), jnp.float32),
            grid_spec=grid_spec,
            compiler_params=pltpu.CompilerParams(
                dimension_semantics=("parallel",),
                vmem_limit_bytes=vmem_limit,
            ),
        )(x, *operands)
        return jax.block_until_ready(out)

    try:
        return run(True)
    except Exception:
        # pipeline_mode=Buffered(1) unsupported on this jax version:
        # fall back to default double-buffered weight specs.
        return run(False)


def block_reference(x, params, n_head):
    """Pure-JAX f32 reference matching the PyTorch Block forward (eval mode)."""
    (ln1w, ln1b, wqkv, bqkv, wap, bap, ln2w, ln2b, wfc, bfc, wmp, bmp) = params
    B, T, C = x.shape
    hs = C // n_head

    h = _layernorm(x, ln1w, ln1b)
    qkv = h @ wqkv + bqkv
    q, k, v = jnp.split(qkv, 3, axis=-1)
    reshape = lambda t: t.reshape(B, T, n_head, hs).transpose(0, 2, 1, 3)
    q, k, v = map(reshape, (q, k, v))
    att = (q @ jnp.swapaxes(k, -2, -1)) / math.sqrt(hs)
    mask = jnp.tril(jnp.ones((T, T), dtype=bool))
    att = jnp.where(mask, att, -jnp.inf)
    att = jax.nn.softmax(att, axis=-1)
    y = (att @ v).transpose(0, 2, 1, 3).reshape(B, T, C)
    x1 = x + (y @ wap + bap)

    h2 = _layernorm(x1, ln2w, ln2b)
    ff = _new_gelu(h2 @ wfc + bfc)
    return x1 + (ff @ wmp + bmp)


def init_params(key, n_embd):
    ks = jax.random.split(key, 8)
    s = 0.02
    ln1w = jnp.ones((1, n_embd), jnp.float32)
    ln1b = jnp.zeros((1, n_embd), jnp.float32)
    wqkv = s * jax.random.normal(ks[0], (n_embd, 3 * n_embd), jnp.float32)
    bqkv = s * jax.random.normal(ks[1], (1, 3 * n_embd), jnp.float32)
    wap = s * jax.random.normal(ks[2], (n_embd, n_embd), jnp.float32)
    bap = s * jax.random.normal(ks[3], (1, n_embd), jnp.float32)
    ln2w = jnp.ones((1, n_embd), jnp.float32)
    ln2b = jnp.zeros((1, n_embd), jnp.float32)
    wfc = s * jax.random.normal(ks[4], (n_embd, 4 * n_embd), jnp.float32)
    bfc = s * jax.random.normal(ks[5], (1, 4 * n_embd), jnp.float32)
    wmp = s * jax.random.normal(ks[6], (4 * n_embd, n_embd), jnp.float32)
    bmp = s * jax.random.normal(ks[7], (1, n_embd), jnp.float32)
    return (ln1w, ln1b, wqkv, bqkv, wap, bap, ln2w, ln2b, wfc, bfc, wmp, bmp)


if __name__ == "__main__":
    B, T, C, n_head = 2, 8, 32, 4     # block_size = T = 8

    key = jax.random.PRNGKey(0)
    kx, kp = jax.random.split(key)
    x = jax.random.normal(kx, (B, T, C), jnp.float32)
    params = init_params(kp, C)

    # bf16 weight casts + causal bias built once, reused across calls.
    operands = prepare_block_operands(params, block_size=T)

    out = block_forward(x, operands, n_head)
    out = jax.block_until_ready(out)

    ref = block_reference(x, params, n_head)
    assert out.shape == (B, T, C)
    # bf16 MXU operands + approx reciprocal -> compare with relaxed tolerance.
    assert jnp.allclose(out, ref, atol=2e-2, rtol=2e-2), "mismatch vs reference"

    print("KERNEL_OK")
</pallas_src>

<mosaic_0001>
module attributes {stable_mosaic.version = 11 : i64} {
  func.func @block_kernel(%arg0: i32, %arg1: memref<1x8x32xf32, #tpu.memory_space<vmem>>, %arg2: memref<8x8xf32, #tpu.memory_space<vmem>>, %arg3: memref<1x32xf32, #tpu.memory_space<vmem>>, %arg4: memref<1x32xf32, #tpu.memory_space<vmem>>, %arg5: memref<32x96xbf16, #tpu.memory_space<vmem>>, %arg6: memref<1x96xf32, #tpu.memory_space<vmem>>, %arg7: memref<32x32xbf16, #tpu.memory_space<vmem>>, %arg8: memref<1x32xf32, #tpu.memory_space<vmem>>, %arg9: memref<1x32xf32, #tpu.memory_space<vmem>>, %arg10: memref<1x32xf32, #tpu.memory_space<vmem>>, %arg11: memref<32x128xbf16, #tpu.memory_space<vmem>>, %arg12: memref<1x128xf32, #tpu.memory_space<vmem>>, %arg13: memref<128x32xbf16, #tpu.memory_space<vmem>>, %arg14: memref<1x32xf32, #tpu.memory_space<vmem>>, %arg15: memref<1x8x32xf32, #tpu.memory_space<vmem>>) attributes {dimension_semantics = [#tpu.dimension_semantics<parallel>], iteration_bounds = array<i64: 2>, scalar_prefetch = 0 : i64, scratch_operands = 0 : i64, tpu.core_type = #tpu.core_type<tc>, window_params = [{transform_indices = @transform_0, window_bounds = array<i64: 1, 8, 32>}, {pipeline_mode = #tpu.pipeline_mode<synchronous>, transform_indices = @transform_1, window_bounds = array<i64: 8, 8>}, {pipeline_mode = #tpu.pipeline_mode<synchronous>, transform_indices = @transform_2, window_bounds = array<i64: 1, 32>}, {pipeline_mode = #tpu.pipeline_mode<synchronous>, transform_indices = @transform_3, window_bounds = array<i64: 1, 32>}, {pipeline_mode = #tpu.pipeline_mode<synchronous>, transform_indices = @transform_4, window_bounds = array<i64: 32, 96>}, {pipeline_mode = #tpu.pipeline_mode<synchronous>, transform_indices = @transform_5, window_bounds = array<i64: 1, 96>}, {pipeline_mode = #tpu.pipeline_mode<synchronous>, transform_indices = @transform_6, window_bounds = array<i64: 32, 32>}, {pipeline_mode = #tpu.pipeline_mode<synchronous>, transform_indices = @transform_7, window_bounds = array<i64: 1, 32>}, {pipeline_mode = #tpu.pipeline_mode<synchronous>, transform_indices = @transform_8, window_bounds = array<i64: 1, 32>}, {pipeline_mode = #tpu.pipeline_mode<synchronous>, transform_indices = @transform_9, window_bounds = array<i64: 1, 32>}, {pipeline_mode = #tpu.pipeline_mode<synchronous>, transform_indices = @transform_10, window_bounds = array<i64: 32, 128>}, {pipeline_mode = #tpu.pipeline_mode<synchronous>, transform_indices = @transform_11, window_bounds = array<i64: 1, 128>}, {pipeline_mode = #tpu.pipeline_mode<synchronous>, transform_indices = @transform_12, window_bounds = array<i64: 128, 32>}, {pipeline_mode = #tpu.pipeline_mode<synchronous>, transform_indices = @transform_13, window_bounds = array<i64: 1, 32>}, {transform_indices = @transform_14, window_bounds = array<i64: 1, 8, 32>}]} {
    %c0 = arith.constant 0 : index
    %c0_0 = arith.constant 0 : index
    %c0_1 = arith.constant 0 : index
    %0 = vector.load %arg1[%c0, %c0_0, %c0_1] : memref<1x8x32xf32, #tpu.memory_space<vmem>>, vector<1x8x32xf32>
    %1 = vector.shape_cast %0 : vector<1x8x32xf32> to vector<8x32xf32>
    %c0_2 = arith.constant 0 : index
    %c0_3 = arith.constant 0 : index
    %2 = vector.load %arg3[%c0_2, %c0_3] : memref<1x32xf32, #tpu.memory_space<vmem>>, vector<1x32xf32>
    %c0_4 = arith.constant 0 : index
    %c0_5 = arith.constant 0 : index
    %3 = vector.load %arg4[%c0_4, %c0_5] : memref<1x32xf32, #tpu.memory_space<vmem>>, vector<1x32xf32>
    %cst = arith.constant dense<0.000000e+00> : vector<8xf32>
    %4 = vector.multi_reduction <add>, %1, %cst [1] : vector<8x32xf32> to vector<8xf32>
    %5 = vector.shape_cast %4 : vector<8xf32> to vector<8x1xf32>
    %cst_6 = arith.constant 3.200000e+01 : f32
    %6 = vector.broadcast %cst_6 : f32 to vector<8x1xf32>
    %7 = arith.divf %5, %6 : vector<8x1xf32>
    %8 = vector.broadcast %7 : vector<8x1xf32> to vector<8x32xf32>
    %9 = arith.subf %1, %8 : vector<8x32xf32>
    %10 = arith.mulf %9, %9 : vector<8x32xf32>
    %cst_7 = arith.constant dense<0.000000e+00> : vector<8xf32>
    %11 = vector.multi_reduction <add>, %10, %cst_7 [1] : vector<8x32xf32> to vector<8xf32>
    %12 = vector.shape_cast %11 : vector<8xf32> to vector<8x1xf32>
    %cst_8 = arith.constant 3.200000e+01 : f32
    %13 = vector.broadcast %cst_8 : f32 to vector<8x1xf32>
    %14 = arith.divf %12, %13 : vector<8x1xf32>
    %15 = vector.broadcast %7 : vector<8x1xf32> to vector<8x32xf32>
    %16 = arith.subf %1, %15 : vector<8x32xf32>
    %cst_9 = arith.constant 9.99999974E-6 : f32
    %17 = vector.broadcast %cst_9 : f32 to vector<8x1xf32>
    %18 = arith.addf %14, %17 : vector<8x1xf32>
    %19 = math.rsqrt %18 : vector<8x1xf32>
    %20 = vector.broadcast %19 : vector<8x1xf32> to vector<8x32xf32>
    %21 = arith.mulf %16, %20 : vector<8x32xf32>
    %22 = vector.broadcast %2 : vector<1x32xf32> to vector<8x32xf32>
    %23 = arith.mulf %21, %22 : vector<8x32xf32>
    %24 = vector.broadcast %3 : vector<1x32xf32> to vector<8x32xf32>
    %25 = arith.addf %23, %24 : vector<8x32xf32>
    %26 = arith.truncf %25 : vector<8x32xf32> to vector<8x32xbf16>
    %c0_10 = arith.constant 0 : index
    %c0_11 = arith.constant 0 : index
    %27 = vector.load %arg5[%c0_10, %c0_11] : memref<32x96xbf16, #tpu.memory_space<vmem>>, vector<32x96xbf16>
    %cst_12 = arith.constant dense<0.000000e+00> : vector<8x96xf32>
    %28 = tpu.matmul %26, %27, %cst_12 {dimension_numbers = #tpu.dot_dimension_numbers<[1], [0], [0], [1], [0, 0, 1, 1], [], []>} : vector<8x32xbf16>, vector<32x96xbf16>, vector<8x96xf32> -> vector<8x96xf32>
    %c0_13 = arith.constant 0 : index
    %c0_14 = arith.constant 0 : index
    %29 = vector.load %arg6[%c0_13, %c0_14] : memref<1x96xf32, #tpu.memory_space<vmem>>, vector<1x96xf32>
    %30 = vector.broadcast %29 : vector<1x96xf32> to vector<8x96xf32>
    %31 = arith.addf %28, %30 : vector<8x96xf32>
    %32 = vector.extract_strided_slice %31 {offsets = [0, 0], sizes = [8, 32], strides = [1, 1]} : vector<8x96xf32> to vector<8x32xf32>
    %33 = arith.truncf %32 : vector<8x32xf32> to vector<8x32xbf16>
    %34 = vector.shape_cast %33 : vector<8x32xbf16> to vector<8x4x8xbf16>
    %35 = tpu.transpose %34, [1, 0, 2] : vector<8x4x8xbf16> -> vector<4x8x8xbf16>
    %36 = vector.extract_strided_slice %31 {offsets = [0, 32], sizes = [8, 32], strides = [1, 1]} : vector<8x96xf32> to vector<8x32xf32>
    %37 = arith.truncf %36 : vector<8x32xf32> to vector<8x32xbf16>
    %38 = vector.shape_cast %37 : vector<8x32xbf16> to vector<8x4x8xbf16>
    %39 = tpu.transpose %38, [1, 0, 2] : vector<8x4x8xbf16> -> vector<4x8x8xbf16>
    %40 = vector.extract_strided_slice %31 {offsets = [0, 64], sizes = [8, 32], strides = [1, 1]} : vector<8x96xf32> to vector<8x32xf32>
    %41 = arith.truncf %40 : vector<8x32xf32> to vector<8x32xbf16>
    %42 = vector.shape_cast %41 : vector<8x32xbf16> to vector<8x4x8xbf16>
    %43 = tpu.transpose %42, [1, 0, 2] : vector<8x4x8xbf16> -> vector<4x8x8xbf16>
    "tpu.trace_start"() <{level = 10 : i32, message = "htd,hsd->hts"}> : () -> ()
    %cst_15 = arith.constant dense<0.000000e+00> : vector<4x8x8xf32>
    %44 = tpu.matmul %35, %39, %cst_15 {dimension_numbers = #tpu.dot_dimension_numbers<[2], [2], [1], [1], [0, 0, 0, 1, 1, 1], [0], [0]>} : vector<4x8x8xbf16>, vector<4x8x8xbf16>, vector<4x8x8xf32> -> vector<4x8x8xf32>
    "tpu.trace_stop"() : () -> ()
    %cst_16 = arith.constant 0.353553385 : f32
    %45 = vector.broadcast %cst_16 : f32 to vector<4x8x8xf32>
    %46 = arith.mulf %44, %45 : vector<4x8x8xf32>
    %c0_17 = arith.constant 0 : index
    %c0_18 = arith.constant 0 : index
    %47 = vector.load %arg2[%c0_17, %c0_18] : memref<8x8xf32, #tpu.memory_space<vmem>>, vector<8x8xf32>
    %48 = vector.shape_cast %47 : vector<8x8xf32> to vector<1x8x8xf32>
    %49 = vector.broadcast %48 : vector<1x8x8xf32> to vector<4x8x8xf32>
    %50 = arith.addf %46, %49 : vector<4x8x8xf32>
    %cst_19 = arith.constant dense<0xFF800000> : vector<4x8xf32>
    %51 = vector.multi_reduction <maximumf>, %50, %cst_19 [2] : vector<4x8x8xf32> to vector<4x8xf32>
    %52 = vector.shape_cast %51 : vector<4x8xf32> to vector<4x8x1xf32>
    %53 = vector.broadcast %52 : vector<4x8x1xf32> to vector<4x8x8xf32>
    %54 = arith.subf %50, %53 : vector<4x8x8xf32>
    %55 = math.exp %54 : vector<4x8x8xf32>
    %cst_20 = arith.constant dense<0.000000e+00> : vector<4x8xf32>
    %56 = vector.multi_reduction <add>, %55, %cst_20 [2] : vector<4x8x8xf32> to vector<4x8xf32>
    %57 = vector.shape_cast %56 : vector<4x8xf32> to vector<4x8x1xf32>
    %58 = arith.truncf %55 : vector<4x8x8xf32> to vector<4x8x8xbf16>
    "tpu.trace_start"() <{level = 10 : i32, message = "hts,hsd->htd"}> : () -> ()
    %cst_21 = arith.constant dense<0.000000e+00> : vector<4x8x8xf32>
    %59 = tpu.matmul %58, %43, %cst_21 {dimension_numbers = #tpu.dot_dimension_numbers<[2], [1], [1], [2], [0, 0, 0, 1, 1, 2], [0], [0]>} : vector<4x8x8xbf16>, vector<4x8x8xbf16>, vector<4x8x8xf32> -> vector<4x8x8xf32>
    "tpu.trace_stop"() : () -> ()
    %60 = tpu.reciprocal %57 {approx = true} : vector<4x8x1xf32> -> vector<4x8x1xf32>
    %61 = vector.broadcast %60 : vector<4x8x1xf32> to vector<4x8x8xf32>
    %62 = arith.mulf %59, %61 : vector<4x8x8xf32>
    %63 = tpu.transpose %62, [1, 0, 2] : vector<4x8x8xf32> -> vector<8x4x8xf32>
    %64 = vector.shape_cast %63 : vector<8x4x8xf32> to vector<8x32xf32>
    %65 = arith.truncf %64 : vector<8x32xf32> to vector<8x32xbf16>
    %c0_22 = arith.constant 0 : index
    %c0_23 = arith.constant 0 : index
    %66 = vector.load %arg7[%c0_22, %c0_23] : memref<32x32xbf16, #tpu.memory_space<vmem>>, vector<32x32xbf16>
    %cst_24 = arith.constant dense<0.000000e+00> : vector<8x32xf32>
    %67 = tpu.matmul %65, %66, %cst_24 {dimension_numbers = #tpu.dot_dimension_numbers<[1], [0], [0], [1], [0, 0, 1, 1], [], []>} : vector<8x32xbf16>, vector<32x32xbf16>, vector<8x32xf32> -> vector<8x32xf32>
    %c0_25 = arith.constant 0 : index
    %c0_26 = arith.constant 0 : index
    %68 = vector.load %arg8[%c0_25, %c0_26] : memref<1x32xf32, #tpu.memory_space<vmem>>, vector<1x32xf32>
    %69 = vector.broadcast %68 : vector<1x32xf32> to vector<8x32xf32>
    %70 = arith.addf %67, %69 : vector<8x32xf32>
    %71 = arith.addf %1, %70 : vector<8x32xf32>
    %c0_27 = arith.constant 0 : index
    %c0_28 = arith.constant 0 : index
    %72 = vector.load %arg9[%c0_27, %c0_28] : memref<1x32xf32, #tpu.memory_space<vmem>>, vector<1x32xf32>
    %c0_29 = arith.constant 0 : index
    %c0_30 = arith.constant 0 : index
    %73 = vector.load %arg10[%c0_29, %c0_30] : memref<1x32xf32, #tpu.memory_space<vmem>>, vector<1x32xf32>
    %cst_31 = arith.constant dense<0.000000e+00> : vector<8xf32>
    %74 = vector.multi_reduction <add>, %71, %cst_31 [1] : vector<8x32xf32> to vector<8xf32>
    %75 = vector.shape_cast %74 : vector<8xf32> to vector<8x1xf32>
    %cst_32 = arith.constant 3.200000e+01 : f32
    %76 = vector.broadcast %cst_32 : f32 to vector<8x1xf32>
    %77 = arith.divf %75, %76 : vector<8x1xf32>
    %78 = vector.broadcast %77 : vector<8x1xf32> to vector<8x32xf32>
    %79 = arith.subf %71, %78 : vector<8x32xf32>
    %80 = arith.mulf %79, %79 : vector<8x32xf32>
    %cst_33 = arith.constant dense<0.000000e+00> : vector<8xf32>
    %81 = vector.multi_reduction <add>, %80, %cst_33 [1] : vector<8x32xf32> to vector<8xf32>
    %82 = vector.shape_cast %81 : vector<8xf32> to vector<8x1xf32>
    %cst_34 = arith.constant 3.200000e+01 : f32
    %83 = vector.broadcast %cst_34 : f32 to vector<8x1xf32>
    %84 = arith.divf %82, %83 : vector<8x1xf32>
    %85 = vector.broadcast %77 : vector<8x1xf32> to vector<8x32xf32>
    %86 = arith.subf %71, %85 : vector<8x32xf32>
    %cst_35 = arith.constant 9.99999974E-6 : f32
    %87 = vector.broadcast %cst_35 : f32 to vector<8x1xf32>
    %88 = arith.addf %84, %87 : vector<8x1xf32>
    %89 = math.rsqrt %88 : vector<8x1xf32>
    %90 = vector.broadcast %89 : vector<8x1xf32> to vector<8x32xf32>
    %91 = arith.mulf %86, %90 : vector<8x32xf32>
    %92 = vector.broadcast %72 : vector<1x32xf32> to vector<8x32xf32>
    %93 = arith.mulf %91, %92 : vector<8x32xf32>
    %94 = vector.broadcast %73 : vector<1x32xf32> to vector<8x32xf32>
    %95 = arith.addf %93, %94 : vector<8x32xf32>
    %96 = arith.truncf %95 : vector<8x32xf32> to vector<8x32xbf16>
    %c0_36 = arith.constant 0 : index
    %c0_37 = arith.constant 0 : index
    %97 = vector.load %arg11[%c0_36, %c0_37] : memref<32x128xbf16, #tpu.memory_space<vmem>>, vector<32x128xbf16>
    %cst_38 = arith.constant dense<0.000000e+00> : vector<8x128xf32>
    %98 = tpu.matmul %96, %97, %cst_38 {dimension_numbers = #tpu.dot_dimension_numbers<[1], [0], [0], [1], [0, 0, 1, 1], [], []>} : vector<8x32xbf16>, vector<32x128xbf16>, vector<8x128xf32> -> vector<8x128xf32>
    %c0_39 = arith.constant 0 : index
    %c0_40 = arith.constant 0 : index
    %99 = vector.load %arg12[%c0_39, %c0_40] : memref<1x128xf32, #tpu.memory_space<vmem>>, vector<1x128xf32>
    %100 = vector.broadcast %99 : vector<1x128xf32> to vector<8x128xf32>
    %101 = arith.addf %98, %100 : vector<8x128xf32>
    %cst_41 = arith.constant 5.000000e-01 : f32
    %102 = vector.broadcast %cst_41 : f32 to vector<8x128xf32>
    %103 = arith.mulf %102, %101 : vector<8x128xf32>
    %104 = arith.mulf %101, %101 : vector<8x128xf32>
    %105 = arith.mulf %101, %104 : vector<8x128xf32>
    %cst_42 = arith.constant 4.471500e-02 : f32
    %106 = vector.broadcast %cst_42 : f32 to vector<8x128xf32>
    %107 = arith.mulf %106, %105 : vector<8x128xf32>
    %108 = arith.addf %101, %107 : vector<8x128xf32>
    %cst_43 = arith.constant 0.797884583 : f32
    %109 = vector.broadcast %cst_43 : f32 to vector<8x128xf32>
    %110 = arith.mulf %109, %108 : vector<8x128xf32>
    %111 = math.tanh %110 : vector<8x128xf32>
    %cst_44 = arith.constant 1.000000e+00 : f32
    %112 = vector.broadcast %cst_44 : f32 to vector<8x128xf32>
    %113 = arith.addf %112, %111 : vector<8x128xf32>
    %114 = arith.mulf %103, %113 : vector<8x128xf32>
    %115 = arith.truncf %114 : vector<8x128xf32> to vector<8x128xbf16>
    %c0_45 = arith.constant 0 : index
    %c0_46 = arith.constant 0 : index
    %116 = vector.load %arg13[%c0_45, %c0_46] : memref<128x32xbf16, #tpu.memory_space<vmem>>, vector<128x32xbf16>
    %cst_47 = arith.constant dense<0.000000e+00> : vector<8x32xf32>
    %117 = tpu.matmul %115, %116, %cst_47 {dimension_numbers = #tpu.dot_dimension_numbers<[1], [0], [0], [1], [0, 0, 1, 1], [], []>} : vector<8x128xbf16>, vector<128x32xbf16>, vector<8x32xf32> -> vector<8x32xf32>
    %c0_48 = arith.constant 0 : index
    %c0_49 = arith.constant 0 : index
    %118 = vector.load %arg14[%c0_48, %c0_49] : memref<1x32xf32, #tpu.memory_space<vmem>>, vector<1x32xf32>
    %119 = vector.broadcast %118 : vector<1x32xf32> to vector<8x32xf32>
    %120 = arith.addf %117, %119 : vector<8x32xf32>
    %121 = arith.addf %71, %120 : vector<8x32xf32>
    %c0_50 = arith.constant 0 : index
    %c0_51 = arith.constant 0 : index
    %c0_52 = arith.constant 0 : index
    %122 = vector.load %arg15[%c0_50, %c0_51, %c0_52] : memref<1x8x32xf32, #tpu.memory_space<vmem>>, vector<1x8x32xf32>
    %123 = vector.shape_cast %122 : vector<1x8x32xf32> to vector<8x32xf32>
    %124 = vector.shape_cast %121 : vector<8x32xf32> to vector<1x8x32xf32>
    tpu.vector_store %arg15[%c0_50, %c0_51, %c0_52], %124 {strides = array<i32>} : memref<1x8x32xf32, #tpu.memory_space<vmem>>, vector<1x8x32xf32>,
    return
  }
  func.func @transform_0(%arg0: i32) -> (i32, i32, i32) {
    %c0_i32 = arith.constant 0 : i32
    %c0_i32_0 = arith.constant 0 : i32
    %c0_i32_1 = arith.constant 0 : i32
    return %arg0, %c0_i32, %c0_i32_0 : i32, i32, i32
  }
  func.func @transform_1(%arg0: i32) -> (i32, i32) {
    %c0_i32 = arith.constant 0 : i32
    %c0_i32_0 = arith.constant 0 : i32
    %c0_i32_1 = arith.constant 0 : i32
    return %c0_i32, %c0_i32_0 : i32, i32
  }
  func.func @transform_2(%arg0: i32) -> (i32, i32) {
    %c0_i32 = arith.constant 0 : i32
    %c0_i32_0 = arith.constant 0 : i32
    %c0_i32_1 = arith.constant 0 : i32
    return %c0_i32, %c0_i32_0 : i32, i32
  }
  func.func @transform_3(%arg0: i32) -> (i32, i32) {
    %c0_i32 = arith.constant 0 : i32
    %c0_i32_0 = arith.constant 0 : i32
    %c0_i32_1 = arith.constant 0 : i32
    return %c0_i32, %c0_i32_0 : i32, i32
  }
  func.func @transform_4(%arg0: i32) -> (i32, i32) {
    %c0_i32 = arith.constant 0 : i32
    %c0_i32_0 = arith.constant 0 : i32
    %c0_i32_1 = arith.constant 0 : i32
    return %c0_i32, %c0_i32_0 : i32, i32
  }
  func.func @transform_5(%arg0: i32) -> (i32, i32) {
    %c0_i32 = arith.constant 0 : i32
    %c0_i32_0 = arith.constant 0 : i32
    %c0_i32_1 = arith.constant 0 : i32
    return %c0_i32, %c0_i32_0 : i32, i32
  }
  func.func @transform_6(%arg0: i32) -> (i32, i32) {
    %c0_i32 = arith.constant 0 : i32
    %c0_i32_0 = arith.constant 0 : i32
    %c0_i32_1 = arith.constant 0 : i32
    return %c0_i32, %c0_i32_0 : i32, i32
  }
  func.func @transform_7(%arg0: i32) -> (i32, i32) {
    %c0_i32 = arith.constant 0 : i32
    %c0_i32_0 = arith.constant 0 : i32
    %c0_i32_1 = arith.constant 0 : i32
    return %c0_i32, %c0_i32_0 : i32, i32
  }
  func.func @transform_8(%arg0: i32) -> (i32, i32) {
    %c0_i32 = arith.constant 0 : i32
    %c0_i32_0 = arith.constant 0 : i32
    %c0_i32_1 = arith.constant 0 : i32
    return %c0_i32, %c0_i32_0 : i32, i32
  }
  func.func @transform_9(%arg0: i32) -> (i32, i32) {
    %c0_i32 = arith.constant 0 : i32
    %c0_i32_0 = arith.constant 0 : i32
    %c0_i32_1 = arith.constant 0 : i32
    return %c0_i32, %c0_i32_0 : i32, i32
  }
  func.func @transform_10(%arg0: i32) -> (i32, i32) {
    %c0_i32 = arith.constant 0 : i32
    %c0_i32_0 = arith.constant 0 : i32
    %c0_i32_1 = arith.constant 0 : i32
    return %c0_i32, %c0_i32_0 : i32, i32
  }
  func.func @transform_11(%arg0: i32) -> (i32, i32) {
    %c0_i32 = arith.constant 0 : i32
    %c0_i32_0 = arith.constant 0 : i32
    %c0_i32_1 = arith.constant 0 : i32
    return %c0_i32, %c0_i32_0 : i32, i32
  }
  func.func @transform_12(%arg0: i32) -> (i32, i32) {
    %c0_i32 = arith.constant 0 : i32
    %c0_i32_0 = arith.constant 0 : i32
    %c0_i32_1 = arith.constant 0 : i32
    return %c0_i32, %c0_i32_0 : i32, i32
  }
  func.func @transform_13(%arg0: i32) -> (i32, i32) {
    %c0_i32 = arith.constant 0 : i32
    %c0_i32_0 = arith.constant 0 : i32
    %c0_i32_1 = arith.constant 0 : i32
    return %c0_i32, %c0_i32_0 : i32, i32
  }
  func.func @transform_14(%arg0: i32) -> (i32, i32, i32) {
    %c0_i32 = arith.constant 0 : i32
    %c0_i32_0 = arith.constant 0 : i32
    %c0_i32_1 = arith.constant 0 : i32
    return %arg0, %c0_i32, %c0_i32_0 : i32, i32, i32
  }
}

module attributes {stable_mosaic.version = 11 : i64} {
  func.func @block_kernel(%arg0: i32, %arg1: memref<1x8x32xf32, #tpu.memory_space<vmem>>, %arg2: memref<8x8xf32, #tpu.memory_space<vmem>>, %arg3: memref<1x32xf32, #tpu.memory_space<vmem>>, %arg4: memref<1x32xf32, #tpu.memory_space<vmem>>, %arg5: memref<32x96xbf16, #tpu.memory_space<vmem>>, %arg6: memref<1x96xf32, #tpu.memory_space<vmem>>, %arg7: memref<32x32xbf16, #tpu.memory_space<vmem>>, %arg8: memref<1x32xf32, #tpu.memory_space<vmem>>, %arg9: memref<1x32xf32, #tpu.memory_space<vmem>>, %arg10: memref<1x32xf32, #tpu.memory_space<vmem>>, %arg11: memref<32x128xbf16, #tpu.memory_space<vmem>>, %arg12: memref<1x128xf32, #tpu.memory_space<vmem>>, %arg13: memref<128x32xbf16, #tpu.memory_space<vmem>>, %arg14: memref<1x32xf32, #tpu.memory_space<vmem>>, %arg15: memref<1x8x32xf32, #tpu.memory_space<vmem>>) attributes {dimension_semantics = [#tpu.dimension_semantics<parallel>], iteration_bounds = array<i64: 2>, scalar_prefetch = 0 : i64, scratch_operands = 0 : i64, tpu.core_type = #tpu.core_type<tc>, window_params = [{transform_indices = @transform_0, window_bounds = array<i64: 1, 8, 32>}, {pipeline_mode = #tpu.pipeline_mode<synchronous>, transform_indices = @transform_1, window_bounds = array<i64: 8, 8>}, {pipeline_mode = #tpu.pipeline_mode<synchronous>, transform_indices = @transform_2, window_bounds = array<i64: 1, 32>}, {pipeline_mode = #tpu.pipeline_mode<synchronous>, transform_indices = @transform_3, window_bounds = array<i64: 1, 32>}, {pipeline_mode = #tpu.pipeline_mode<synchronous>, transform_indices = @transform_4, window_bounds = array<i64: 32, 96>}, {pipeline_mode = #tpu.pipeline_mode<synchronous>, transform_indices = @transform_5, window_bounds = array<i64: 1, 96>}, {pipeline_mode = #tpu.pipeline_mode<synchronous>, transform_indices = @transform_6, window_bounds = array<i64: 32, 32>}, {pipeline_mode = #tpu.pipeline_mode<synchronous>, transform_indices = @transform_7, window_bounds = array<i64: 1, 32>}, {pipeline_mode = #tpu.pipeline_mode<synchronous>, transform_indices = @transform_8, window_bounds = array<i64: 1, 32>}, {pipeline_mode = #tpu.pipeline_mode<synchronous>, transform_indices = @transform_9, window_bounds = array<i64: 1, 32>}, {pipeline_mode = #tpu.pipeline_mode<synchronous>, transform_indices = @transform_10, window_bounds = array<i64: 32, 128>}, {pipeline_mode = #tpu.pipeline_mode<synchronous>, transform_indices = @transform_11, window_bounds = array<i64: 1, 128>}, {pipeline_mode = #tpu.pipeline_mode<synchronous>, transform_indices = @transform_12, window_bounds = array<i64: 128, 32>}, {pipeline_mode = #tpu.pipeline_mode<synchronous>, transform_indices = @transform_13, window_bounds = array<i64: 1, 32>}, {transform_indices = @transform_14, window_bounds = array<i64: 1, 8, 32>}]} {
    %c0 = arith.constant 0 : index
    %c0_0 = arith.constant 0 : index
    %c0_1 = arith.constant 0 : index
    %0 = vector.load %arg1[%c0, %c0_0, %c0_1] : memref<1x8x32xf32, #tpu.memory_space<vmem>>, vector<1x8x32xf32>
    %1 = vector.shape_cast %0 : vector<1x8x32xf32> to vector<8x32xf32>
    %c0_2 = arith.constant 0 : index
    %c0_3 = arith.constant 0 : index
    %2 = vector.load %arg3[%c0_2, %c0_3] : memref<1x32xf32, #tpu.memory_space<vmem>>, vector<1x32xf32>
    %c0_4 = arith.constant 0 : index
    %c0_5 = arith.constant 0 : index
    %3 = vector.load %arg4[%c0_4, %c0_5] : memref<1x32xf32, #tpu.memory_space<vmem>>, vector<1x32xf32>
    %cst = arith.constant dense<0.000000e+00> : vector<8xf32>
    %4 = vector.multi_reduction <add>, %1, %cst [1] : vector<8x32xf32> to vector<8xf32>
    %5 = vector.shape_cast %4 : vector<8xf32> to vector<8x1xf32>
    %cst_6 = arith.constant 3.200000e+01 : f32
    %6 = vector.broadcast %cst_6 : f32 to vector<8x1xf32>
    %7 = arith.divf %5, %6 : vector<8x1xf32>
    %8 = vector.broadcast %7 : vector<8x1xf32> to vector<8x32xf32>
    %9 = arith.subf %1, %8 : vector<8x32xf32>
    %10 = arith.mulf %9, %9 : vector<8x32xf32>
    %cst_7 = arith.constant dense<0.000000e+00> : vector<8xf32>
    %11 = vector.multi_reduction <add>, %10, %cst_7 [1] : vector<8x32xf32> to vector<8xf32>
    %12 = vector.shape_cast %11 : vector<8xf32> to vector<8x1xf32>
    %cst_8 = arith.constant 3.200000e+01 : f32
    %13 = vector.broadcast %cst_8 : f32 to vector<8x1xf32>
    %14 = arith.divf %12, %13 : vector<8x1xf32>
    %15 = vector.broadcast %7 : vector<8x1xf32> to vector<8x32xf32>
    %16 = arith.subf %1, %15 : vector<8x32xf32>
    %cst_9 = arith.constant 9.99999974E-6 : f32
    %17 = vector.broadcast %cst_9 : f32 to vector<8x1xf32>
    %18 = arith.addf %14, %17 : vector<8x1xf32>
    %19 = math.rsqrt %18 : vector<8x1xf32>
    %20 = vector.broadcast %19 : vector<8x1xf32> to vector<8x32xf32>
    %21 = arith.mulf %16, %20 : vector<8x32xf32>
    %22 = vector.broadcast %2 : vector<1x32xf32> to vector<8x32xf32>
    %23 = arith.mulf %21, %22 : vector<8x32xf32>
    %24 = vector.broadcast %3 : vector<1x32xf32> to vector<8x32xf32>
    %25 = arith.addf %23, %24 : vector<8x32xf32>
    %26 = arith.truncf %25 : vector<8x32xf32> to vector<8x32xbf16>
    %c0_10 = arith.constant 0 : index
    %c0_11 = arith.constant 0 : index
    %27 = vector.load %arg5[%c0_10, %c0_11] : memref<32x96xbf16, #tpu.memory_space<vmem>>, vector<32x96xbf16>
    %cst_12 = arith.constant dense<0.000000e+00> : vector<8x96xf32>
    %28 = tpu.matmul %26, %27, %cst_12 {dimension_numbers = #tpu.dot_dimension_numbers<[1], [0], [0], [1], [0, 0, 1, 1], [], []>} : vector<8x32xbf16>, vector<32x96xbf16>, vector<8x96xf32> -> vector<8x96xf32>
    %c0_13 = arith.constant 0 : index
    %c0_14 = arith.constant 0 : index
    %29 = vector.load %arg6[%c0_13, %c0_14] : memref<1x96xf32, #tpu.memory_space<vmem>>, vector<1x96xf32>
    %30 = vector.broadcast %29 : vector<1x96xf32> to vector<8x96xf32>
    %31 = arith.addf %28, %30 : vector<8x96xf32>
    %32 = vector.extract_strided_slice %31 {offsets = [0, 0], sizes = [8, 32], strides = [1, 1]} : vector<8x96xf32> to vector<8x32xf32>
    %33 = arith.truncf %32 : vector<8x32xf32> to vector<8x32xbf16>
    %34 = vector.shape_cast %33 : vector<8x32xbf16> to vector<8x4x8xbf16>
    %35 = tpu.transpose %34, [1, 0, 2] : vector<8x4x8xbf16> -> vector<4x8x8xbf16>
    %36 = vector.extract_strided_slice %31 {offsets = [0, 32], sizes = [8, 32], strides = [1, 1]} : vector<8x96xf32> to vector<8x32xf32>
    %37 = arith.truncf %36 : vector<8x32xf32> to vector<8x32xbf16>
    %38 = vector.shape_cast %37 : vector<8x32xbf16> to vector<8x4x8xbf16>
    %39 = tpu.transpose %38, [1, 0, 2] : vector<8x4x8xbf16> -> vector<4x8x8xbf16>
    %40 = vector.extract_strided_slice %31 {offsets = [0, 64], sizes = [8, 32], strides = [1, 1]} : vector<8x96xf32> to vector<8x32xf32>
    %41 = arith.truncf %40 : vector<8x32xf32> to vector<8x32xbf16>
    %42 = vector.shape_cast %41 : vector<8x32xbf16> to vector<8x4x8xbf16>
    %43 = tpu.transpose %42, [1, 0, 2] : vector<8x4x8xbf16> -> vector<4x8x8xbf16>
    "tpu.trace_start"() <{level = 10 : i32, message = "htd,hsd->hts"}> : () -> ()
    %cst_15 = arith.constant dense<0.000000e+00> : vector<4x8x8xf32>
    %44 = tpu.matmul %35, %39, %cst_15 {dimension_numbers = #tpu.dot_dimension_numbers<[2], [2], [1], [1], [0, 0, 0, 1, 1, 1], [0], [0]>} : vector<4x8x8xbf16>, vector<4x8x8xbf16>, vector<4x8x8xf32> -> vector<4x8x8xf32>
    "tpu.trace_stop"() : () -> ()
    %cst_16 = arith.constant 0.353553385 : f32
    %45 = vector.broadcast %cst_16 : f32 to vector<4x8x8xf32>
    %46 = arith.mulf %44, %45 : vector<4x8x8xf32>
    %c0_17 = arith.constant 0 : index
    %c0_18 = arith.constant 0 : index
    %47 = vector.load %arg2[%c0_17, %c0_18] : memref<8x8xf32, #tpu.memory_space<vmem>>, vector<8x8xf32>
    %48 = vector.shape_cast %47 : vector<8x8xf32> to vector<1x8x8xf32>
    %49 = vector.broadcast %48 : vector<1x8x8xf32> to vector<4x8x8xf32>
    %50 = arith.addf %46, %49 : vector<4x8x8xf32>
    %cst_19 = arith.constant dense<0xFF800000> : vector<4x8xf32>
    %51 = vector.multi_reduction <maximumf>, %50, %cst_19 [2] : vector<4x8x8xf32> to vector<4x8xf32>
    %52 = vector.shape_cast %51 : vector<4x8xf32> to vector<4x8x1xf32>
    %53 = vector.broadcast %52 : vector<4x8x1xf32> to vector<4x8x8xf32>
    %54 = arith.subf %50, %53 : vector<4x8x8xf32>
    %55 = math.exp %54 : vector<4x8x8xf32>
    %cst_20 = arith.constant dense<0.000000e+00> : vector<4x8xf32>
    %56 = vector.multi_reduction <add>, %55, %cst_20 [2] : vector<4x8x8xf32> to vector<4x8xf32>
    %57 = vector.shape_cast %56 : vector<4x8xf32> to vector<4x8x1xf32>
    %58 = arith.truncf %55 : vector<4x8x8xf32> to vector<4x8x8xbf16>
    "tpu.trace_start"() <{level = 10 : i32, message = "hts,hsd->htd"}> : () -> ()
    %cst_21 = arith.constant dense<0.000000e+00> : vector<4x8x8xf32>
    %59 = tpu.matmul %58, %43, %cst_21 {dimension_numbers = #tpu.dot_dimension_numbers<[2], [1], [1], [2], [0, 0, 0, 1, 1, 2], [0], [0]>} : vector<4x8x8xbf16>, vector<4x8x8xbf16>, vector<4x8x8xf32> -> vector<4x8x8xf32>
    "tpu.trace_stop"() : () -> ()
    %60 = tpu.reciprocal %57 {approx = true} : vector<4x8x1xf32> -> vector<4x8x1xf32>
    %61 = vector.broadcast %60 : vector<4x8x1xf32> to vector<4x8x8xf32>
    %62 = arith.mulf %59, %61 : vector<4x8x8xf32>
    %63 = tpu.transpose %62, [1, 0, 2] : vector<4x8x8xf32> -> vector<8x4x8xf32>
    %64 = vector.shape_cast %63 : vector<8x4x8xf32> to vector<8x32xf32>
    %65 = arith.truncf %64 : vector<8x32xf32> to vector<8x32xbf16>
    %c0_22 = arith.constant 0 : index
    %c0_23 = arith.constant 0 : index
    %66 = vector.load %arg7[%c0_22, %c0_23] : memref<32x32xbf16, #tpu.memory_space<vmem>>, vector<32x32xbf16>
    %cst_24 = arith.constant dense<0.000000e+00> : vector<8x32xf32>
    %67 = tpu.matmul %65, %66, %cst_24 {dimension_numbers = #tpu.dot_dimension_numbers<[1], [0], [0], [1], [0, 0, 1, 1], [], []>} : vector<8x32xbf16>, vector<32x32xbf16>, vector<8x32xf32> -> vector<8x32xf32>
    %c0_25 = arith.constant 0 : index
    %c0_26 = arith.constant 0 : index
    %68 = vector.load %arg8[%c0_25, %c0_26] : memref<1x32xf32, #tpu.memory_space<vmem>>, vector<1x32xf32>
    %69 = vector.broadcast %68 : vector<1x32xf32> to vector<8x32xf32>
    %70 = arith.addf %67, %69 : vector<8x32xf32>
    %71 = arith.addf %1, %70 : vector<8x32xf32>
    %c0_27 = arith.constant 0 : index
    %c0_28 = arith.constant 0 : index
    %72 = vector.load %arg9[%c0_27, %c0_28] : memref<1x32xf32, #tpu.memory_space<vmem>>, vector<1x32xf32>
    %c0_29 = arith.constant 0 : index
    %c0_30 = arith.constant 0 : index
    %73 = vector.load %arg10[%c0_29, %c0_30] : memref<1x32xf32, #tpu.memory_space<vmem>>, vector<1x32xf32>
    %cst_31 = arith.constant dense<0.000000e+00> : vector<8xf32>
    %74 = vector.multi_reduction <add>, %71, %cst_31 [1] : vector<8x32xf32> to vector<8xf32>
    %75 = vector.shape_cast %74 : vector<8xf32> to vector<8x1xf32>
    %cst_32 = arith.constant 3.200000e+01 : f32
    %76 = vector.broadcast %cst_32 : f32 to vector<8x1xf32>
    %77 = arith.divf %75, %76 : vector<8x1xf32>
    %78 = vector.broadcast %77 : vector<8x1xf32> to vector<8x32xf32>
    %79 = arith.subf %71, %78 : vector<8x32xf32>
    %80 = arith.mulf %79, %79 : vector<8x32xf32>
    %cst_33 = arith.constant dense<0.000000e+00> : vector<8xf32>
    %81 = vector.multi_reduction <add>, %80, %cst_33 [1] : vector<8x32xf32> to vector<8xf32>
    %82 = vector.shape_cast %81 : vector<8xf32> to vector<8x1xf32>
    %cst_34 = arith.constant 3.200000e+01 : f32
    %83 = vector.broadcast %cst_34 : f32 to vector<8x1xf32>
    %84 = arith.divf %82, %83 : vector<8x1xf32>
    %85 = vector.broadcast %77 : vector<8x1xf32> to vector<8x32xf32>
    %86 = arith.subf %71, %85 : vector<8x32xf32>
    %cst_35 = arith.constant 9.99999974E-6 : f32
    %87 = vector.broadcast %cst_35 : f32 to vector<8x1xf32>
    %88 = arith.addf %84, %87 : vector<8x1xf32>
    %89 = math.rsqrt %88 : vector<8x1xf32>
    %90 = vector.broadcast %89 : vector<8x1xf32> to vector<8x32xf32>
    %91 = arith.mulf %86, %90 : vector<8x32xf32>
    %92 = vector.broadcast %72 : vector<1x32xf32> to vector<8x32xf32>
    %93 = arith.mulf %91, %92 : vector<8x32xf32>
    %94 = vector.broadcast %73 : vector<1x32xf32> to vector<8x32xf32>
    %95 = arith.addf %93, %94 : vector<8x32xf32>
    %96 = arith.truncf %95 : vector<8x32xf32> to vector<8x32xbf16>
    %c0_36 = arith.constant 0 : index
    %c0_37 = arith.constant 0 : index
    %97 = vector.load %arg11[%c0_36, %c0_37] : memref<32x128xbf16, #tpu.memory_space<vmem>>, vector<32x128xbf16>
    %cst_38 = arith.constant dense<0.000000e+00> : vector<8x128xf32>
    %98 = tpu.matmul %96, %97, %cst_38 {dimension_numbers = #tpu.dot_dimension_numbers<[1], [0], [0], [1], [0, 0, 1, 1], [], []>} : vector<8x32xbf16>, vector<32x128xbf16>, vector<8x128xf32> -> vector<8x128xf32>
    %c0_39 = arith.constant 0 : index
    %c0_40 = arith.constant 0 : index
    %99 = vector.load %arg12[%c0_39, %c0_40] : memref<1x128xf32, #tpu.memory_space<vmem>>, vector<1x128xf32>
    %100 = vector.broadcast %99 : vector<1x128xf32> to vector<8x128xf32>
    %101 = arith.addf %98, %100 : vector<8x128xf32>
    %cst_41 = arith.constant 5.000000e-01 : f32
    %102 = vector.broadcast %cst_41 : f32 to vector<8x128xf32>
    %103 = arith.mulf %102, %101 : vector<8x128xf32>
    %104 = arith.mulf %101, %101 : vector<8x128xf32>
    %105 = arith.mulf %101, %104 : vector<8x128xf32>
    %cst_42 = arith.constant 4.471500e-02 : f32
    %106 = vector.broadcast %cst_42 : f32 to vector<8x128xf32>
    %107 = arith.mulf %106, %105 : vector<8x128xf32>
    %108 = arith.addf %101, %107 : vector<8x128xf32>
    %cst_43 = arith.constant 0.797884583 : f32
    %109 = vector.broadcast %cst_43 : f32 to vector<8x128xf32>
    %110 = arith.mulf %109, %108 : vector<8x128xf32>
    %111 = math.tanh %110 : vector<8x128xf32>
    %cst_44 = arith.constant 1.000000e+00 : f32
    %112 = vector.broadcast %cst_44 : f32 to vector<8x128xf32>
    %113 = arith.addf %112, %111 : vector<8x128xf32>
    %114 = arith.mulf %103, %113 : vector<8x128xf32>
    %115 = arith.truncf %114 : vector<8x128xf32> to vector<8x128xbf16>
    %c0_45 = arith.constant 0 : index
    %c0_46 = arith.constant 0 : index
    %116 = vector.load %arg13[%c0_45, %c0_46] : memref<128x32xbf16, #tpu.memory_space<vmem>>, vector<128x32xbf16>
    %cst_47 = arith.constant dense<0.000000e+00> : vector<8x32xf32>
    %117 = tpu.matmul %115, %116, %cst_47 {dimension_numbers = #tpu.dot_dimension_numbers<[1], [0], [0], [1], [0, 0, 1, 1], [], []>} : vector<8x128xbf16>, vector<128x32xbf16>, vector<8x32xf32> -> vector<8x32xf32>
    %c0_48 = arith.constant 0 : index
    %c0_49 = arith.constant 0 : index
    %118 = vector.load %arg14[%c0_48, %c0_49] : memref<1x32xf32, #tpu.memory_space<vmem>>, vector<1x32xf32>
    %119 = vector.broadcast %118 : vector<1x32xf32> to vector<8x32xf32>
    %120 = arith.addf %117, %119 : vector<8x32xf32>
    %121 = arith.addf %71, %120 : vector<8x32xf32>
    %c0_50 = arith.constant 0 : index
    %c0_51 = arith.constant 0 : index
    %c0_52 = arith.constant 0 : index
    %122 = vector.load %arg15[%c0_50, %c0_51, %c0_52] : memref<1x8x32xf32, #tpu.memory_space<vmem>>, vector<1x8x32xf32>
    %123 = vector.shape_cast %122 : vector<1x8x32xf32> to vector<8x32xf32>
    %124 = vector.shape_cast %121 : vector<8x32xf32> to vector<1x8x32xf32>
    tpu.vector_store %arg15[%c0_50, %c0_51, %c0_52], %124 {strides = array<i32>} : memref<1x8x32xf32, #tpu.memory_space<vmem>>, vector<1x8x32xf32>,
    return
  }
  func.func @transform_0(%arg0: i32) -> (i32, i32, i32) {
    %c0_i32 = arith.constant 0 : i32
    %c0_i32_0 = arith.constant 0 : i32
    %c0_i32_1 = arith.constant 0 : i32
    return %arg0, %c0_i32, %c0_i32_0 : i32, i32, i32
  }
  func.func @transform_1(%arg0: i32) -> (i32, i32) {
    %c0_i32 = arith.constant 0 : i32
    %c0_i32_0 = arith.constant 0 : i32
    %c0_i32_1 = arith.constant 0 : i32
    return %c0_i32, %c0_i32_0 : i32, i32
  }
  func.func @transform_2(%arg0: i32) -> (i32, i32) {
    %c0_i32 = arith.constant 0 : i32
    %c0_i32_0 = arith.constant 0 : i32
    %c0_i32_1 = arith.constant 0 : i32
    return %c0_i32, %c0_i32_0 : i32, i32
  }
  func.func @transform_3(%arg0: i32) -> (i32, i32) {
    %c0_i32 = arith.constant 0 : i32
    %c0_i32_0 = arith.constant 0 : i32
    %c0_i32_1 = arith.constant 0 : i32
    return %c0_i32, %c0_i32_0 : i32, i32
  }
  func.func @transform_4(%arg0: i32) -> (i32, i32) {
    %c0_i32 = arith.constant 0 : i32
    %c0_i32_0 = arith.constant 0 : i32
    %c0_i32_1 = arith.constant 0 : i32
    return %c0_i32, %c0_i32_0 : i32, i32
  }
  func.func @transform_5(%arg0: i32) -> (i32, i32) {
    %c0_i32 = arith.constant 0 : i32
    %c0_i32_0 = arith.constant 0 : i32
    %c0_i32_1 = arith.constant 0 : i32
    return %c0_i32, %c0_i32_0 : i32, i32
  }
  func.func @transform_6(%arg0: i32) -> (i32, i32) {
    %c0_i32 = arith.constant 0 : i32
    %c0_i32_0 = arith.constant 0 : i32
    %c0_i32_1 = arith.constant 0 : i32
    return %c0_i32, %c0_i32_0 : i32, i32
  }
  func.func @transform_7(%arg0: i32) -> (i32, i32) {
    %c0_i32 = arith.constant 0 : i32
    %c0_i32_0 = arith.constant 0 : i32
    %c0_i32_1 = arith.constant 0 : i32
    return %c0_i32, %c0_i32_0 : i32, i32
  }
  func.func @transform_8(%arg0: i32) -> (i32, i32) {
    %c0_i32 = arith.constant 0 : i32
    %c0_i32_0 = arith.constant 0 : i32
    %c0_i32_1 = arith.constant 0 : i32
    return %c0_i32, %c0_i32_0 : i32, i32
  }
  func.func @transform_9(%arg0: i32) -> (i32, i32) {
    %c0_i32 = arith.constant 0 : i32
    %c0_i32_0 = arith.constant 0 : i32
    %c0_i32_1 = arith.constant 0 : i32
    return %c0_i32, %c0_i32_0 : i32, i32
  }
  func.func @transform_10(%arg0: i32) -> (i32, i32) {
    %c0_i32 = arith.constant 0 : i32
    %c0_i32_0 = arith.constant 0 : i32
    %c0_i32_1 = arith.constant 0 : i32
    return %c0_i32, %c0_i32_0 : i32, i32
  }
  func.func @transform_11(%arg0: i32) -> (i32, i32) {
    %c0_i32 = arith.constant 0 : i32
    %c0_i32_0 = arith.constant 0 : i32
    %c0_i32_1 = arith.constant 0 : i32
    return %c0_i32, %c0_i32_0 : i32, i32
  }
  func.func @transform_12(%arg0: i32) -> (i32, i32) {
    %c0_i32 = arith.constant 0 : i32
    %c0_i32_0 = arith.constant 0 : i32
    %c0_i32_1 = arith.constant 0 : i32
    return %c0_i32, %c0_i32_0 : i32, i32
  }
  func.func @transform_13(%arg0: i32) -> (i32, i32) {
    %c0_i32 = arith.constant 0 : i32
    %c0_i32_0 = arith.constant 0 : i32
    %c0_i32_1 = arith.constant 0 : i32
    return %c0_i32, %c0_i32_0 : i32, i32
  }
  func.func @transform_14(%arg0: i32) -> (i32, i32, i32) {
    %c0_i32 = arith.constant 0 : i32
    %c0_i32_0 = arith.constant 0 : i32
    %c0_i32_1 = arith.constant 0 : i32
    return %arg0, %c0_i32, %c0_i32_0 : i32, i32, i32
  }
}

</mosaic_0001>

<llo_original>
// kernel: tpu_custom_call.1
$region0: #{tpu_custom_call.1}
  #allocation0 [shape = 'u32[]', space=smem, size = 0x4, offset = 0x4, fixed_abs, tag = 'smem constant byte address 0x4 - core index']
  #allocation1 [shape = 'u32[144,128]{1,0:T(1,128)}', space=vmem, size = 0x12000, scoped, tag = 'internal scratch']
  %s0 = inlined_call_operand.vmem [shape: f32[2,8,32], index: 0, kind: input, shape index: {}]
  %s1 = inlined_call_operand.vmem [shape: f32[8,8], index: 1, kind: input, shape index: {}]
  %s2 = inlined_call_operand.vmem [shape: f32[1,32], index: 2, kind: input, shape index: {}]
  %s3 = inlined_call_operand.vmem [shape: f32[1,32], index: 3, kind: input, shape index: {}]
  %s4 = inlined_call_operand.vmem [shape: bf16[32,96], index: 4, kind: input, shape index: {}]
  %s5 = inlined_call_operand.vmem [shape: f32[1,96], index: 5, kind: input, shape index: {}]
  %s6 = inlined_call_operand.vmem [shape: bf16[32,32], index: 6, kind: input, shape index: {}]
  %s7 = inlined_call_operand.vmem [shape: f32[1,32], index: 7, kind: input, shape index: {}]
  %s8 = inlined_call_operand.vmem [shape: f32[1,32], index: 8, kind: input, shape index: {}]
  %s9 = inlined_call_operand.vmem [shape: f32[1,32], index: 9, kind: input, shape index: {}]
  %s10 = inlined_call_operand.vmem [shape: bf16[32,128], index: 10, kind: input, shape index: {}]
  %s11 = inlined_call_operand.vmem [shape: f32[1,128], index: 11, kind: input, shape index: {}]
  %s12 = inlined_call_operand.vmem [shape: bf16[128,32], index: 12, kind: input, shape index: {}]
  %s13 = inlined_call_operand.vmem [shape: f32[1,32], index: 13, kind: input, shape index: {}]
  %s14 = inlined_call_operand.hbm [shape: f32[2,8,32], index: 14, kind: output, shape index: {}]
  %s15 = sld [smem:[#allocation0]]
  $region89: #{tpu_custom_call.1} parent=0
    _
  %s17 = ssub.s32 1, %s15
  %s18 = scalar_select 0, %s17, %s15
  $region1: #{tpu_custom_call.1} parent=0
    #allocation2 [shape = 'u8[8192]{0}', space=vmem, size = 0x2000, scoped, tag = 'output window, operand 0']
    #allocation3 [shape = 's32[2]{0}', space=sflag, size = 0x8, scoped, tag = 'scoped memory for tpu_custom_call.1']
    %19 = vsyncpa [#allocation3], 0
    %s20 = scalar_lea.sflag [#allocation3], 1
    %21 = vsyncpa %s20, 0
    loop: start=0, step=1, limit=4
    $region2: #{tpu_custom_call.1} parent=1 // loop_pre_header
      _
    $region3: #{tpu_custom_call.1} parent=1 // loop_header
      %s23 = sphi 0, %s27
      %p24 = scmp.ge.s32.totalorder %s23, 4
      %s33 = sphi 0, %s35
      %s36 = sphi 0, %s33
      %s37 = sphi 0, %s36
      %s53 = sphi 0, %s37
      %s57 = sphi 0, %s57
      %s59 = sphi 0, %s57
      %s60 = sphi 0, %s59
      %s74 = sphi 0, %s60
      %s78 = sphi 0, %s78
      %s80 = sphi 0, %s78
      %s81 = sphi 0, %s80
      %s95 = sphi 0, %s81
      %s99 = sphi 0, %s99
      %s101 = sphi 0, %s99
      %s102 = sphi 0, %s101
      %s116 = sphi 0, %s102
      %s120 = sphi 0, %s120
      %s122 = sphi 0, %s120
      %s123 = sphi 0, %s122
      %s137 = sphi 0, %s123
      %s141 = sphi 0, %s141
      %s143 = sphi 0, %s141
      %s144 = sphi 0, %s143
      %s158 = sphi 0, %s144
      %s162 = sphi 0, %s162
      %s164 = sphi 0, %s162
      %s165 = sphi 0, %s164
      %s179 = sphi 0, %s165
      %s183 = sphi 0, %s183
      %s185 = sphi 0, %s183
      %s186 = sphi 0, %s185
      %s200 = sphi 0, %s186
      %s204 = sphi 0, %s204
      %s206 = sphi 0, %s204
      %s207 = sphi 0, %s206
      %s221 = sphi 0, %s207
      %s225 = sphi 0, %s225
      %s227 = sphi 0, %s225
      %s228 = sphi 0, %s227
      %s242 = sphi 0, %s228
      %s246 = sphi 0, %s246
      %s248 = sphi 0, %s246
      %s249 = sphi 0, %s248
      %s263 = sphi 0, %s249
      %s267 = sphi 0, %s267
      %s269 = sphi 0, %s267
      %s270 = sphi 0, %s269
      %s284 = sphi 0, %s270
      %s288 = sphi 0, %s288
      %s290 = sphi 0, %s288
      %s291 = sphi 0, %s290
      %s305 = sphi 0, %s291
      %s309 = sphi 0, %s309
      %s311 = sphi 0, %s309
      %s312 = sphi 0, %s311
      %s326 = sphi 0, %s312
      %s332 = sphi 0, %s334
      %s335 = sphi 0, %s332
      %s336 = sphi 0, %s335
      %s352 = sphi 0, %s336
    $region4: #{tpu_custom_call.1} parent=1 // loop_header_branch
      %26 = sbr.rel (%p24) target = $region8
    $region5: #{tpu_custom_call.1} parent=1 // loop_body
      %s28 = ssub.s32 %s23, 1
      %s29 = ssub.s32 %s23, 2
      %s30 = sadd.s32 %s23, 1
      %s31 = ssub.s32 %s23, %s30
      %p32 = scmp.eq.s32.totalorder %s31, 0
      %s34 = sadd.s32 %s33, 1
      %s35 = scalar_select %p32, %s33, %s34
      %p38 = pneg %p32
      %p39 = scmp.eq.s32.totalorder %s23, 1
      %p40 = por %p38, %p39
      %p41 = scmp.ne.s32.totalorder %s33, %s36
      %p42 = scmp.eq.s32.totalorder %s23, 0
      %p43 = por %p41, %p42
      %p44 = scmp.ne.s32.totalorder %s33, %s36
      %p45 = scmp.eq.s32.totalorder %s28, 1
      %p46 = por %p44, %p45
      %p47 = scmp.ne.s32.totalorder %s36, %s37
      %p48 = scmp.eq.s32.totalorder %s28, 0
      %p49 = por %p47, %p48
      %p50 = scmp.ne.s32.totalorder %s36, %s37
      %p51 = scmp.eq.s32.totalorder %s29, 1
      %p52 = por %p50, %p51
      %p54 = scmp.ne.s32.totalorder %s37, %s53
      %p55 = scmp.eq.s32.totalorder %s29, 0
      %p56 = por %p54, %p55
      %s58 = sadd.s32 %s57, 1
      %p61 = scmp.eq.s32.totalorder %s23, 1
      %p62 = scmp.ne.s32.totalorder %s57, %s59
      %p63 = scmp.eq.s32.totalorder %s23, 0
      %p64 = por %p62, %p63
      %p65 = scmp.ne.s32.totalorder %s57, %s59
      %p66 = scmp.eq.s32.totalorder %s28, 1
      %p67 = por %p65, %p66
      %p68 = scmp.ne.s32.totalorder %s59, %s60
      %p69 = scmp.eq.s32.totalorder %s28, 0
      %p70 = por %p68, %p69
      %p71 = scmp.ne.s32.totalorder %s59, %s60
      %p72 = scmp.eq.s32.totalorder %s29, 1
      %p73 = por %p71, %p72
      %p75 = scmp.ne.s32.totalorder %s60, %s74
      %p76 = scmp.eq.s32.totalorder %s29, 0
      %p77 = por %p75, %p76
      %s79 = sadd.s32 %s78, 1
      %p82 = scmp.eq.s32.totalorder %s23, 1
      %p83 = scmp.ne.s32.totalorder %s78, %s80
      %p84 = scmp.eq.s32.totalorder %s23, 0
      %p85 = por %p83, %p84
      %p86 = scmp.ne.s32.totalorder %s78, %s80
      %p87 = scmp.eq.s32.totalorder %s28, 1
      %p88 = por %p86, %p87
      %p89 = scmp.ne.s32.totalorder %s80, %s81
      %p90 = scmp.eq.s32.totalorder %s28, 0
      %p91 = por %p89, %p90
      %p92 = scmp.ne.s32.totalorder %s80, %s81
      %p93 = scmp.eq.s32.totalorder %s29, 1
      %p94 = por %p92, %p93
      %p96 = scmp.ne.s32.totalorder %s81, %s95
      %p97 = scmp.eq.s32.totalorder %s29, 0
      %p98 = por %p96, %p97
      %s100 = sadd.s32 %s99, 1
      %p103 = scmp.eq.s32.totalorder %s23, 1
      %p104 = scmp.ne.s32.totalorder %s99, %s101
      %p105 = scmp.eq.s32.totalorder %s23, 0
      %p106 = por %p104, %p105
      %p107 = scmp.ne.s32.totalorder %s99, %s101
      %p108 = scmp.eq.s32.totalorder %s28, 1
      %p109 = por %p107, %p108
      %p110 = scmp.ne.s32.totalorder %s101, %s102
      %p111 = scmp.eq.s32.totalorder %s28, 0
      %p112 = por %p110, %p111
      %p113 = scmp.ne.s32.totalorder %s101, %s102
      %p114 = scmp.eq.s32.totalorder %s29, 1
      %p115 = por %p113, %p114
      %p117 = scmp.ne.s32.totalorder %s102, %s116
      %p118 = scmp.eq.s32.totalorder %s29, 0
      %p119 = por %p117, %p118
      %s121 = sadd.s32 %s120, 1
      %p124 = scmp.eq.s32.totalorder %s23, 1
      %p125 = scmp.ne.s32.totalorder %s120, %s122
      %p126 = scmp.eq.s32.totalorder %s23, 0
      %p127 = por %p125, %p126
      %p128 = scmp.ne.s32.totalorder %s120, %s122
      %p129 = scmp.eq.s32.totalorder %s28, 1
      %p130 = por %p128, %p129
      %p131 = scmp.ne.s32.totalorder %s122, %s123
      %p132 = scmp.eq.s32.totalorder %s28, 0
      %p133 = por %p131, %p132
      %p134 = scmp.ne.s32.totalorder %s122, %s123
      %p135 = scmp.eq.s32.totalorder %s29, 1
      %p136 = por %p134, %p135
      %p138 = scmp.ne.s32.totalorder %s123, %s137
      %p139 = scmp.eq.s32.totalorder %s29, 0
      %p140 = por %p138, %p139
      %s142 = sadd.s32 %s141, 1
      %p145 = scmp.eq.s32.totalorder %s23, 1
      %p146 = scmp.ne.s32.totalorder %s141, %s143
      %p147 = scmp.eq.s32.totalorder %s23, 0
      %p148 = por %p146, %p147
      %p149 = scmp.ne.s32.totalorder %s141, %s143
      %p150 = scmp.eq.s32.totalorder %s28, 1
      %p151 = por %p149, %p150
      %p152 = scmp.ne.s32.totalorder %s143, %s144
      %p153 = scmp.eq.s32.totalorder %s28, 0
      %p154 = por %p152, %p153
      %p155 = scmp.ne.s32.totalorder %s143, %s144
      %p156 = scmp.eq.s32.totalorder %s29, 1
      %p157 = por %p155, %p156
      %p159 = scmp.ne.s32.totalorder %s144, %s158
      %p160 = scmp.eq.s32.totalorder %s29, 0
      %p161 = por %p159, %p160
      %s163 = sadd.s32 %s162, 1
      %p166 = scmp.eq.s32.totalorder %s23, 1
      %p167 = scmp.ne.s32.totalorder %s162, %s164
      %p168 = scmp.eq.s32.totalorder %s23, 0
      %p169 = por %p167, %p168
      %p170 = scmp.ne.s32.totalorder %s162, %s164
      %p171 = scmp.eq.s32.totalorder %s28, 1
      %p172 = por %p170, %p171
      %p173 = scmp.ne.s32.totalorder %s164, %s165
      %p174 = scmp.eq.s32.totalorder %s28, 0
      %p175 = por %p173, %p174
      %p176 = scmp.ne.s32.totalorder %s164, %s165
      %p177 = scmp.eq.s32.totalorder %s29, 1
      %p178 = por %p176, %p177
      %p180 = scmp.ne.s32.totalorder %s165, %s179
      %p181 = scmp.eq.s32.totalorder %s29, 0
      %p182 = por %p180, %p181
      %s184 = sadd.s32 %s183, 1
      %p187 = scmp.eq.s32.totalorder %s23, 1
      %p188 = scmp.ne.s32.totalorder %s183, %s185
      %p189 = scmp.eq.s32.totalorder %s23, 0
      %p190 = por %p188, %p189
      %p191 = scmp.ne.s32.totalorder %s183, %s185
      %p192 = scmp.eq.s32.totalorder %s28, 1
      %p193 = por %p191, %p192
      %p194 = scmp.ne.s32.totalorder %s185, %s186
      %p195 = scmp.eq.s32.totalorder %s28, 0
      %p196 = por %p194, %p195
      %p197 = scmp.ne.s32.totalorder %s185, %s186
      %p198 = scmp.eq.s32.totalorder %s29, 1
      %p199 = por %p197, %p198
      %p201 = scmp.ne.s32.totalorder %s186, %s200
      %p202 = scmp.eq.s32.totalorder %s29, 0
      %p203 = por %p201, %p202
      %s205 = sadd.s32 %s204, 1
      %p208 = scmp.eq.s32.totalorder %s23, 1
      %p209 = scmp.ne.s32.totalorder %s204, %s206
      %p210 = scmp.eq.s32.totalorder %s23, 0
      %p211 = por %p209, %p210
      %p212 = scmp.ne.s32.totalorder %s204, %s206
      %p213 = scmp.eq.s32.totalorder %s28, 1
      %p214 = por %p212, %p213
      %p215 = scmp.ne.s32.totalorder %s206, %s207
      %p216 = scmp.eq.s32.totalorder %s28, 0
      %p217 = por %p215, %p216
      %p218 = scmp.ne.s32.totalorder %s206, %s207
      %p219 = scmp.eq.s32.totalorder %s29, 1
      %p220 = por %p218, %p219
      %p222 = scmp.ne.s32.totalorder %s207, %s221
      %p223 = scmp.eq.s32.totalorder %s29, 0
      %p224 = por %p222, %p223
      %s226 = sadd.s32 %s225, 1
      %p229 = scmp.eq.s32.totalorder %s23, 1
      %p230 = scmp.ne.s32.totalorder %s225, %s227
      %p231 = scmp.eq.s32.totalorder %s23, 0
      %p232 = por %p230, %p231
      %p233 = scmp.ne.s32.totalorder %s225, %s227
      %p234 = scmp.eq.s32.totalorder %s28, 1
      %p235 = por %p233, %p234
      %p236 = scmp.ne.s32.totalorder %s227, %s228
      %p237 = scmp.eq.s32.totalorder %s28, 0
      %p238 = por %p236, %p237
      %p239 = scmp.ne.s32.totalorder %s227, %s228
      %p240 = scmp.eq.s32.totalorder %s29, 1
      %p241 = por %p239, %p240
      %p243 = scmp.ne.s32.totalorder %s228, %s242
      %p244 = scmp.eq.s32.totalorder %s29, 0
      %p245 = por %p243, %p244
      %s247 = sadd.s32 %s246, 1
      %p250 = scmp.eq.s32.totalorder %s23, 1
      %p251 = scmp.ne.s32.totalorder %s246, %s248
      %p252 = scmp.eq.s32.totalorder %s23, 0
      %p253 = por %p251, %p252
      %p254 = scmp.ne.s32.totalorder %s246, %s248
      %p255 = scmp.eq.s32.totalorder %s28, 1
      %p256 = por %p254, %p255
      %p257 = scmp.ne.s32.totalorder %s248, %s249
      %p258 = scmp.eq.s32.totalorder %s28, 0
      %p259 = por %p257, %p258
      %p260 = scmp.ne.s32.totalorder %s248, %s249
      %p261 = scmp.eq.s32.totalorder %s29, 1
      %p262 = por %p260, %p261
      %p264 = scmp.ne.s32.totalorder %s249, %s263
      %p265 = scmp.eq.s32.totalorder %s29, 0
      %p266 = por %p264, %p265
      %s268 = sadd.s32 %s267, 1
      %p271 = scmp.eq.s32.totalorder %s23, 1
      %p272 = scmp.ne.s32.totalorder %s267, %s269
      %p273 = scmp.eq.s32.totalorder %s23, 0
      %p274 = por %p272, %p273
      %p275 = scmp.ne.s32.totalorder %s267, %s269
      %p276 = scmp.eq.s32.totalorder %s28, 1
      %p277 = por %p275, %p276
      %p278 = scmp.ne.s32.totalorder %s269, %s270
      %p279 = scmp.eq.s32.totalorder %s28, 0
      %p280 = por %p278, %p279
      %p281 = scmp.ne.s32.totalorder %s269, %s270
      %p282 = scmp.eq.s32.totalorder %s29, 1
      %p283 = por %p281, %p282
      %p285 = scmp.ne.s32.totalorder %s270, %s284
      %p286 = scmp.eq.s32.totalorder %s29, 0
      %p287 = por %p285, %p286
      %s289 = sadd.s32 %s288, 1
      %p292 = scmp.eq.s32.totalorder %s23, 1
      %p293 = scmp.ne.s32.totalorder %s288, %s290
      %p294 = scmp.eq.s32.totalorder %s23, 0
      %p295 = por %p293, %p294
      %p296 = scmp.ne.s32.totalorder %s288, %s290
      %p297 = scmp.eq.s32.totalorder %s28, 1
      %p298 = por %p296, %p297
      %p299 = scmp.ne.s32.totalorder %s290, %s291
      %p300 = scmp.eq.s32.totalorder %s28, 0
      %p301 = por %p299, %p300
      %p302 = scmp.ne.s32.totalorder %s290, %s291
      %p303 = scmp.eq.s32.totalorder %s29, 1
      %p304 = por %p302, %p303
      %p306 = scmp.ne.s32.totalorder %s291, %s305
      %p307 = scmp.eq.s32.totalorder %s29, 0
      %p308 = por %p306, %p307
      %s310 = sadd.s32 %s309, 1
      %p313 = scmp.eq.s32.totalorder %s23, 1
      %p314 = scmp.ne.s32.totalorder %s309, %s311
      %p315 = scmp.eq.s32.totalorder %s23, 0
      %p316 = por %p314, %p315
      %p317 = scmp.ne.s32.totalorder %s309, %s311
      %p318 = scmp.eq.s32.totalorder %s28, 1
      %p319 = por %p317, %p318
      %p320 = scmp.ne.s32.totalorder %s311, %s312
      %p321 = scmp.eq.s32.totalorder %s28, 0
      %p322 = por %p320, %p321
      %p323 = scmp.ne.s32.totalorder %s311, %s312
      %p324 = scmp.eq.s32.totalorder %s29, 1
      %p325 = por %p323, %p324
      %p327 = scmp.ne.s32.totalorder %s312, %s326
      %p328 = scmp.eq.s32.totalorder %s29, 0
      %p329 = por %p327, %p328
      %s330 = ssub.s32 %s23, %s30
      %p331 = scmp.eq.s32.totalorder %s330, 0
      %s333 = sadd.s32 %s332, 1
      %s334 = scalar_select %p331, %s332, %s333
      %p337 = pneg %p331
      %p338 = scmp.eq.s32.totalorder %s23, 1
      %p339 = por %p337, %p338
      %p340 = scmp.ne.s32.totalorder %s332, %s335
      %p341 = scmp.eq.s32.totalorder %s23, 0
      %p342 = por %p340, %p341
      %p343 = scmp.ne.s32.totalorder %s332, %s335
      %p344 = scmp.eq.s32.totalorder %s28, 1
      %p345 = por %p343, %p344
      %p346 = scmp.ne.s32.totalorder %s335, %s336
      %p347 = scmp.eq.s32.totalorder %s28, 0
      %p348 = por %p346, %p347
      %p349 = scmp.ne.s32.totalorder %s335, %s336
      %p350 = scmp.eq.s32.totalorder %s29, 1
      %p351 = por %p349, %p350
      %p353 = scmp.ne.s32.totalorder %s336, %s352
      %p354 = scmp.eq.s32.totalorder %s29, 0
      %p355 = por %p353, %p354
      %p356 = scmp.le.s32.totalorder 1, %s23
      %p357 = scmp.lt.s32.totalorder %s23, 3
      %p358 = pnand %p356, %p357
      %p359 = pneg %p358
      // Predicated region
      $region9: #{tpu_custom_call.1} parent=5 // pred_check
        _
      $region10: #{tpu_custom_call.1} parent=5 // pred_check_branch
        %361 = sbr.rel (%p358) target = $region12
      $region11: #{tpu_custom_call.1} parent=5 // pred_region
        %s362 = ssub.s32 %s23, 1
        // Predicated region
        $region13: #{tpu_custom_call.1} parent=11 // pred_check
          %p363 = pneg %p70
        $region14: #{tpu_custom_call.1} parent=11 // pred_check_branch
          %365 = sbr.rel (%p363) target = $region16
        $region15: #{tpu_custom_call.1} parent=11 // pred_region
          _
        $region16: #{tpu_custom_call.1} parent=11 // pred_fallthru
          _
        // Predicated region
        $region17: #{tpu_custom_call.1} parent=11 // pred_check
          %p366 = pneg %p91
        $region18: #{tpu_custom_call.1} parent=11 // pred_check_branch
          %368 = sbr.rel (%p366) target = $region20
        $region19: #{tpu_custom_call.1} parent=11 // pred_region
          _
        $region20: #{tpu_custom_call.1} parent=11 // pred_fallthru
          _
        // Predicated region
        $region21: #{tpu_custom_call.1} parent=11 // pred_check
          %p369 = pneg %p112
        $region22: #{tpu_custom_call.1} parent=11 // pred_check_branch
          %371 = sbr.rel (%p369) target = $region24
        $region23: #{tpu_custom_call.1} parent=11 // pred_region
          _
        $region24: #{tpu_custom_call.1} parent=11 // pred_fallthru
          _
        // Predicated region
        $region25: #{tpu_custom_call.1} parent=11 // pred_check
          %p372 = pneg %p133
        $region26: #{tpu_custom_call.1} parent=11 // pred_check_branch
          %374 = sbr.rel (%p372) target = $region28
        $region27: #{tpu_custom_call.1} parent=11 // pred_region
          _
        $region28: #{tpu_custom_call.1} parent=11 // pred_fallthru
          _
        // Predicated region
        $region29: #{tpu_custom_call.1} parent=11 // pred_check
          %p375 = pneg %p154
        $region30: #{tpu_custom_call.1} parent=11 // pred_check_branch
          %377 = sbr.rel (%p375) target = $region32
        $region31: #{tpu_custom_call.1} parent=11 // pred_region
          _
        $region32: #{tpu_custom_call.1} parent=11 // pred_fallthru
          _
        // Predicated region
        $region33: #{tpu_custom_call.1} parent=11 // pred_check
          %p378 = pneg %p175
        $region34: #{tpu_custom_call.1} parent=11 // pred_check_branch
          %380 = sbr.rel (%p378) target = $region36
        $region35: #{tpu_custom_call.1} parent=11 // pred_region
          _
        $region36: #{tpu_custom_call.1} parent=11 // pred_fallthru
          _
        // Predicated region
        $region37: #{tpu_custom_call.1} parent=11 // pred_check
          %p381 = pneg %p196
        $region38: #{tpu_custom_call.1} parent=11 // pred_check_branch
          %383 = sbr.rel (%p381) target = $region40
        $region39: #{tpu_custom_call.1} parent=11 // pred_region
          _
        $region40: #{tpu_custom_call.1} parent=11 // pred_fallthru
          _
        // Predicated region
        $region41: #{tpu_custom_call.1} parent=11 // pred_check
          %p384 = pneg %p217
        $region42: #{tpu_custom_call.1} parent=11 // pred_check_branch
          %386 = sbr.rel (%p384) target = $region44
        $region43: #{tpu_custom_call.1} parent=11 // pred_region
          _
        $region44: #{tpu_custom_call.1} parent=11 // pred_fallthru
          _
        // Predicated region
        $region45: #{tpu_custom_call.1} parent=11 // pred_check
          %p387 = pneg %p238
        $region46: #{tpu_custom_call.1} parent=11 // pred_check_branch
          %389 = sbr.rel (%p387) target = $region48
        $region47: #{tpu_custom_call.1} parent=11 // pred_region
          _
        $region48: #{tpu_custom_call.1} parent=11 // pred_fallthru
          _
        // Predicated region
        $region49: #{tpu_custom_call.1} parent=11 // pred_check
          %p390 = pneg %p259
        $region50: #{tpu_custom_call.1} parent=11 // pred_check_branch
          %392 = sbr.rel (%p390) target = $region52
        $region51: #{tpu_custom_call.1} parent=11 // pred_region
          _
        $region52: #{tpu_custom_call.1} parent=11 // pred_fallthru
          _
        // Predicated region
        $region53: #{tpu_custom_call.1} parent=11 // pred_check
          %p393 = pneg %p280
        $region54: #{tpu_custom_call.1} parent=11 // pred_check_branch
          %395 = sbr.rel (%p393) target = $region56
        $region55: #{tpu_custom_call.1} parent=11 // pred_region
          _
        $region56: #{tpu_custom_call.1} parent=11 // pred_fallthru
          _
        // Predicated region
        $region57: #{tpu_custom_call.1} parent=11 // pred_check
          %p396 = pneg %p301
        $region58: #{tpu_custom_call.1} parent=11 // pred_check_branch
          %398 = sbr.rel (%p396) target = $region60
        $region59: #{tpu_custom_call.1} parent=11 // pred_region
          _
        $region60: #{tpu_custom_call.1} parent=11 // pred_fallthru
          _
        // Predicated region
        $region61: #{tpu_custom_call.1} parent=11 // pred_check
          %p399 = pneg %p322
        $region62: #{tpu_custom_call.1} parent=11 // pred_check_branch
          %401 = sbr.rel (%p399) target = $region64
        $region63: #{tpu_custom_call.1} parent=11 // pred_region
          _
        $region64: #{tpu_custom_call.1} parent=11 // pred_fallthru
          _
      $region12: #{tpu_custom_call.1} parent=5 // pred_fallthru
        _
      %p402 = scmp.lt.s32.totalorder %s23, 2
      // Predicated region
      $region65: #{tpu_custom_call.1} parent=5 // pred_check
        %p403 = pneg %p402
      $region66: #{tpu_custom_call.1} parent=5 // pred_check_branch
        %405 = sbr.rel (%p403) target = $region68
      $region67: #{tpu_custom_call.1} parent=5 // pred_region
        // Predicated region
        $region69: #{tpu_custom_call.1} parent=67 // pred_check
          %p406 = pneg %p43
        $region70: #{tpu_custom_call.1} parent=67 // pred_check_branch
          %408 = sbr.rel (%p406) target = $region72
        $region71: #{tpu_custom_call.1} parent=67 // pred_region
          %p409 = scmp.lt.s32.totalorder %s23, 1
          %s410 = scalar_select %p409, %s23, 1
          %s411 = smul.addr %s410, 8
          %s412 = scalar_lea.vmem %s0, %s411
        $region72: #{tpu_custom_call.1} parent=67 // pred_fallthru
          _
      $region68: #{tpu_custom_call.1} parent=5 // pred_fallthru
        _
      %p413 = scmp.le.s32.totalorder 1, %s23
      %p414 = scmp.lt.s32.totalorder %s23, 3
      %p415 = pnand %p413, %p414
      %p416 = pneg %p415
      // Predicated region
      $region73: #{tpu_custom_call.1} parent=5 // pred_check
        _
      $region74: #{tpu_custom_call.1} parent=5 // pred_check_branch
        %418 = sbr.rel (%p415) target = $region76
      $region75: #{tpu_custom_call.1} parent=5 // pred_region
        %s419 = ssub.s32 %s23, 1
        %p420 = scmp.lt.s32.totalorder %s28, 1
        %s421 = scalar_select %p420, %s28, 1
        %s422 = smul.addr %s421, 8
        %s423 = scalar_lea.vmem %s0, %s422
        %p424 = pneg %p49
        %p425 = pneg %p46
        %p426 = pneg %p70
        %p427 = pneg %p67
        %p428 = pneg %p91
        %p429 = pneg %p88
        %p430 = pneg %p112
        %p431 = pneg %p109
        %p432 = pneg %p133
        %p433 = pneg %p130
        %p434 = pneg %p154
        %p435 = pneg %p151
        %p436 = pneg %p175
        %p437 = pneg %p172
        %p438 = pneg %p196
        %p439 = pneg %p193
        %p440 = pneg %p217
        %p441 = pneg %p214
        %p442 = pneg %p238
        %p443 = pneg %p235
        %p444 = pneg %p259
        %p445 = pneg %p256
        %p446 = pneg %p280
        %p447 = pneg %p277
        %p448 = pneg %p301
        %p449 = pneg %p298
        %p450 = pneg %p322
        %p451 = pneg %p319
        %p452 = pneg %p348
        %p453 = pneg %p345
        %s454 = sand.u32 %s335, 1
        %s455 = scalar_lea.sflag [#allocation3], %s454
        %s456 = sand.u32 %s335, 1
        %s457 = smul.addr %s456, 8
        %s458 = scalar_lea.vmem [#allocation2], %s457
        %p459 = scmp.lt.s32.totalorder %s28, 1
        %s460 = scalar_select %p459, %s28, 1
        %s461 = smul.addr %s460, 8
        %s462 = scalar_lea.vmem %s0, %s461
        %v464 = vld [vmem:[%s462] sm:$0xff]
        %v465 = vld [vmem:[%s2] sm:$0x1]
        %v466 = vld [vmem:[%s3] sm:$0x1]
        %vm467 = vcmask 261120
        %v468 = vsel %vm467, %v464, 0.0
        %469 = vadd.xlane.f32.xlu0 %v468
        %v470 = vpop.xlane.xlu0 %469
        %v471 = vrcp.pop 32.0
        %v472 = vmul.f32 %v470, %v471
        %v473 = vsub.f32 %v464, %v472
        %v474 = vmul.f32 %v473, %v473
        %v475 = vsel %vm467, %v474, 0.0
        %476 = vadd.xlane.f32.xlu0 %v475
        %v477 = vpop.xlane.xlu0 %476
        %v478 = vmul.f32 %v477, %v471
        %v479 = vadd.f32 %v478, 1e-05
        %v480 = vrsqrt.pop %v479
        %v481 = vmul.f32 %v473, %v480
        %v483 = vlaneseq
        %v484 = vshrl.u32 %v483, 7
        %v485 = vsub.s32 0, %v484
        %v486 = vrot.slane %v465, %v485
        %v488 = vmul.f32 %v481, %v486
        %v490 = vlaneseq
        %v491 = vshrl.u32 %v490, 7
        %v492 = vsub.s32 0, %v491
        %v493 = vrot.slane %v466, %v492
        %v495 = vadd.f32 %v488, %v493
        %v496 = vpack.c.bf16 %v495, %v495
        %v497 = vld [vmem:[%s4] sm:$0xf]
        %v498 = vld [vmem:[%s4 + $0x4] sm:$0xf]
        %v499 = vld [vmem:[%s4 + $0x8] sm:$0xf]
        %v500 = vld [vmem:[%s4 + $0xc] sm:$0xf]
        %v501 = vld [vmem:[%s5] sm:$0x1]
        %v503 = vlaneseq
        %v504 = vshrl.u32 %v503, 7
        %v505 = vsub.s32 0, %v504
        %v506 = vrot.slane %v501, %v505
        %v512 = vunpack.c.l.b16 %v497
        %v513 = vunpack.c.l.b16 %v498
        %v514 = vunpack.c.l.b16 %v499
        %v515 = vunpack.c.l.b16 %v500
        %v516 = vpack.c.b16 %v513, %v512
        %v517 = vpack.c.b16 %v515, %v514
        %v521 = vsel %vm467, %v496, 0
        %523 = vmatprep.subr.bf16.mxu0 0
        %524 = vmatpush1.bf16.msra.mxu0 %v516
        %525 = vmatprep.subr.bf16.mxu0 0
        %526 = vmatpush1.bf16.msra.mxu0 %v517
        %527 = vmatprep.subr.bf16.mxu0 0
        %528 = vmatpush1.bf16.msra.mxu0 0
        %529 = vmatprep.subr.bf16.mxu0 0
        %530 = vmatpush1.bf16.msra.mxu0 0
        %531 = vmatprep.subr.bf16.mxu0 0
        %532 = vmatpush1.bf16.msra.mxu0 0
        %533 = vmatprep.subr.bf16.mxu0 0
        %534 = vmatpush1.bf16.msra.mxu0 0
        %535 = vmatprep.subr.bf16.mxu0 0
        %536 = vmatpush1.bf16.msra.mxu0 0
        %537 = vmatprep.subr.bf16.mxu0 0
        %538 = vmatpush1.bf16.msra.mxu0 0
        %539 = vmatprep.subr.bf16.mxu0 0
        %540 = vmatpush1.bf16.msra.mxu0 0
        %541 = vmatprep.subr.bf16.mxu0 0
        %542 = vmatpush1.bf16.msra.mxu0 0
        %543 = vmatprep.subr.bf16.mxu0 0
        %544 = vmatpush1.bf16.msra.mxu0 0
        %545 = vmatprep.subr.bf16.mxu0 0
        %546 = vmatpush1.bf16.msra.mxu0 0
        %547 = vmatprep.subr.bf16.mxu0 0
        %548 = vmatpush1.bf16.msra.mxu0 0
        %549 = vmatprep.subr.bf16.mxu0 0
        %550 = vmatpush1.bf16.msra.mxu0 0
        %551 = vmatprep.subr.bf16.mxu0 0
        %552 = vmatpush1.bf16.msra.mxu0 0
        %553 = vmatprep.subr.bf16.mxu0 0
        %554 = vmatpush1.bf16.msra.mxu0 0
        %555 = vmatprep.mubr.bf16.mxu0 0
        %556 = vmatmul.mubr.bf16.gmra.mrb[0].mxu0 %v521
        %v557 = vpop.f32.mrb[0].mxu0
        %v558 = vadd.f32 %v506, %v557
        %v559 = vpop.f32.mrb[0].mxu0
        %v560 = vpop.f32.mrb[0].mxu0
        %v561 = vpop.f32.mrb[0].mxu0
        %562 = vdwg.mxu0
        %v563 = vpack.c.bf16 %v558, %v558
        %565 = vrot.lane.b32.xlu0 %v563, 120
        %v566 = vpop.permute.xlu0 %565
        %567 = vrot.lane.b32.xlu0 %v563, 112
        %v568 = vpop.permute.xlu0 %567
        %569 = vrot.lane.b32.xlu0 %v563, 104
        %v570 = vpop.permute.xlu0 %569
        %v572 = vunpack.c.l.s4 1983009808
        %v573 = vunpack.c.0.s8 %v572
        %v574 = vlaneseq
        %v575 = vshrl.u32 %v574, 7
        %v576 = vsub.s32 %v573, %v575
        %v577 = vrot.slane %v563, %v576
        %v580 = vunpack.c.l.s4 1983009808
        %v581 = vunpack.c.0.s8 %v580
        %v582 = vlaneseq
        %v583 = vshrl.u32 %v582, 7
        %v584 = vsub.s32 %v581, %v583
        %v585 = vrot.slane %v568, %v584
        %v586 = vcombine.low %v577, %v585
        %v587 = vcombine.high %v577, %v585
        %v589 = vunpack.c.l.s4 1934713408
        %v590 = vunpack.c.0.s8 %v589
        %v591 = vlaneseq
        %v592 = vshrl.u32 %v591, 7
        %v593 = vsub.s32 %v590, %v592
        %v594 = vrot.slane %v586, %v593
        %v596 = vunpack.c.l.s4 1934713408
        %v597 = vunpack.c.0.s8 %v596
        %v598 = vlaneseq
        %v599 = vshrl.u32 %v598, 7
        %v600 = vsub.s32 %v597, %v599
        %v601 = vrot.slane %v587, %v600
        %v602 = vcombine.high %v594, 0
        %v603 = vcombine.high %v601, 0
        %v606 = vunpack.c.l.s4 1983009808
        %v607 = vunpack.c.0.s8 %v606
        %v608 = vlaneseq
        %v609 = vshrl.u32 %v608, 7
        %v610 = vsub.s32 %v607, %v609
        %v611 = vrot.slane %v566, %v610
        %v614 = vunpack.c.l.s4 1983009808
        %v615 = vunpack.c.0.s8 %v614
        %v616 = vlaneseq
        %v617 = vshrl.u32 %v616, 7
        %v618 = vsub.s32 %v615, %v617
        %v619 = vrot.slane %v570, %v618
        %v620 = vcombine.low %v611, %v619
        %v621 = vcombine.high %v611, %v619
        %v623 = vunpack.c.l.s4 1934713408
        %v624 = vunpack.c.0.s8 %v623
        %v625 = vlaneseq
        %v626 = vshrl.u32 %v625, 7
        %v627 = vsub.s32 %v624, %v626
        %v628 = vrot.slane %v620, %v627
        %v630 = vunpack.c.l.s4 1934713408
        %v631 = vunpack.c.0.s8 %v630
        %v632 = vlaneseq
        %v633 = vshrl.u32 %v632, 7
        %v634 = vsub.s32 %v631, %v633
        %v635 = vrot.slane %v621, %v634
        %v636 = vcombine.high %v628, 0
        %v637 = vcombine.high %v635, 0
        %v640 = vpack.i.b16 %v628, %v594
        %v642 = vshrl.u32 %v594, 16
        %v643 = vshrl.u32 %v628, 16
        %v644 = vpack.i.b16 %v643, %v642
        %v648 = vpack.i.b16 %v636, %v602
        %v650 = vshrl.u32 %v602, 16
        %v651 = vshrl.u32 %v636, 16
        %v652 = vpack.i.b16 %v651, %v650
        %v656 = vpack.i.b16 %v635, %v601
        %v658 = vshrl.u32 %v601, 16
        %v659 = vshrl.u32 %v635, 16
        %v660 = vpack.i.b16 %v659, %v658
        %v664 = vpack.i.b16 %v637, %v603
        %v666 = vshrl.u32 %v603, 16
        %v667 = vshrl.u32 %v637, 16
        %v668 = vpack.i.b16 %v667, %v666
        %v670 = vcombine.low %v640, %v656
        %v672 = vunpack.c.l.s4 1983009808
        %v673 = vunpack.c.0.s8 %v672
        %v674 = vlaneseq
        %v675 = vshrl.u32 %v674, 7
        %v676 = vsub.s32 %v673, %v675
        %v677 = vrot.slane %v670, %v676
        %v678 = vcombine.low %v648, %v664
        %v680 = vunpack.c.l.s4 1983009808
        %v681 = vunpack.c.0.s8 %v680
        %v682 = vlaneseq
        %v683 = vshrl.u32 %v682, 7
        %v684 = vsub.s32 %v681, %v683
        %v685 = vrot.slane %v678, %v684
        %v686 = vcombine.low %v677, %v685
        %v688 = vunpack.c.l.s4 1934713408
        %v689 = vunpack.c.0.s8 %v688
        %v690 = vlaneseq
        %v691 = vshrl.u32 %v690, 7
        %v692 = vsub.s32 %v689, %v691
        %v693 = vrot.slane %v686, %v692
        %v694 = vcombine.high %v693, 0
        %v695 = vcombine.low %v644, %v660
        %v697 = vunpack.c.l.s4 1983009808
        %v698 = vunpack.c.0.s8 %v697
        %v699 = vlaneseq
        %v700 = vshrl.u32 %v699, 7
        %v701 = vsub.s32 %v698, %v700
        %v702 = vrot.slane %v695, %v701
        %v703 = vcombine.low %v652, %v668
        %v705 = vunpack.c.l.s4 1983009808
        %v706 = vunpack.c.0.s8 %v705
        %v707 = vlaneseq
        %v708 = vshrl.u32 %v707, 7
        %v709 = vsub.s32 %v706, %v708
        %v710 = vrot.slane %v703, %v709
        %v711 = vcombine.low %v702, %v710
        %v713 = vunpack.c.l.s4 1934713408
        %v714 = vunpack.c.0.s8 %v713
        %v715 = vlaneseq
        %v716 = vshrl.u32 %v715, 7
        %v717 = vsub.s32 %v714, %v716
        %v718 = vrot.slane %v711, %v717
        %v719 = vcombine.high %v718, 0
        %v722 = vpack.i.b16 %v718, %v693
        %v723 = vshrl.u32 %v693, 16
        %v724 = vshrl.u32 %v718, 16
        %v725 = vpack.i.b16 %v724, %v723
        %v728 = vpack.i.b16 %v719, %v694
        %v729 = vshrl.u32 %v694, 16
        %v730 = vshrl.u32 %v719, 16
        %v731 = vpack.i.b16 %v730, %v729
        %732 = vrot.lane.b32.xlu0 %v563, 96
        %v733 = vpop.permute.xlu0 %732
        %734 = vrot.lane.b32.xlu0 %v566, 96
        %v735 = vpop.permute.xlu0 %734
        %736 = vrot.lane.b32.xlu0 %v568, 96
        %v737 = vpop.permute.xlu0 %736
        %738 = vrot.lane.b32.xlu0 %v570, 96
        %v739 = vpop.permute.xlu0 %738
        %v742 = vunpack.c.l.s4 1983009808
        %v743 = vunpack.c.0.s8 %v742
        %v744 = vlaneseq
        %v745 = vshrl.u32 %v744, 7
        %v746 = vsub.s32 %v743, %v745
        %v747 = vrot.slane %v733, %v746
        %v750 = vunpack.c.l.s4 1983009808
        %v751 = vunpack.c.0.s8 %v750
        %v752 = vlaneseq
        %v753 = vshrl.u32 %v752, 7
        %v754 = vsub.s32 %v751, %v753
        %v755 = vrot.slane %v737, %v754
        %v756 = vcombine.low %v747, %v755
        %v757 = vcombine.high %v747, %v755
        %v759 = vunpack.c.l.s4 1934713408
        %v760 = vunpack.c.0.s8 %v759
        %v761 = vlaneseq
        %v762 = vshrl.u32 %v761, 7
        %v763 = vsub.s32 %v760, %v762
        %v764 = vrot.slane %v756, %v763
        %v766 = vunpack.c.l.s4 1934713408
        %v767 = vunpack.c.0.s8 %v766
        %v768 = vlaneseq
        %v769 = vshrl.u32 %v768, 7
        %v770 = vsub.s32 %v767, %v769
        %v771 = vrot.slane %v757, %v770
        %v772 = vcombine.high %v764, 0
        %v773 = vcombine.high %v771, 0
        %v776 = vunpack.c.l.s4 1983009808
        %v777 = vunpack.c.0.s8 %v776
        %v778 = vlaneseq
        %v779 = vshrl.u32 %v778, 7
        %v780 = vsub.s32 %v777, %v779
        %v781 = vrot.slane %v735, %v780
        %v784 = vunpack.c.l.s4 1983009808
        %v785 = vunpack.c.0.s8 %v784
        %v786 = vlaneseq
        %v787 = vshrl.u32 %v786, 7
        %v788 = vsub.s32 %v785, %v787
        %v789 = vrot.slane %v739, %v788
        %v790 = vcombine.low %v781, %v789
        %v791 = vcombine.high %v781, %v789
        %v793 = vunpack.c.l.s4 1934713408
        %v794 = vunpack.c.0.s8 %v793
        %v795 = vlaneseq
        %v796 = vshrl.u32 %v795, 7
        %v797 = vsub.s32 %v794, %v796
        %v798 = vrot.slane %v790, %v797
        %v800 = vunpack.c.l.s4 1934713408
        %v801 = vunpack.c.0.s8 %v800
        %v802 = vlaneseq
        %v803 = vshrl.u32 %v802, 7
        %v804 = vsub.s32 %v801, %v803
        %v805 = vrot.slane %v791, %v804
        %v806 = vcombine.high %v798, 0
        %v807 = vcombine.high %v805, 0
        %v810 = vpack.i.b16 %v798, %v764
        %v812 = vshrl.u32 %v764, 16
        %v813 = vshrl.u32 %v798, 16
        %v814 = vpack.i.b16 %v813, %v812
        %v818 = vpack.i.b16 %v806, %v772
        %v820 = vshrl.u32 %v772, 16
        %v821 = vshrl.u32 %v806, 16
        %v822 = vpack.i.b16 %v821, %v820
        %v826 = vpack.i.b16 %v805, %v771
        %v828 = vshrl.u32 %v771, 16
        %v829 = vshrl.u32 %v805, 16
        %v830 = vpack.i.b16 %v829, %v828
        %v834 = vpack.i.b16 %v807, %v773
        %v836 = vshrl.u32 %v773, 16
        %v837 = vshrl.u32 %v807, 16
        %v838 = vpack.i.b16 %v837, %v836
        %v840 = vcombine.low %v810, %v826
        %v842 = vunpack.c.l.s4 1983009808
        %v843 = vunpack.c.0.s8 %v842
        %v844 = vlaneseq
        %v845 = vshrl.u32 %v844, 7
        %v846 = vsub.s32 %v843, %v845
        %v847 = vrot.slane %v840, %v846
        %v848 = vcombine.low %v818, %v834
        %v850 = vunpack.c.l.s4 1983009808
        %v851 = vunpack.c.0.s8 %v850
        %v852 = vlaneseq
        %v853 = vshrl.u32 %v852, 7
        %v854 = vsub.s32 %v851, %v853
        %v855 = vrot.slane %v848, %v854
        %v856 = vcombine.low %v847, %v855
        %v858 = vunpack.c.l.s4 1934713408
        %v859 = vunpack.c.0.s8 %v858
        %v860 = vlaneseq
        %v861 = vshrl.u32 %v860, 7
        %v862 = vsub.s32 %v859, %v861
        %v863 = vrot.slane %v856, %v862
        %v864 = vcombine.high %v863, 0
        %v865 = vcombine.low %v814, %v830
        %v867 = vunpack.c.l.s4 1983009808
        %v868 = vunpack.c.0.s8 %v867
        %v869 = vlaneseq
        %v870 = vshrl.u32 %v869, 7
        %v871 = vsub.s32 %v868, %v870
        %v872 = vrot.slane %v865, %v871
        %v873 = vcombine.low %v822, %v838
        %v875 = vunpack.c.l.s4 1983009808
        %v876 = vunpack.c.0.s8 %v875
        %v877 = vlaneseq
        %v878 = vshrl.u32 %v877, 7
        %v879 = vsub.s32 %v876, %v878
        %v880 = vrot.slane %v873, %v879
        %v881 = vcombine.low %v872, %v880
        %v883 = vunpack.c.l.s4 1934713408
        %v884 = vunpack.c.0.s8 %v883
        %v885 = vlaneseq
        %v886 = vshrl.u32 %v885, 7
        %v887 = vsub.s32 %v884, %v886
        %v888 = vrot.slane %v881, %v887
        %v889 = vcombine.high %v888, 0
        %v892 = vpack.i.b16 %v888, %v863
        %v893 = vshrl.u32 %v863, 16
        %v894 = vshrl.u32 %v888, 16
        %v895 = vpack.i.b16 %v894, %v893
        %v898 = vpack.i.b16 %v889, %v864
        %v899 = vshrl.u32 %v864, 16
        %v900 = vshrl.u32 %v889, 16
        %v901 = vpack.i.b16 %v900, %v899
        %902 = vrot.lane.b32.xlu0 %v563, 64
        %v903 = vpop.permute.xlu0 %902
        %904 = vrot.lane.b32.xlu0 %v566, 64
        %v905 = vpop.permute.xlu0 %904
        %906 = vrot.lane.b32.xlu0 %v568, 64
        %v907 = vpop.permute.xlu0 %906
        %908 = vrot.lane.b32.xlu0 %v570, 64
        %v909 = vpop.permute.xlu0 %908
        %v912 = vunpack.c.l.s4 1983009808
        %v913 = vunpack.c.0.s8 %v912
        %v914 = vlaneseq
        %v915 = vshrl.u32 %v914, 7
        %v916 = vsub.s32 %v913, %v915
        %v917 = vrot.slane %v903, %v916
        %v920 = vunpack.c.l.s4 1983009808
        %v921 = vunpack.c.0.s8 %v920
        %v922 = vlaneseq
        %v923 = vshrl.u32 %v922, 7
        %v924 = vsub.s32 %v921, %v923
        %v925 = vrot.slane %v907, %v924
        %v926 = vcombine.low %v917, %v925
        %v927 = vcombine.high %v917, %v925
        %v929 = vunpack.c.l.s4 1934713408
        %v930 = vunpack.c.0.s8 %v929
        %v931 = vlaneseq
        %v932 = vshrl.u32 %v931, 7
        %v933 = vsub.s32 %v930, %v932
        %v934 = vrot.slane %v926, %v933
        %v936 = vunpack.c.l.s4 1934713408
        %v937 = vunpack.c.0.s8 %v936
        %v938 = vlaneseq
        %v939 = vshrl.u32 %v938, 7
        %v940 = vsub.s32 %v937, %v939
        %v941 = vrot.slane %v927, %v940
        %v942 = vcombine.high %v934, 0
        %v943 = vcombine.high %v941, 0
        %v946 = vunpack.c.l.s4 1983009808
        %v947 = vunpack.c.0.s8 %v946
        %v948 = vlaneseq
        %v949 = vshrl.u32 %v948, 7
        %v950 = vsub.s32 %v947, %v949
        %v951 = vrot.slane %v905, %v950
        %v954 = vunpack.c.l.s4 1983009808
        %v955 = vunpack.c.0.s8 %v954
        %v956 = vlaneseq
        %v957 = vshrl.u32 %v956, 7
        %v958 = vsub.s32 %v955, %v957
        %v959 = vrot.slane %v909, %v958
        %v960 = vcombine.low %v951, %v959
        %v961 = vcombine.high %v951, %v959
        %v963 = vunpack.c.l.s4 1934713408
        %v964 = vunpack.c.0.s8 %v963
        %v965 = vlaneseq
        %v966 = vshrl.u32 %v965, 7
        %v967 = vsub.s32 %v964, %v966
        %v968 = vrot.slane %v960, %v967
        %v970 = vunpack.c.l.s4 1934713408
        %v971 = vunpack.c.0.s8 %v970
        %v972 = vlaneseq
        %v973 = vshrl.u32 %v972, 7
        %v974 = vsub.s32 %v971, %v973
        %v975 = vrot.slane %v961, %v974
        %v976 = vcombine.high %v968, 0
        %v977 = vcombine.high %v975, 0
        %v980 = vpack.i.b16 %v968, %v934
        %v982 = vshrl.u32 %v934, 16
        %v983 = vshrl.u32 %v968, 16
        %v984 = vpack.i.b16 %v983, %v982
        %v988 = vpack.i.b16 %v976, %v942
        %v990 = vshrl.u32 %v942, 16
        %v991 = vshrl.u32 %v976, 16
        %v992 = vpack.i.b16 %v991, %v990
        %v996 = vpack.i.b16 %v975, %v941
        %v998 = vshrl.u32 %v941, 16
        %v999 = vshrl.u32 %v975, 16
        %v1000 = vpack.i.b16 %v999, %v998
        %v1004 = vpack.i.b16 %v977, %v943
        %v1006 = vshrl.u32 %v943, 16
        %v1007 = vshrl.u32 %v977, 16
        %v1008 = vpack.i.b16 %v1007, %v1006
        %v1010 = vcombine.low %v980, %v996
        %v1012 = vunpack.c.l.s4 1983009808
        %v1013 = vunpack.c.0.s8 %v1012
        %v1014 = vlaneseq
        %v1015 = vshrl.u32 %v1014, 7
        %v1016 = vsub.s32 %v1013, %v1015
        %v1017 = vrot.slane %v1010, %v1016
        %v1018 = vcombine.low %v988, %v1004
        %v1020 = vunpack.c.l.s4 1983009808
        %v1021 = vunpack.c.0.s8 %v1020
        %v1022 = vlaneseq
        %v1023 = vshrl.u32 %v1022, 7
        %v1024 = vsub.s32 %v1021, %v1023
        %v1025 = vrot.slane %v1018, %v1024
        %v1026 = vcombine.low %v1017, %v1025
        %v1028 = vunpack.c.l.s4 1934713408
        %v1029 = vunpack.c.0.s8 %v1028
        %v1030 = vlaneseq
        %v1031 = vshrl.u32 %v1030, 7
        %v1032 = vsub.s32 %v1029, %v1031
        %v1033 = vrot.slane %v1026, %v1032
        %v1034 = vcombine.high %v1033, 0
        %v1035 = vcombine.low %v984, %v1000
        %v1037 = vunpack.c.l.s4 1983009808
        %v1038 = vunpack.c.0.s8 %v1037
        %v1039 = vlaneseq
        %v1040 = vshrl.u32 %v1039, 7
        %v1041 = vsub.s32 %v1038, %v1040
        %v1042 = vrot.slane %v1035, %v1041
        %v1043 = vcombine.low %v992, %v1008
        %v1045 = vunpack.c.l.s4 1983009808
        %v1046 = vunpack.c.0.s8 %v1045
        %v1047 = vlaneseq
        %v1048 = vshrl.u32 %v1047, 7
        %v1049 = vsub.s32 %v1046, %v1048
        %v1050 = vrot.slane %v1043, %v1049
        %v1051 = vcombine.low %v1042, %v1050
        %v1053 = vunpack.c.l.s4 1934713408
        %v1054 = vunpack.c.0.s8 %v1053
        %v1055 = vlaneseq
        %v1056 = vshrl.u32 %v1055, 7
        %v1057 = vsub.s32 %v1054, %v1056
        %v1058 = vrot.slane %v1051, %v1057
        %v1059 = vcombine.high %v1058, 0
        %v1062 = vpack.i.b16 %v1058, %v1033
        %v1063 = vshrl.u32 %v1033, 16
        %v1064 = vshrl.u32 %v1058, 16
        %v1065 = vpack.i.b16 %v1064, %v1063
        %v1068 = vpack.i.b16 %v1059, %v1034
        %v1069 = vshrl.u32 %v1034, 16
        %v1070 = vshrl.u32 %v1059, 16
        %v1071 = vpack.i.b16 %v1070, %v1069
        %vm1072 = vcmask 64512
        %v1074 = vsel %vm1072, %v722, 0
        %v1077 = vsel %vm1072, %v892, 0
        %1079 = vmatprep.subr.bf16.mxu0 0
        %1080 = vmatpush1.bf16.xpose.msra.mxu0 %v1077
        %1081 = vmatprep.subr.bf16.mxu0 0
        %1082 = vmatpush1.bf16.xpose.msra.mxu0 0
        %1083 = vmatprep.subr.bf16.mxu0 0
        %1084 = vmatpush1.bf16.xpose.msra.mxu0 0
        %1085 = vmatprep.subr.bf16.mxu0 0
        %1086 = vmatpush1.bf16.xpose.msra.mxu0 0
        %1087 = vmatprep.subr.bf16.mxu0 0
        %1088 = vmatpush1.bf16.xpose.msra.mxu0 0
        %1089 = vmatprep.subr.bf16.mxu0 0
        %1090 = vmatpush1.bf16.xpose.msra.mxu0 0
        %1091 = vmatprep.subr.bf16.mxu0 0
        %1092 = vmatpush1.bf16.xpose.msra.mxu0 0
        %1093 = vmatprep.subr.bf16.mxu0 0
        %1094 = vmatpush1.bf16.xpose.msra.mxu0 0
        %1095 = vmatprep.subr.bf16.mxu0 0
        %1096 = vmatpush1.bf16.xpose.msra.mxu0 0
        %1097 = vmatprep.subr.bf16.mxu0 0
        %1098 = vmatpush1.bf16.xpose.msra.mxu0 0
        %1099 = vmatprep.subr.bf16.mxu0 0
        %1100 = vmatpush1.bf16.xpose.msra.mxu0 0
        %1101 = vmatprep.subr.bf16.mxu0 0
        %1102 = vmatpush1.bf16.xpose.msra.mxu0 0
        %1103 = vmatprep.subr.bf16.mxu0 0
        %1104 = vmatpush1.bf16.xpose.msra.mxu0 0
        %1105 = vmatprep.subr.bf16.mxu0 0
        %1106 = vmatpush1.bf16.xpose.msra.mxu0 0
        %1107 = vmatprep.subr.bf16.mxu0 0
        %1108 = vmatpush1.bf16.xpose.msra.mxu0 0
        %1109 = vmatprep.subr.bf16.mxu0 0
        %1110 = vmatpush1.bf16.xpose.msra.mxu0 0
        %1111 = vmatprep.mubr.bf16.mxu0 0
        %1112 = vmatmul.mubr.bf16.gmra.mrb[0].mxu0 %v1074
        %v1113 = vpop.f32.mrb[0].mxu0
        %v1114 = vadd.f32 0.0, %v1113
        %v1115 = vpop.f32.mrb[0].mxu0
        %v1116 = vpop.f32.mrb[0].mxu0
        %v1117 = vpop.f32.mrb[0].mxu0
        %1118 = vdwg.mxu0
        %v1120 = vsel %vm1072, %v725, 0
        %v1123 = vsel %vm1072, %v895, 0
        %1125 = vmatprep.subr.bf16.mxu0 0
        %1126 = vmatpush1.bf16.xpose.msra.mxu0 %v1123
        %1127 = vmatprep.subr.bf16.mxu0 0
        %1128 = vmatpush1.bf16.xpose.msra.mxu0 0
        %1129 = vmatprep.subr.bf16.mxu0 0
        %1130 = vmatpush1.bf16.xpose.msra.mxu0 0
        %1131 = vmatprep.subr.bf16.mxu0 0
        %1132 = vmatpush1.bf16.xpose.msra.mxu0 0
        %1133 = vmatprep.subr.bf16.mxu0 0
        %1134 = vmatpush1.bf16.xpose.msra.mxu0 0
        %1135 = vmatprep.subr.bf16.mxu0 0
        %1136 = vmatpush1.bf16.xpose.msra.mxu0 0
        %1137 = vmatprep.subr.bf16.mxu0 0
        %1138 = vmatpush1.bf16.xpose.msra.mxu0 0
        %1139 = vmatprep.subr.bf16.mxu0 0
        %1140 = vmatpush1.bf16.xpose.msra.mxu0 0
        %1141 = vmatprep.subr.bf16.mxu0 0
        %1142 = vmatpush1.bf16.xpose.msra.mxu0 0
        %1143 = vmatprep.subr.bf16.mxu0 0
        %1144 = vmatpush1.bf16.xpose.msra.mxu0 0
        %1145 = vmatprep.subr.bf16.mxu0 0
        %1146 = vmatpush1.bf16.xpose.msra.mxu0 0
        %1147 = vmatprep.subr.bf16.mxu0 0
        %1148 = vmatpush1.bf16.xpose.msra.mxu0 0
        %1149 = vmatprep.subr.bf16.mxu0 0
        %1150 = vmatpush1.bf16.xpose.msra.mxu0 0
        %1151 = vmatprep.subr.bf16.mxu0 0
        %1152 = vmatpush1.bf16.xpose.msra.mxu0 0
        %1153 = vmatprep.subr.bf16.mxu0 0
        %1154 = vmatpush1.bf16.xpose.msra.mxu0 0
        %1155 = vmatprep.subr.bf16.mxu0 0
        %1156 = vmatpush1.bf16.xpose.msra.mxu0 0
        %1157 = vmatprep.mubr.bf16.mxu0 0
        %1158 = vmatmul.mubr.bf16.gmra.mrb[0].mxu0 %v1120
        %v1159 = vpop.f32.mrb[0].mxu0
        %v1160 = vadd.f32 0.0, %v1159
        %v1161 = vpop.f32.mrb[0].mxu0
        %v1162 = vpop.f32.mrb[0].mxu0
        %v1163 = vpop.f32.mrb[0].mxu0
        %1164 = vdwg.mxu0
        %v1166 = vsel %vm1072, %v728, 0
        %v1169 = vsel %vm1072, %v898, 0
        %1171 = vmatprep.subr.bf16.mxu0 0
        %1172 = vmatpush1.bf16.xpose.msra.mxu0 %v1169
        %1173 = vmatprep.subr.bf16.mxu0 0
        %1174 = vmatpush1.bf16.xpose.msra.mxu0 0
        %1175 = vmatprep.subr.bf16.mxu0 0
        %1176 = vmatpush1.bf16.xpose.msra.mxu0 0
        %1177 = vmatprep.subr.bf16.mxu0 0
        %1178 = vmatpush1.bf16.xpose.msra.mxu0 0
        %1179 = vmatprep.subr.bf16.mxu0 0
        %1180 = vmatpush1.bf16.xpose.msra.mxu0 0
        %1181 = vmatprep.subr.bf16.mxu0 0
        %1182 = vmatpush1.bf16.xpose.msra.mxu0 0
        %1183 = vmatprep.subr.bf16.mxu0 0
        %1184 = vmatpush1.bf16.xpose.msra.mxu0 0
        %1185 = vmatprep.subr.bf16.mxu0 0
        %1186 = vmatpush1.bf16.xpose.msra.mxu0 0
        %1187 = vmatprep.subr.bf16.mxu0 0
        %1188 = vmatpush1.bf16.xpose.msra.mxu0 0
        %1189 = vmatprep.subr.bf16.mxu0 0
        %1190 = vmatpush1.bf16.xpose.msra.mxu0 0
        %1191 = vmatprep.subr.bf16.mxu0 0
        %1192 = vmatpush1.bf16.xpose.msra.mxu0 0
        %1193 = vmatprep.subr.bf16.mxu0 0
        %1194 = vmatpush1.bf16.xpose.msra.mxu0 0
        %1195 = vmatprep.subr.bf16.mxu0 0
        %1196 = vmatpush1.bf16.xpose.msra.mxu0 0
        %1197 = vmatprep.subr.bf16.mxu0 0
        %1198 = vmatpush1.bf16.xpose.msra.mxu0 0
        %1199 = vmatprep.subr.bf16.mxu0 0
        %1200 = vmatpush1.bf16.xpose.msra.mxu0 0
        %1201 = vmatprep.subr.bf16.mxu0 0
        %1202 = vmatpush1.bf16.xpose.msra.mxu0 0
        %1203 = vmatprep.mubr.bf16.mxu0 0
        %1204 = vmatmul.mubr.bf16.gmra.mrb[0].mxu0 %v1166
        %v1205 = vpop.f32.mrb[0].mxu0
        %v1206 = vadd.f32 0.0, %v1205
        %v1207 = vpop.f32.mrb[0].mxu0
        %v1208 = vpop.f32.mrb[0].mxu0
        %v1209 = vpop.f32.mrb[0].mxu0
        %1210 = vdwg.mxu0
        %v1212 = vsel %vm1072, %v731, 0
        %v1215 = vsel %vm1072, %v901, 0
        %1217 = vmatprep.subr.bf16.mxu0 0
        %1218 = vmatpush1.bf16.xpose.msra.mxu0 %v1215
        %1219 = vmatprep.subr.bf16.mxu0 0
        %1220 = vmatpush1.bf16.xpose.msra.mxu0 0
        %1221 = vmatprep.subr.bf16.mxu0 0
        %1222 = vmatpush1.bf16.xpose.msra.mxu0 0
        %1223 = vmatprep.subr.bf16.mxu0 0
        %1224 = vmatpush1.bf16.xpose.msra.mxu0 0
        %1225 = vmatprep.subr.bf16.mxu0 0
        %1226 = vmatpush1.bf16.xpose.msra.mxu0 0
        %1227 = vmatprep.subr.bf16.mxu0 0
        %1228 = vmatpush1.bf16.xpose.msra.mxu0 0
        %1229 = vmatprep.subr.bf16.mxu0 0
        %1230 = vmatpush1.bf16.xpose.msra.mxu0 0
        %1231 = vmatprep.subr.bf16.mxu0 0
        %1232 = vmatpush1.bf16.xpose.msra.mxu0 0
        %1233 = vmatprep.subr.bf16.mxu0 0
        %1234 = vmatpush1.bf16.xpose.msra.mxu0 0
        %1235 = vmatprep.subr.bf16.mxu0 0
        %1236 = vmatpush1.bf16.xpose.msra.mxu0 0
        %1237 = vmatprep.subr.bf16.mxu0 0
        %1238 = vmatpush1.bf16.xpose.msra.mxu0 0
        %1239 = vmatprep.subr.bf16.mxu0 0
        %1240 = vmatpush1.bf16.xpose.msra.mxu0 0
        %1241 = vmatprep.subr.bf16.mxu0 0
        %1242 = vmatpush1.bf16.xpose.msra.mxu0 0
        %1243 = vmatprep.subr.bf16.mxu0 0
        %1244 = vmatpush1.bf16.xpose.msra.mxu0 0
        %1245 = vmatprep.subr.bf16.mxu0 0
        %1246 = vmatpush1.bf16.xpose.msra.mxu0 0
        %1247 = vmatprep.subr.bf16.mxu0 0
        %1248 = vmatpush1.bf16.xpose.msra.mxu0 0
        %1249 = vmatprep.mubr.bf16.mxu0 0
        %1250 = vmatmul.mubr.bf16.gmra.mrb[0].mxu0 %v1212
        %v1251 = vpop.f32.mrb[0].mxu0
        %v1252 = vadd.f32 0.0, %v1251
        %v1253 = vpop.f32.mrb[0].mxu0
        %v1254 = vpop.f32.mrb[0].mxu0
        %v1255 = vpop.f32.mrb[0].mxu0
        %1256 = vdwg.mxu0
        %v1257 = vmul.f32 %v1114, 0.35355338
        %v1258 = vmul.f32 %v1160, 0.35355338
        %v1259 = vmul.f32 %v1206, 0.35355338
        %v1260 = vmul.f32 %v1252, 0.35355338
        %v1261 = vld [vmem:[%s1] sm:$0xff]
        %v1262 = vadd.f32 %v1257, %v1261
        %v1263 = vadd.f32 %v1258, %v1261
        %v1264 = vadd.f32 %v1259, %v1261
        %v1265 = vadd.f32 %v1260, %v1261
        %v1266 = vsel %vm1072, %v1262, -inf
        %1267 = vmax.xlane.f32.xlu0 %v1266
        %v1268 = vpop.xlane.xlu0 %1267
        %v1269 = vsel %vm1072, %v1263, -inf
        %1270 = vmax.xlane.f32.xlu0 %v1269
        %v1271 = vpop.xlane.xlu0 %1270
        %v1272 = vsel %vm1072, %v1264, -inf
        %1273 = vmax.xlane.f32.xlu0 %v1272
        %v1274 = vpop.xlane.xlu0 %1273
        %v1275 = vsel %vm1072, %v1265, -inf
        %1276 = vmax.xlane.f32.xlu0 %v1275
        %v1277 = vpop.xlane.xlu0 %1276
        %v1278 = vsub.f32 %v1262, %v1268
        %v1279 = vsub.f32 %v1263, %v1271
        %v1280 = vsub.f32 %v1264, %v1274
        %v1281 = vsub.f32 %v1265, %v1277
        %v1282 = vmul.f32 %v1278, 1.442695
        %v1283 = vpow.pop %v1282
        %v1284 = vmul.f32 %v1279, 1.442695
        %v1285 = vpow.pop %v1284
        %v1286 = vmul.f32 %v1280, 1.442695
        %v1287 = vpow.pop %v1286
        %v1288 = vmul.f32 %v1281, 1.442695
        %v1289 = vpow.pop %v1288
        %v1290 = vsel %vm1072, %v1283, 0.0
        %1291 = vadd.xlane.f32.xlu0 %v1290
        %v1292 = vpop.xlane.xlu0 %1291
        %v1293 = vsel %vm1072, %v1285, 0.0
        %1294 = vadd.xlane.f32.xlu0 %v1293
        %v1295 = vpop.xlane.xlu0 %1294
        %v1296 = vsel %vm1072, %v1287, 0.0
        %1297 = vadd.xlane.f32.xlu0 %v1296
        %v1298 = vpop.xlane.xlu0 %1297
        %v1299 = vsel %vm1072, %v1289, 0.0
        %1300 = vadd.xlane.f32.xlu0 %v1299
        %v1301 = vpop.xlane.xlu0 %1300
        %v1302 = vpack.c.bf16 %v1283, %v1283
        %v1303 = vpack.c.bf16 %v1285, %v1285
        %v1304 = vpack.c.bf16 %v1287, %v1287
        %v1305 = vpack.c.bf16 %v1289, %v1289
        %v1307 = vsel %vm1072, %v1302, 0
        %vm1309 = vcmask 1043456
        %v1311 = vsel %vm1309, %v1062, 0
        %1313 = vmatprep.subr.bf16.mxu0 0
        %1314 = vmatpush1.bf16.msra.mxu0 %v1311
        %1315 = vmatprep.subr.bf16.mxu0 0
        %1316 = vmatpush1.bf16.msra.mxu0 0
        %1317 = vmatprep.subr.bf16.mxu0 0
        %1318 = vmatpush1.bf16.msra.mxu0 0
        %1319 = vmatprep.subr.bf16.mxu0 0
        %1320 = vmatpush1.bf16.msra.mxu0 0
        %1321 = vmatprep.subr.bf16.mxu0 0
        %1322 = vmatpush1.bf16.msra.mxu0 0
        %1323 = vmatprep.subr.bf16.mxu0 0
        %1324 = vmatpush1.bf16.msra.mxu0 0
        %1325 = vmatprep.subr.bf16.mxu0 0
        %1326 = vmatpush1.bf16.msra.mxu0 0
        %1327 = vmatprep.subr.bf16.mxu0 0
        %1328 = vmatpush1.bf16.msra.mxu0 0
        %1329 = vmatprep.subr.bf16.mxu0 0
        %1330 = vmatpush1.bf16.msra.mxu0 0
        %1331 = vmatprep.subr.bf16.mxu0 0
        %1332 = vmatpush1.bf16.msra.mxu0 0
        %1333 = vmatprep.subr.bf16.mxu0 0
        %1334 = vmatpush1.bf16.msra.mxu0 0
        %1335 = vmatprep.subr.bf16.mxu0 0
        %1336 = vmatpush1.bf16.msra.mxu0 0
        %1337 = vmatprep.subr.bf16.mxu0 0
        %1338 = vmatpush1.bf16.msra.mxu0 0
        %1339 = vmatprep.subr.bf16.mxu0 0
        %1340 = vmatpush1.bf16.msra.mxu0 0
        %1341 = vmatprep.subr.bf16.mxu0 0
        %1342 = vmatpush1.bf16.msra.mxu0 0
        %1343 = vmatprep.subr.bf16.mxu0 0
        %1344 = vmatpush1.bf16.msra.mxu0 0
        %1345 = vmatprep.mubr.bf16.mxu0 0
        %1346 = vmatmul.mubr.bf16.gmra.mrb[0].mxu0 %v1307
        %v1347 = vpop.f32.mrb[0].mxu0
        %v1348 = vadd.f32 0.0, %v1347
        %v1349 = vpop.f32.mrb[0].mxu0
        %v1350 = vpop.f32.mrb[0].mxu0
        %v1351 = vpop.f32.mrb[0].mxu0
        %1352 = vdwg.mxu0
        %v1354 = vsel %vm1072, %v1303, 0
        %v1357 = vsel %vm1309, %v1065, 0
        %1359 = vmatprep.subr.bf16.mxu0 0
        %1360 = vmatpush1.bf16.msra.mxu0 %v1357
        %1361 = vmatprep.subr.bf16.mxu0 0
        %1362 = vmatpush1.bf16.msra.mxu0 0
        %1363 = vmatprep.subr.bf16.mxu0 0
        %1364 = vmatpush1.bf16.msra.mxu0 0
        %1365 = vmatprep.subr.bf16.mxu0 0
        %1366 = vmatpush1.bf16.msra.mxu0 0
        %1367 = vmatprep.subr.bf16.mxu0 0
        %1368 = vmatpush1.bf16.msra.mxu0 0
        %1369 = vmatprep.subr.bf16.mxu0 0
        %1370 = vmatpush1.bf16.msra.mxu0 0
        %1371 = vmatprep.subr.bf16.mxu0 0
        %1372 = vmatpush1.bf16.msra.mxu0 0
        %1373 = vmatprep.subr.bf16.mxu0 0
        %1374 = vmatpush1.bf16.msra.mxu0 0
        %1375 = vmatprep.subr.bf16.mxu0 0
        %1376 = vmatpush1.bf16.msra.mxu0 0
        %1377 = vmatprep.subr.bf16.mxu0 0
        %1378 = vmatpush1.bf16.msra.mxu0 0
        %1379 = vmatprep.subr.bf16.mxu0 0
        %1380 = vmatpush1.bf16.msra.mxu0 0
        %1381 = vmatprep.subr.bf16.mxu0 0
        %1382 = vmatpush1.bf16.msra.mxu0 0
        %1383 = vmatprep.subr.bf16.mxu0 0
        %1384 = vmatpush1.bf16.msra.mxu0 0
        %1385 = vmatprep.subr.bf16.mxu0 0
        %1386 = vmatpush1.bf16.msra.mxu0 0
        %1387 = vmatprep.subr.bf16.mxu0 0
        %1388 = vmatpush1.bf16.msra.mxu0 0
        %1389 = vmatprep.subr.bf16.mxu0 0
        %1390 = vmatpush1.bf16.msra.mxu0 0
        %1391 = vmatprep.mubr.bf16.mxu0 0
        %1392 = vmatmul.mubr.bf16.gmra.mrb[0].mxu0 %v1354
        %v1393 = vpop.f32.mrb[0].mxu0
        %v1394 = vadd.f32 0.0, %v1393
        %v1395 = vpop.f32.mrb[0].mxu0
        %v1396 = vpop.f32.mrb[0].mxu0
        %v1397 = vpop.f32.mrb[0].mxu0
        %1398 = vdwg.mxu0
        %v1400 = vsel %vm1072, %v1304, 0
        %v1403 = vsel %vm1309, %v1068, 0
        %1405 = vmatprep.subr.bf16.mxu0 0
        %1406 = vmatpush1.bf16.msra.mxu0 %v1403
        %1407 = vmatprep.subr.bf16.mxu0 0
        %1408 = vmatpush1.bf16.msra.mxu0 0
        %1409 = vmatprep.subr.bf16.mxu0 0
        %1410 = vmatpush1.bf16.msra.mxu0 0
        %1411 = vmatprep.subr.bf16.mxu0 0
        %1412 = vmatpush1.bf16.msra.mxu0 0
        %1413 = vmatprep.subr.bf16.mxu0 0
        %1414 = vmatpush1.bf16.msra.mxu0 0
        %1415 = vmatprep.subr.bf16.mxu0 0
        %1416 = vmatpush1.bf16.msra.mxu0 0
        %1417 = vmatprep.subr.bf16.mxu0 0
        %1418 = vmatpush1.bf16.msra.mxu0 0
        %1419 = vmatprep.subr.bf16.mxu0 0
        %1420 = vmatpush1.bf16.msra.mxu0 0
        %1421 = vmatprep.subr.bf16.mxu0 0
        %1422 = vmatpush1.bf16.msra.mxu0 0
        %1423 = vmatprep.subr.bf16.mxu0 0
        %1424 = vmatpush1.bf16.msra.mxu0 0
        %1425 = vmatprep.subr.bf16.mxu0 0
        %1426 = vmatpush1.bf16.msra.mxu0 0
        %1427 = vmatprep.subr.bf16.mxu0 0
        %1428 = vmatpush1.bf16.msra.mxu0 0
        %1429 = vmatprep.subr.bf16.mxu0 0
        %1430 = vmatpush1.bf16.msra.mxu0 0
        %1431 = vmatprep.subr.bf16.mxu0 0
        %1432 = vmatpush1.bf16.msra.mxu0 0
        %1433 = vmatprep.subr.bf16.mxu0 0
        %1434 = vmatpush1.bf16.msra.mxu0 0
        %1435 = vmatprep.subr.bf16.mxu0 0
        %1436 = vmatpush1.bf16.msra.mxu0 0
        %1437 = vmatprep.mubr.bf16.mxu0 0
        %1438 = vmatmul.mubr.bf16.gmra.mrb[0].mxu0 %v1400
        %v1439 = vpop.f32.mrb[0].mxu0
        %v1440 = vadd.f32 0.0, %v1439
        %v1441 = vpop.f32.mrb[0].mxu0
        %v1442 = vpop.f32.mrb[0].mxu0
        %v1443 = vpop.f32.mrb[0].mxu0
        %1444 = vdwg.mxu0
        %v1446 = vsel %vm1072, %v1305, 0
        %v1449 = vsel %vm1309, %v1071, 0
        %1451 = vmatprep.subr.bf16.mxu0 0
        %1452 = vmatpush1.bf16.msra.mxu0 %v1449
        %1453 = vmatprep.subr.bf16.mxu0 0
        %1454 = vmatpush1.bf16.msra.mxu0 0
        %1455 = vmatprep.subr.bf16.mxu0 0
        %1456 = vmatpush1.bf16.msra.mxu0 0
        %1457 = vmatprep.subr.bf16.mxu0 0
        %1458 = vmatpush1.bf16.msra.mxu0 0
        %1459 = vmatprep.subr.bf16.mxu0 0
        %1460 = vmatpush1.bf16.msra.mxu0 0
        %1461 = vmatprep.subr.bf16.mxu0 0
        %1462 = vmatpush1.bf16.msra.mxu0 0
        %1463 = vmatprep.subr.bf16.mxu0 0
        %1464 = vmatpush1.bf16.msra.mxu0 0
        %1465 = vmatprep.subr.bf16.mxu0 0
        %1466 = vmatpush1.bf16.msra.mxu0 0
        %1467 = vmatprep.subr.bf16.mxu0 0
        %1468 = vmatpush1.bf16.msra.mxu0 0
        %1469 = vmatprep.subr.bf16.mxu0 0
        %1470 = vmatpush1.bf16.msra.mxu0 0
        %1471 = vmatprep.subr.bf16.mxu0 0
        %1472 = vmatpush1.bf16.msra.mxu0 0
        %1473 = vmatprep.subr.bf16.mxu0 0
        %1474 = vmatpush1.bf16.msra.mxu0 0
        %1475 = vmatprep.subr.bf16.mxu0 0
        %1476 = vmatpush1.bf16.msra.mxu0 0
        %1477 = vmatprep.subr.bf16.mxu0 0
        %1478 = vmatpush1.bf16.msra.mxu0 0
        %1479 = vmatprep.subr.bf16.mxu0 0
        %1480 = vmatpush1.bf16.msra.mxu0 0
        %1481 = vmatprep.subr.bf16.mxu0 0
        %1482 = vmatpush1.bf16.msra.mxu0 0
        %1483 = vmatprep.mubr.bf16.mxu0 0
        %1484 = vmatmul.mubr.bf16.gmra.mrb[0].mxu0 %v1446
        %v1485 = vpop.f32.mrb[0].mxu0
        %v1486 = vadd.f32 0.0, %v1485
        %v1487 = vpop.f32.mrb[0].mxu0
        %v1488 = vpop.f32.mrb[0].mxu0
        %v1489 = vpop.f32.mrb[0].mxu0
        %1490 = vdwg.mxu0
        %v1491 = vrcp.pop %v1292
        %v1492 = vrcp.pop %v1295
        %v1493 = vrcp.pop %v1298
        %v1494 = vrcp.pop %v1301
        %v1495 = vmul.f32 %v1348, %v1491
        %v1496 = vmul.f32 %v1394, %v1492
        %v1497 = vmul.f32 %v1440, %v1493
        %v1498 = vmul.f32 %v1486, %v1494
        %v1499 = vcombine.low %v1495, %v1497
        %v1500 = vcombine.high %v1495, %v1497
        %v1502 = vunpack.c.l.s4 1983009808
        %v1503 = vunpack.c.0.s8 %v1502
        %v1504 = vlaneseq
        %v1505 = vshrl.u32 %v1504, 7
        %v1506 = vsub.s32 %v1503, %v1505
        %v1507 = vrot.slane %v1499, %v1506
        %v1509 = vunpack.c.l.s4 1983009808
        %v1510 = vunpack.c.0.s8 %v1509
        %v1511 = vlaneseq
        %v1512 = vshrl.u32 %v1511, 7
        %v1513 = vsub.s32 %v1510, %v1512
        %v1514 = vrot.slane %v1500, %v1513
        %v1515 = vcombine.low %v1496, %v1498
        %v1516 = vcombine.high %v1496, %v1498
        %v1518 = vunpack.c.l.s4 1983009808
        %v1519 = vunpack.c.0.s8 %v1518
        %v1520 = vlaneseq
        %v1521 = vshrl.u32 %v1520, 7
        %v1522 = vsub.s32 %v1519, %v1521
        %v1523 = vrot.slane %v1515, %v1522
        %v1525 = vunpack.c.l.s4 1983009808
        %v1526 = vunpack.c.0.s8 %v1525
        %v1527 = vlaneseq
        %v1528 = vshrl.u32 %v1527, 7
        %v1529 = vsub.s32 %v1526, %v1528
        %v1530 = vrot.slane %v1516, %v1529
        %v1531 = vcombine.low %v1507, %v1523
        %v1532 = vcombine.high %v1507, %v1523
        %v1534 = vunpack.c.l.s4 1934713408
        %v1535 = vunpack.c.0.s8 %v1534
        %v1536 = vlaneseq
        %v1537 = vshrl.u32 %v1536, 7
        %v1538 = vsub.s32 %v1535, %v1537
        %v1539 = vrot.slane %v1531, %v1538
        %v1541 = vunpack.c.l.s4 1934713408
        %v1542 = vunpack.c.0.s8 %v1541
        %v1543 = vlaneseq
        %v1544 = vshrl.u32 %v1543, 7
        %v1545 = vsub.s32 %v1542, %v1544
        %v1546 = vrot.slane %v1532, %v1545
        %v1547 = vcombine.low %v1514, %v1530
        %v1548 = vcombine.high %v1514, %v1530
        %v1550 = vunpack.c.l.s4 1934713408
        %v1551 = vunpack.c.0.s8 %v1550
        %v1552 = vlaneseq
        %v1553 = vshrl.u32 %v1552, 7
        %v1554 = vsub.s32 %v1551, %v1553
        %v1555 = vrot.slane %v1547, %v1554
        %v1557 = vunpack.c.l.s4 1934713408
        %v1558 = vunpack.c.0.s8 %v1557
        %v1559 = vlaneseq
        %v1560 = vshrl.u32 %v1559, 7
        %v1561 = vsub.s32 %v1558, %v1560
        %v1562 = vrot.slane %v1548, %v1561
        %v1563 = vcombine.high %v1539, 0.0
        %v1564 = vcombine.high %v1546, 0.0
        %v1565 = vcombine.high %v1555, 0.0
        %v1566 = vcombine.high %v1562, 0.0
        %v1567 = vcombine.low %v1539, %v1546
        %v1569 = vunpack.c.l.s4 1983009808
        %v1570 = vunpack.c.0.s8 %v1569
        %v1571 = vlaneseq
        %v1572 = vshrl.u32 %v1571, 7
        %v1573 = vsub.s32 %v1570, %v1572
        %v1574 = vrot.slane %v1567, %v1573
        %v1575 = vcombine.low %v1563, %v1564
        %v1577 = vunpack.c.l.s4 1983009808
        %v1578 = vunpack.c.0.s8 %v1577
        %v1579 = vlaneseq
        %v1580 = vshrl.u32 %v1579, 7
        %v1581 = vsub.s32 %v1578, %v1580
        %v1582 = vrot.slane %v1575, %v1581
        %v1583 = vcombine.low %v1555, %v1562
        %v1585 = vunpack.c.l.s4 1983009808
        %v1586 = vunpack.c.0.s8 %v1585
        %v1587 = vlaneseq
        %v1588 = vshrl.u32 %v1587, 7
        %v1589 = vsub.s32 %v1586, %v1588
        %v1590 = vrot.slane %v1583, %v1589
        %v1591 = vcombine.low %v1565, %v1566
        %v1593 = vunpack.c.l.s4 1983009808
        %v1594 = vunpack.c.0.s8 %v1593
        %v1595 = vlaneseq
        %v1596 = vshrl.u32 %v1595, 7
        %v1597 = vsub.s32 %v1594, %v1596
        %v1598 = vrot.slane %v1591, %v1597
        %v1599 = vcombine.low %v1574, %v1582
        %v1600 = vcombine.high %v1574, %v1582
        %v1602 = vunpack.c.l.s4 1934713408
        %v1603 = vunpack.c.0.s8 %v1602
        %v1604 = vlaneseq
        %v1605 = vshrl.u32 %v1604, 7
        %v1606 = vsub.s32 %v1603, %v1605
        %v1607 = vrot.slane %v1599, %v1606
        %v1609 = vunpack.c.l.s4 1934713408
        %v1610 = vunpack.c.0.s8 %v1609
        %v1611 = vlaneseq
        %v1612 = vshrl.u32 %v1611, 7
        %v1613 = vsub.s32 %v1610, %v1612
        %v1614 = vrot.slane %v1600, %v1613
        %v1615 = vcombine.low %v1590, %v1598
        %v1616 = vcombine.high %v1590, %v1598
        %v1618 = vunpack.c.l.s4 1934713408
        %v1619 = vunpack.c.0.s8 %v1618
        %v1620 = vlaneseq
        %v1621 = vshrl.u32 %v1620, 7
        %v1622 = vsub.s32 %v1619, %v1621
        %v1623 = vrot.slane %v1615, %v1622
        %v1625 = vunpack.c.l.s4 1934713408
        %v1626 = vunpack.c.0.s8 %v1625
        %v1627 = vlaneseq
        %v1628 = vshrl.u32 %v1627, 7
        %v1629 = vsub.s32 %v1626, %v1628
        %v1630 = vrot.slane %v1616, %v1629
        %v1631 = vcombine.low %v1607, %v1623
        %v1632 = vcombine.high %v1607, %v1623
        %v1633 = vcombine.low %v1614, %v1630
        %v1634 = vcombine.high %v1614, %v1630
        %1636 = vrot.lane.b32.xlu0 %v1632, 8
        %v1637 = vpop.permute.xlu0 %1636
        %1640 = vrot.lane.b32.xlu0 %v1633, 16
        %v1641 = vpop.permute.xlu0 %1640
        %1644 = vrot.lane.b32.xlu0 %v1634, 24
        %v1645 = vpop.permute.xlu0 %1644
        %v1647 = vsel %vm1072, %v1631, %v1637
        %vm1648 = vcmask 130048
        %v1649 = vsel %vm1648, %v1647, %v1641
        %vm1650 = vcmask 195584
        %v1651 = vsel %vm1650, %v1649, %v1645
        %v1652 = vpack.c.bf16 %v1651, %v1651
        %v1653 = vld [vmem:[%s6] sm:$0xf]
        %v1654 = vld [vmem:[%s6 + $0x4] sm:$0xf]
        %v1655 = vld [vmem:[%s6 + $0x8] sm:$0xf]
        %v1656 = vld [vmem:[%s6 + $0xc] sm:$0xf]
        %v1657 = vld [vmem:[%s7] sm:$0x1]
        %v1659 = vlaneseq
        %v1660 = vshrl.u32 %v1659, 7
        %v1661 = vsub.s32 0, %v1660
        %v1662 = vrot.slane %v1657, %v1661
        %v1668 = vunpack.c.l.b16 %v1653
        %v1669 = vunpack.c.l.b16 %v1654
        %v1670 = vunpack.c.l.b16 %v1655
        %v1671 = vunpack.c.l.b16 %v1656
        %v1672 = vpack.c.b16 %v1669, %v1668
        %v1673 = vpack.c.b16 %v1671, %v1670
        %v1677 = vsel %vm467, %v1652, 0
        %1679 = vmatprep.subr.bf16.mxu0 0
        %1680 = vmatpush1.bf16.msra.mxu0 %v1672
        %1681 = vmatprep.subr.bf16.mxu0 0
        %1682 = vmatpush1.bf16.msra.mxu0 %v1673
        %1683 = vmatprep.subr.bf16.mxu0 0
        %1684 = vmatpush1.bf16.msra.mxu0 0
        %1685 = vmatprep.subr.bf16.mxu0 0
        %1686 = vmatpush1.bf16.msra.mxu0 0
        %1687 = vmatprep.subr.bf16.mxu0 0
        %1688 = vmatpush1.bf16.msra.mxu0 0
        %1689 = vmatprep.subr.bf16.mxu0 0
        %1690 = vmatpush1.bf16.msra.mxu0 0
        %1691 = vmatprep.subr.bf16.mxu0 0
        %1692 = vmatpush1.bf16.msra.mxu0 0
        %1693 = vmatprep.subr.bf16.mxu0 0
        %1694 = vmatpush1.bf16.msra.mxu0 0
        %1695 = vmatprep.subr.bf16.mxu0 0
        %1696 = vmatpush1.bf16.msra.mxu0 0
        %1697 = vmatprep.subr.bf16.mxu0 0
        %1698 = vmatpush1.bf16.msra.mxu0 0
        %1699 = vmatprep.subr.bf16.mxu0 0
        %1700 = vmatpush1.bf16.msra.mxu0 0
        %1701 = vmatprep.subr.bf16.mxu0 0
        %1702 = vmatpush1.bf16.msra.mxu0 0
        %1703 = vmatprep.subr.bf16.mxu0 0
        %1704 = vmatpush1.bf16.msra.mxu0 0
        %1705 = vmatprep.subr.bf16.mxu0 0
        %1706 = vmatpush1.bf16.msra.mxu0 0
        %1707 = vmatprep.subr.bf16.mxu0 0
        %1708 = vmatpush1.bf16.msra.mxu0 0
        %1709 = vmatprep.subr.bf16.mxu0 0
        %1710 = vmatpush1.bf16.msra.mxu0 0
        %1711 = vmatprep.mubr.bf16.mxu0 0
        %1712 = vmatmul.mubr.bf16.gmra.mrb[0].mxu0 %v1677
        %v1713 = vpop.f32.mrb[0].mxu0
        %v1714 = vadd.f32 %v1662, %v1713
        %v1715 = vpop.f32.mrb[0].mxu0
        %v1716 = vpop.f32.mrb[0].mxu0
        %v1717 = vpop.f32.mrb[0].mxu0
        %1718 = vdwg.mxu0
        %v1719 = vadd.f32 %v464, %v1714
        %v1720 = vld [vmem:[%s8] sm:$0x1]
        %v1721 = vld [vmem:[%s9] sm:$0x1]
        %v1722 = vsel %vm467, %v1719, 0.0
        %1723 = vadd.xlane.f32.xlu0 %v1722
        %v1724 = vpop.xlane.xlu0 %1723
        %v1725 = vmul.f32 %v1724, %v471
        %v1726 = vsub.f32 %v1719, %v1725
        %v1727 = vmul.f32 %v1726, %v1726
        %v1728 = vsel %vm467, %v1727, 0.0
        %1729 = vadd.xlane.f32.xlu0 %v1728
        %v1730 = vpop.xlane.xlu0 %1729
        %v1731 = vmul.f32 %v1730, %v471
        %v1732 = vadd.f32 %v1731, 1e-05
        %v1733 = vrsqrt.pop %v1732
        %v1734 = vmul.f32 %v1726, %v1733
        %v1736 = vlaneseq
        %v1737 = vshrl.u32 %v1736, 7
        %v1738 = vsub.s32 0, %v1737
        %v1739 = vrot.slane %v1720, %v1738
        %v1741 = vmul.f32 %v1734, %v1739
        %v1743 = vlaneseq
        %v1744 = vshrl.u32 %v1743, 7
        %v1745 = vsub.s32 0, %v1744
        %v1746 = vrot.slane %v1721, %v1745
        %v1748 = vadd.f32 %v1741, %v1746
        %v1749 = vpack.c.bf16 %v1748, %v1748
        %v1750 = vld [vmem:[%s10] sm:$0xf]
        %v1751 = vld [vmem:[%s10 + $0x4] sm:$0xf]
        %v1752 = vld [vmem:[%s10 + $0x8] sm:$0xf]
        %v1753 = vld [vmem:[%s10 + $0xc] sm:$0xf]
        %v1754 = vld [vmem:[%s11] sm:$0x1]
        %v1756 = vlaneseq
        %v1757 = vshrl.u32 %v1756, 7
        %v1758 = vsub.s32 0, %v1757
        %v1759 = vrot.slane %v1754, %v1758
        %v1765 = vunpack.c.l.b16 %v1750
        %v1766 = vunpack.c.l.b16 %v1751
        %v1767 = vunpack.c.l.b16 %v1752
        %v1768 = vunpack.c.l.b16 %v1753
        %v1769 = vpack.c.b16 %v1766, %v1765
        %v1770 = vpack.c.b16 %v1768, %v1767
        %v1774 = vsel %vm467, %v1749, 0
        %1776 = vmatprep.subr.bf16.mxu0 0
        %1777 = vmatpush1.bf16.msra.mxu0 %v1769
        %1778 = vmatprep.subr.bf16.mxu0 0
        %1779 = vmatpush1.bf16.msra.mxu0 %v1770
        %1780 = vmatprep.subr.bf16.mxu0 0
        %1781 = vmatpush1.bf16.msra.mxu0 0
        %1782 = vmatprep.subr.bf16.mxu0 0
        %1783 = vmatpush1.bf16.msra.mxu0 0
        %1784 = vmatprep.subr.bf16.mxu0 0
        %1785 = vmatpush1.bf16.msra.mxu0 0
        %1786 = vmatprep.subr.bf16.mxu0 0
        %1787 = vmatpush1.bf16.msra.mxu0 0
        %1788 = vmatprep.subr.bf16.mxu0 0
        %1789 = vmatpush1.bf16.msra.mxu0 0
        %1790 = vmatprep.subr.bf16.mxu0 0
        %1791 = vmatpush1.bf16.msra.mxu0 0
        %1792 = vmatprep.subr.bf16.mxu0 0
        %1793 = vmatpush1.bf16.msra.mxu0 0
        %1794 = vmatprep.subr.bf16.mxu0 0
        %1795 = vmatpush1.bf16.msra.mxu0 0
        %1796 = vmatprep.subr.bf16.mxu0 0
        %1797 = vmatpush1.bf16.msra.mxu0 0
        %1798 = vmatprep.subr.bf16.mxu0 0
        %1799 = vmatpush1.bf16.msra.mxu0 0
        %1800 = vmatprep.subr.bf16.mxu0 0
        %1801 = vmatpush1.bf16.msra.mxu0 0
        %1802 = vmatprep.subr.bf16.mxu0 0
        %1803 = vmatpush1.bf16.msra.mxu0 0
        %1804 = vmatprep.subr.bf16.mxu0 0
        %1805 = vmatpush1.bf16.msra.mxu0 0
        %1806 = vmatprep.subr.bf16.mxu0 0
        %1807 = vmatpush1.bf16.msra.mxu0 0
        %1808 = vmatprep.mubr.bf16.mxu0 0
        %1809 = vmatmul.mubr.bf16.gmra.mrb[0].mxu0 %v1774
        %v1810 = vpop.f32.mrb[0].mxu0
        %v1811 = vadd.f32 %v1759, %v1810
        %v1812 = vpop.f32.mrb[0].mxu0
        %v1813 = vpop.f32.mrb[0].mxu0
        %v1814 = vpop.f32.mrb[0].mxu0
        %1815 = vdwg.mxu0
        %v1816 = vmul.f32 %v1811, 0.5
        %v1817 = vmul.f32 %v1811, %v1811
        %v1818 = vmul.f32 %v1811, %v1817
        %v1819 = vmul.f32 %v1818, 0.044715
        %v1820 = vadd.f32 %v1811, %v1819
        %v1821 = vmul.f32 %v1820, 0.7978846
        %v1822 = vtanh.pop %v1821
        %v1823 = vadd.f32 %v1822, 1.0
        %v1824 = vmul.f32 %v1816, %v1823
        %v1825 = vpack.c.bf16 %v1824, %v1824
        %v1826 = vld [vmem:[%s12] sm:$0xf]
        %v1827 = vld [vmem:[%s12 + $0x4] sm:$0xf]
        %v1828 = vld [vmem:[%s12 + $0x8] sm:$0xf]
        %v1829 = vld [vmem:[%s12 + $0xc] sm:$0xf]
        %v1830 = vld [vmem:[%s12 + $0x10] sm:$0xf]
        %v1831 = vld [vmem:[%s12 + $0x14] sm:$0xf]
        %v1832 = vld [vmem:[%s12 + $0x18] sm:$0xf]
        %v1833 = vld [vmem:[%s12 + $0x1c] sm:$0xf]
        %v1834 = vld [vmem:[%s12 + $0x20] sm:$0xf]
        %v1835 = vld [vmem:[%s12 + $0x24] sm:$0xf]
        %v1836 = vld [vmem:[%s12 + $0x28] sm:$0xf]
        %v1837 = vld [vmem:[%s12 + $0x2c] sm:$0xf]
        %v1838 = vld [vmem:[%s12 + $0x30] sm:$0xf]
        %v1839 = vld [vmem:[%s12 + $0x34] sm:$0xf]
        %v1840 = vld [vmem:[%s12 + $0x38] sm:$0xf]
        %v1841 = vld [vmem:[%s12 + $0x3c] sm:$0xf]
        %v1842 = vld [vmem:[%s13] sm:$0x1]
        %v1844 = vlaneseq
        %v1845 = vshrl.u32 %v1844, 7
        %v1846 = vsub.s32 0, %v1845
        %v1847 = vrot.slane %v1842, %v1846
        %v1865 = vunpack.c.l.b16 %v1826
        %v1866 = vunpack.c.l.b16 %v1827
        %v1867 = vunpack.c.l.b16 %v1828
        %v1868 = vunpack.c.l.b16 %v1829
        %v1869 = vunpack.c.l.b16 %v1830
        %v1870 = vunpack.c.l.b16 %v1831
        %v1871 = vunpack.c.l.b16 %v1832
        %v1872 = vunpack.c.l.b16 %v1833
        %v1873 = vunpack.c.l.b16 %v1834
        %v1874 = vunpack.c.l.b16 %v1835
        %v1875 = vunpack.c.l.b16 %v1836
        %v1876 = vunpack.c.l.b16 %v1837
        %v1877 = vunpack.c.l.b16 %v1838
        %v1878 = vunpack.c.l.b16 %v1839
        %v1879 = vunpack.c.l.b16 %v1840
        %v1880 = vunpack.c.l.b16 %v1841
        %v1881 = vpack.c.b16 %v1866, %v1865
        %v1882 = vpack.c.b16 %v1868, %v1867
        %v1883 = vpack.c.b16 %v1870, %v1869
        %v1884 = vpack.c.b16 %v1872, %v1871
        %v1885 = vpack.c.b16 %v1874, %v1873
        %v1886 = vpack.c.b16 %v1876, %v1875
        %v1887 = vpack.c.b16 %v1878, %v1877
        %v1888 = vpack.c.b16 %v1880, %v1879
        %1897 = vmatprep.subr.bf16.mxu0 0
        %1898 = vmatpush1.bf16.msra.mxu0 %v1881
        %1899 = vmatprep.subr.bf16.mxu0 0
        %1900 = vmatpush1.bf16.msra.mxu0 %v1882
        %1901 = vmatprep.subr.bf16.mxu0 0
        %1902 = vmatpush1.bf16.msra.mxu0 %v1883
        %1903 = vmatprep.subr.bf16.mxu0 0
        %1904 = vmatpush1.bf16.msra.mxu0 %v1884
        %1905 = vmatprep.subr.bf16.mxu0 0
        %1906 = vmatpush1.bf16.msra.mxu0 %v1885
        %1907 = vmatprep.subr.bf16.mxu0 0
        %1908 = vmatpush1.bf16.msra.mxu0 %v1886
        %1909 = vmatprep.subr.bf16.mxu0 0
        %1910 = vmatpush1.bf16.msra.mxu0 %v1887
        %1911 = vmatprep.subr.bf16.mxu0 0
        %1912 = vmatpush1.bf16.msra.mxu0 %v1888
        %1913 = vmatprep.subr.bf16.mxu0 0
        %1914 = vmatpush1.bf16.msra.mxu0 0
        %1915 = vmatprep.subr.bf16.mxu0 0
        %1916 = vmatpush1.bf16.msra.mxu0 0
        %1917 = vmatprep.subr.bf16.mxu0 0
        %1918 = vmatpush1.bf16.msra.mxu0 0
        %1919 = vmatprep.subr.bf16.mxu0 0
        %1920 = vmatpush1.bf16.msra.mxu0 0
        %1921 = vmatprep.subr.bf16.mxu0 0
        %1922 = vmatpush1.bf16.msra.mxu0 0
        %1923 = vmatprep.subr.bf16.mxu0 0
        %1924 = vmatpush1.bf16.msra.mxu0 0
        %1925 = vmatprep.subr.bf16.mxu0 0
        %1926 = vmatpush1.bf16.msra.mxu0 0
        %1927 = vmatprep.subr.bf16.mxu0 0
        %1928 = vmatpush1.bf16.msra.mxu0 0
        %1929 = vmatprep.mubr.bf16.mxu0 0
        %1930 = vmatmul.mubr.bf16.gmra.mrb[0].mxu0 %v1825
        %v1931 = vpop.f32.mrb[0].mxu0
        %v1932 = vadd.f32 %v1847, %v1931
        %v1933 = vpop.f32.mrb[0].mxu0
        %v1934 = vpop.f32.mrb[0].mxu0
        %v1935 = vpop.f32.mrb[0].mxu0
        %1936 = vdwg.mxu0
        %v1937 = vadd.f32 %v1719, %v1932
        %1938 = vst.msk [vmem:[%s458] sm:$0xff] %vm467, %v1937
        %s1939 = sand.u32 %s335, 1
        %s1940 = scalar_lea.sflag [#allocation3], %s1939
        %s1941 = sand.u32 %s335, 1
        %s1942 = smul.addr %s1941, 8
        %s1943 = scalar_lea.vmem [#allocation2], %s1942
        // Predicated region
        $region77: #{tpu_custom_call.1} parent=75 // pred_check
          %p1944 = pneg %p345
        $region78: #{tpu_custom_call.1} parent=75 // pred_check_branch
          %1946 = sbr.rel (%p1944) target = $region80
        $region79: #{tpu_custom_call.1} parent=75 // pred_region
          %s1948 = ssub.s32 128, 128
          %1949 = vsyncadd %s1940, %s1948
          %s1950 = smul.addr %s28, 128
          %s1951 = scalar_lea.hbm %s14, %s1950
          %s1953 = sshll.u32 %s1943, 4
          %s1954 = int_to_ptr.vmem [resolvable:$true] %s1953
          %1956 = dma.vmem_to_hbm [thread:$0]  %s1954, 128, %s1951, %s1940
        $region80: #{tpu_custom_call.1} parent=75 // pred_fallthru
          _
      $region76: #{tpu_custom_call.1} parent=5 // pred_fallthru
        _
      %p1957 = scmp.le.s32.totalorder 2, %s23
      // Predicated region
      $region81: #{tpu_custom_call.1} parent=5 // pred_check
        %p1958 = pneg %p1957
      $region82: #{tpu_custom_call.1} parent=5 // pred_check_branch
        %1960 = sbr.rel (%p1958) target = $region84
      $region83: #{tpu_custom_call.1} parent=5 // pred_region
        %s1961 = ssub.s32 %s23, 2
        // Predicated region
        $region85: #{tpu_custom_call.1} parent=83 // pred_check
          %p1962 = pneg %p351
        $region86: #{tpu_custom_call.1} parent=83 // pred_check_branch
          %1964 = sbr.rel (%p1962) target = $region88
        $region87: #{tpu_custom_call.1} parent=83 // pred_region
          %s1965 = sand.u32 %s336, 1
          %s1966 = scalar_lea.sflag [#allocation3], %s1965
          %s1967 = sand.u32 %s336, 1
          %s1968 = smul.addr %s1967, 8
          %s1969 = scalar_lea.vmem [#allocation2], %s1968
          %1970 = dma.done %s1966, 128
        $region88: #{tpu_custom_call.1} parent=83 // pred_fallthru
          _
      $region84: #{tpu_custom_call.1} parent=5 // pred_fallthru
        _
    $region6: #{tpu_custom_call.1} parent=1 // loop_footer
      %s27 = sadd.s32 1, %s23
    $region7: #{tpu_custom_call.1} parent=1 // loop_footer_branch
      %22 = sbr.rel target = $region3
    $region8: #{tpu_custom_call.1} parent=1 // loop_exit
      _
    %1971 = vsyncpa [#allocation3], 1
    %s1972 = scalar_lea.sflag [#allocation3], 1
    %1973 = vsyncpa %s1972, 1

// kernel: tpu_custom_call.1
$region0: #{tpu_custom_call.1}
  #allocation0 [shape = 'u32[]', space=smem, size = 0x4, offset = 0x4, fixed_abs, tag = 'smem constant byte address 0x4 - core index']
  #allocation1 [shape = 'u32[144,128]{1,0:T(1,128)}', space=vmem, size = 0x12000, scoped, tag = 'internal scratch']
  %s0 = inlined_call_operand.vmem [shape: f32[2,8,32], index: 0, kind: input, shape index: {}]
  %s1 = inlined_call_operand.vmem [shape: f32[8,8], index: 1, kind: input, shape index: {}]
  %s2 = inlined_call_operand.vmem [shape: f32[1,32], index: 2, kind: input, shape index: {}]
  %s3 = inlined_call_operand.vmem [shape: f32[1,32], index: 3, kind: input, shape index: {}]
  %s4 = inlined_call_operand.vmem [shape: bf16[32,96], index: 4, kind: input, shape index: {}]
  %s5 = inlined_call_operand.vmem [shape: f32[1,96], index: 5, kind: input, shape index: {}]
  %s6 = inlined_call_operand.vmem [shape: bf16[32,32], index: 6, kind: input, shape index: {}]
  %s7 = inlined_call_operand.vmem [shape: f32[1,32], index: 7, kind: input, shape index: {}]
  %s8 = inlined_call_operand.vmem [shape: f32[1,32], index: 8, kind: input, shape index: {}]
  %s9 = inlined_call_operand.vmem [shape: f32[1,32], index: 9, kind: input, shape index: {}]
  %s10 = inlined_call_operand.vmem [shape: bf16[32,128], index: 10, kind: input, shape index: {}]
  %s11 = inlined_call_operand.vmem [shape: f32[1,128], index: 11, kind: input, shape index: {}]
  %s12 = inlined_call_operand.vmem [shape: bf16[128,32], index: 12, kind: input, shape index: {}]
  %s13 = inlined_call_operand.vmem [shape: f32[1,32], index: 13, kind: input, shape index: {}]
  %s14 = inlined_call_operand.hbm [shape: f32[2,8,32], index: 14, kind: output, shape index: {}]
  %s15 = sld [smem:[#allocation0]]
  $region89: #{tpu_custom_call.1} parent=0
    _
  %s17 = ssub.s32 1, %s15
  %s18 = scalar_select 0, %s17, %s15
  $region1: #{tpu_custom_call.1} parent=0
    #allocation2 [shape = 'u8[8192]{0}', space=vmem, size = 0x2000, scoped, tag = 'output window, operand 0']
    #allocation3 [shape = 's32[2]{0}', space=sflag, size = 0x8, scoped, tag = 'scoped memory for tpu_custom_call.1']
    %19 = vsyncpa [#allocation3], 0
    %s20 = scalar_lea.sflag [#allocation3], 1
    %21 = vsyncpa %s20, 0
    loop: start=0, step=1, limit=4
    $region2: #{tpu_custom_call.1} parent=1 // loop_pre_header
      _
    $region3: #{tpu_custom_call.1} parent=1 // loop_header
      %s23 = sphi 0, %s27
      %p24 = scmp.ge.s32.totalorder %s23, 4
      %s33 = sphi 0, %s35
      %s36 = sphi 0, %s33
      %s37 = sphi 0, %s36
      %s53 = sphi 0, %s37
      %s57 = sphi 0, %s57
      %s59 = sphi 0, %s57
      %s60 = sphi 0, %s59
      %s74 = sphi 0, %s60
      %s78 = sphi 0, %s78
      %s80 = sphi 0, %s78
      %s81 = sphi 0, %s80
      %s95 = sphi 0, %s81
      %s99 = sphi 0, %s99
      %s101 = sphi 0, %s99
      %s102 = sphi 0, %s101
      %s116 = sphi 0, %s102
      %s120 = sphi 0, %s120
      %s122 = sphi 0, %s120
      %s123 = sphi 0, %s122
      %s137 = sphi 0, %s123
      %s141 = sphi 0, %s141
      %s143 = sphi 0, %s141
      %s144 = sphi 0, %s143
      %s158 = sphi 0, %s144
      %s162 = sphi 0, %s162
      %s164 = sphi 0, %s162
      %s165 = sphi 0, %s164
      %s179 = sphi 0, %s165
      %s183 = sphi 0, %s183
      %s185 = sphi 0, %s183
      %s186 = sphi 0, %s185
      %s200 = sphi 0, %s186
      %s204 = sphi 0, %s204
      %s206 = sphi 0, %s204
      %s207 = sphi 0, %s206
      %s221 = sphi 0, %s207
      %s225 = sphi 0, %s225
      %s227 = sphi 0, %s225
      %s228 = sphi 0, %s227
      %s242 = sphi 0, %s228
      %s246 = sphi 0, %s246
      %s248 = sphi 0, %s246
      %s249 = sphi 0, %s248
      %s263 = sphi 0, %s249
      %s267 = sphi 0, %s267
      %s269 = sphi 0, %s267
      %s270 = sphi 0, %s269
      %s284 = sphi 0, %s270
      %s288 = sphi 0, %s288
      %s290 = sphi 0, %s288
      %s291 = sphi 0, %s290
      %s305 = sphi 0, %s291
      %s309 = sphi 0, %s309
      %s311 = sphi 0, %s309
      %s312 = sphi 0, %s311
      %s326 = sphi 0, %s312
      %s332 = sphi 0, %s334
      %s335 = sphi 0, %s332
      %s336 = sphi 0, %s335
      %s352 = sphi 0, %s336
    $region4: #{tpu_custom_call.1} parent=1 // loop_header_branch
      %26 = sbr.rel (%p24) target = $region8
    $region5: #{tpu_custom_call.1} parent=1 // loop_body
      %s28 = ssub.s32 %s23, 1
      %s29 = ssub.s32 %s23, 2
      %s30 = sadd.s32 %s23, 1
      %s31 = ssub.s32 %s23, %s30
      %p32 = scmp.eq.s32.totalorder %s31, 0
      %s34 = sadd.s32 %s33, 1
      %s35 = scalar_select %p32, %s33, %s34
      %p38 = pneg %p32
      %p39 = scmp.eq.s32.totalorder %s23, 1
      %p40 = por %p38, %p39
      %p41 = scmp.ne.s32.totalorder %s33, %s36
      %p42 = scmp.eq.s32.totalorder %s23, 0
      %p43 = por %p41, %p42
      %p44 = scmp.ne.s32.totalorder %s33, %s36
      %p45 = scmp.eq.s32.totalorder %s28, 1
      %p46 = por %p44, %p45
      %p47 = scmp.ne.s32.totalorder %s36, %s37
      %p48 = scmp.eq.s32.totalorder %s28, 0
      %p49 = por %p47, %p48
      %p50 = scmp.ne.s32.totalorder %s36, %s37
      %p51 = scmp.eq.s32.totalorder %s29, 1
      %p52 = por %p50, %p51
      %p54 = scmp.ne.s32.totalorder %s37, %s53
      %p55 = scmp.eq.s32.totalorder %s29, 0
      %p56 = por %p54, %p55
      %s58 = sadd.s32 %s57, 1
      %p61 = scmp.eq.s32.totalorder %s23, 1
      %p62 = scmp.ne.s32.totalorder %s57, %s59
      %p63 = scmp.eq.s32.totalorder %s23, 0
      %p64 = por %p62, %p63
      %p65 = scmp.ne.s32.totalorder %s57, %s59
      %p66 = scmp.eq.s32.totalorder %s28, 1
      %p67 = por %p65, %p66
      %p68 = scmp.ne.s32.totalorder %s59, %s60
      %p69 = scmp.eq.s32.totalorder %s28, 0
      %p70 = por %p68, %p69
      %p71 = scmp.ne.s32.totalorder %s59, %s60
      %p72 = scmp.eq.s32.totalorder %s29, 1
      %p73 = por %p71, %p72
      %p75 = scmp.ne.s32.totalorder %s60, %s74
      %p76 = scmp.eq.s32.totalorder %s29, 0
      %p77 = por %p75, %p76
      %s79 = sadd.s32 %s78, 1
      %p82 = scmp.eq.s32.totalorder %s23, 1
      %p83 = scmp.ne.s32.totalorder %s78, %s80
      %p84 = scmp.eq.s32.totalorder %s23, 0
      %p85 = por %p83, %p84
      %p86 = scmp.ne.s32.totalorder %s78, %s80
      %p87 = scmp.eq.s32.totalorder %s28, 1
      %p88 = por %p86, %p87
      %p89 = scmp.ne.s32.totalorder %s80, %s81
      %p90 = scmp.eq.s32.totalorder %s28, 0
      %p91 = por %p89, %p90
      %p92 = scmp.ne.s32.totalorder %s80, %s81
      %p93 = scmp.eq.s32.totalorder %s29, 1
      %p94 = por %p92, %p93
      %p96 = scmp.ne.s32.totalorder %s81, %s95
      %p97 = scmp.eq.s32.totalorder %s29, 0
      %p98 = por %p96, %p97
      %s100 = sadd.s32 %s99, 1
      %p103 = scmp.eq.s32.totalorder %s23, 1
      %p104 = scmp.ne.s32.totalorder %s99, %s101
      %p105 = scmp.eq.s32.totalorder %s23, 0
      %p106 = por %p104, %p105
      %p107 = scmp.ne.s32.totalorder %s99, %s101
      %p108 = scmp.eq.s32.totalorder %s28, 1
      %p109 = por %p107, %p108
      %p110 = scmp.ne.s32.totalorder %s101, %s102
      %p111 = scmp.eq.s32.totalorder %s28, 0
      %p112 = por %p110, %p111
      %p113 = scmp.ne.s32.totalorder %s101, %s102
      %p114 = scmp.eq.s32.totalorder %s29, 1
      %p115 = por %p113, %p114
      %p117 = scmp.ne.s32.totalorder %s102, %s116
      %p118 = scmp.eq.s32.totalorder %s29, 0
      %p119 = por %p117, %p118
      %s121 = sadd.s32 %s120, 1
      %p124 = scmp.eq.s32.totalorder %s23, 1
      %p125 = scmp.ne.s32.totalorder %s120, %s122
      %p126 = scmp.eq.s32.totalorder %s23, 0
      %p127 = por %p125, %p126
      %p128 = scmp.ne.s32.totalorder %s120, %s122
      %p129 = scmp.eq.s32.totalorder %s28, 1
      %p130 = por %p128, %p129
      %p131 = scmp.ne.s32.totalorder %s122, %s123
      %p132 = scmp.eq.s32.totalorder %s28, 0
      %p133 = por %p131, %p132
      %p134 = scmp.ne.s32.totalorder %s122, %s123
      %p135 = scmp.eq.s32.totalorder %s29, 1
      %p136 = por %p134, %p135
      %p138 = scmp.ne.s32.totalorder %s123, %s137
      %p139 = scmp.eq.s32.totalorder %s29, 0
      %p140 = por %p138, %p139
      %s142 = sadd.s32 %s141, 1
      %p145 = scmp.eq.s32.totalorder %s23, 1
      %p146 = scmp.ne.s32.totalorder %s141, %s143
      %p147 = scmp.eq.s32.totalorder %s23, 0
      %p148 = por %p146, %p147
      %p149 = scmp.ne.s32.totalorder %s141, %s143
      %p150 = scmp.eq.s32.totalorder %s28, 1
      %p151 = por %p149, %p150
      %p152 = scmp.ne.s32.totalorder %s143, %s144
      %p153 = scmp.eq.s32.totalorder %s28, 0
      %p154 = por %p152, %p153
      %p155 = scmp.ne.s32.totalorder %s143, %s144
      %p156 = scmp.eq.s32.totalorder %s29, 1
      %p157 = por %p155, %p156
      %p159 = scmp.ne.s32.totalorder %s144, %s158
      %p160 = scmp.eq.s32.totalorder %s29, 0
      %p161 = por %p159, %p160
      %s163 = sadd.s32 %s162, 1
      %p166 = scmp.eq.s32.totalorder %s23, 1
      %p167 = scmp.ne.s32.totalorder %s162, %s164
      %p168 = scmp.eq.s32.totalorder %s23, 0
      %p169 = por %p167, %p168
      %p170 = scmp.ne.s32.totalorder %s162, %s164
      %p171 = scmp.eq.s32.totalorder %s28, 1
      %p172 = por %p170, %p171
      %p173 = scmp.ne.s32.totalorder %s164, %s165
      %p174 = scmp.eq.s32.totalorder %s28, 0
      %p175 = por %p173, %p174
      %p176 = scmp.ne.s32.totalorder %s164, %s165
      %p177 = scmp.eq.s32.totalorder %s29, 1
      %p178 = por %p176, %p177
      %p180 = scmp.ne.s32.totalorder %s165, %s179
      %p181 = scmp.eq.s32.totalorder %s29, 0
      %p182 = por %p180, %p181
      %s184 = sadd.s32 %s183, 1
      %p187 = scmp.eq.s32.totalorder %s23, 1
      %p188 = scmp.ne.s32.totalorder %s183, %s185
      %p189 = scmp.eq.s32.totalorder %s23, 0
      %p190 = por %p188, %p189
      %p191 = scmp.ne.s32.totalorder %s183, %s185
      %p192 = scmp.eq.s32.totalorder %s28, 1
      %p193 = por %p191, %p192
      %p194 = scmp.ne.s32.totalorder %s185, %s186
      %p195 = scmp.eq.s32.totalorder %s28, 0
      %p196 = por %p194, %p195
      %p197 = scmp.ne.s32.totalorder %s185, %s186
      %p198 = scmp.eq.s32.totalorder %s29, 1
      %p199 = por %p197, %p198
      %p201 = scmp.ne.s32.totalorder %s186, %s200
      %p202 = scmp.eq.s32.totalorder %s29, 0
      %p203 = por %p201, %p202
      %s205 = sadd.s32 %s204, 1
      %p208 = scmp.eq.s32.totalorder %s23, 1
      %p209 = scmp.ne.s32.totalorder %s204, %s206
      %p210 = scmp.eq.s32.totalorder %s23, 0
      %p211 = por %p209, %p210
      %p212 = scmp.ne.s32.totalorder %s204, %s206
      %p213 = scmp.eq.s32.totalorder %s28, 1
      %p214 = por %p212, %p213
      %p215 = scmp.ne.s32.totalorder %s206, %s207
      %p216 = scmp.eq.s32.totalorder %s28, 0
      %p217 = por %p215, %p216
      %p218 = scmp.ne.s32.totalorder %s206, %s207
      %p219 = scmp.eq.s32.totalorder %s29, 1
      %p220 = por %p218, %p219
      %p222 = scmp.ne.s32.totalorder %s207, %s221
      %p223 = scmp.eq.s32.totalorder %s29, 0
      %p224 = por %p222, %p223
      %s226 = sadd.s32 %s225, 1
      %p229 = scmp.eq.s32.totalorder %s23, 1
      %p230 = scmp.ne.s32.totalorder %s225, %s227
      %p231 = scmp.eq.s32.totalorder %s23, 0
      %p232 = por %p230, %p231
      %p233 = scmp.ne.s32.totalorder %s225, %s227
      %p234 = scmp.eq.s32.totalorder %s28, 1
      %p235 = por %p233, %p234
      %p236 = scmp.ne.s32.totalorder %s227, %s228
      %p237 = scmp.eq.s32.totalorder %s28, 0
      %p238 = por %p236, %p237
      %p239 = scmp.ne.s32.totalorder %s227, %s228
      %p240 = scmp.eq.s32.totalorder %s29, 1
      %p241 = por %p239, %p240
      %p243 = scmp.ne.s32.totalorder %s228, %s242
      %p244 = scmp.eq.s32.totalorder %s29, 0
      %p245 = por %p243, %p244
      %s247 = sadd.s32 %s246, 1
      %p250 = scmp.eq.s32.totalorder %s23, 1
      %p251 = scmp.ne.s32.totalorder %s246, %s248
      %p252 = scmp.eq.s32.totalorder %s23, 0
      %p253 = por %p251, %p252
      %p254 = scmp.ne.s32.totalorder %s246, %s248
      %p255 = scmp.eq.s32.totalorder %s28, 1
      %p256 = por %p254, %p255
      %p257 = scmp.ne.s32.totalorder %s248, %s249
      %p258 = scmp.eq.s32.totalorder %s28, 0
      %p259 = por %p257, %p258
      %p260 = scmp.ne.s32.totalorder %s248, %s249
      %p261 = scmp.eq.s32.totalorder %s29, 1
      %p262 = por %p260, %p261
      %p264 = scmp.ne.s32.totalorder %s249, %s263
      %p265 = scmp.eq.s32.totalorder %s29, 0
      %p266 = por %p264, %p265
      %s268 = sadd.s32 %s267, 1
      %p271 = scmp.eq.s32.totalorder %s23, 1
      %p272 = scmp.ne.s32.totalorder %s267, %s269
      %p273 = scmp.eq.s32.totalorder %s23, 0
      %p274 = por %p272, %p273
      %p275 = scmp.ne.s32.totalorder %s267, %s269
      %p276 = scmp.eq.s32.totalorder %s28, 1
      %p277 = por %p275, %p276
      %p278 = scmp.ne.s32.totalorder %s269, %s270
      %p279 = scmp.eq.s32.totalorder %s28, 0
      %p280 = por %p278, %p279
      %p281 = scmp.ne.s32.totalorder %s269, %s270
      %p282 = scmp.eq.s32.totalorder %s29, 1
      %p283 = por %p281, %p282
      %p285 = scmp.ne.s32.totalorder %s270, %s284
      %p286 = scmp.eq.s32.totalorder %s29, 0
      %p287 = por %p285, %p286
      %s289 = sadd.s32 %s288, 1
      %p292 = scmp.eq.s32.totalorder %s23, 1
      %p293 = scmp.ne.s32.totalorder %s288, %s290
      %p294 = scmp.eq.s32.totalorder %s23, 0
      %p295 = por %p293, %p294
      %p296 = scmp.ne.s32.totalorder %s288, %s290
      %p297 = scmp.eq.s32.totalorder %s28, 1
      %p298 = por %p296, %p297
      %p299 = scmp.ne.s32.totalorder %s290, %s291
      %p300 = scmp.eq.s32.totalorder %s28, 0
      %p301 = por %p299, %p300
      %p302 = scmp.ne.s32.totalorder %s290, %s291
      %p303 = scmp.eq.s32.totalorder %s29, 1
      %p304 = por %p302, %p303
      %p306 = scmp.ne.s32.totalorder %s291, %s305
      %p307 = scmp.eq.s32.totalorder %s29, 0
      %p308 = por %p306, %p307
      %s310 = sadd.s32 %s309, 1
      %p313 = scmp.eq.s32.totalorder %s23, 1
      %p314 = scmp.ne.s32.totalorder %s309, %s311
      %p315 = scmp.eq.s32.totalorder %s23, 0
      %p316 = por %p314, %p315
      %p317 = scmp.ne.s32.totalorder %s309, %s311
      %p318 = scmp.eq.s32.totalorder %s28, 1
      %p319 = por %p317, %p318
      %p320 = scmp.ne.s32.totalorder %s311, %s312
      %p321 = scmp.eq.s32.totalorder %s28, 0
      %p322 = por %p320, %p321
      %p323 = scmp.ne.s32.totalorder %s311, %s312
      %p324 = scmp.eq.s32.totalorder %s29, 1
      %p325 = por %p323, %p324
      %p327 = scmp.ne.s32.totalorder %s312, %s326
      %p328 = scmp.eq.s32.totalorder %s29, 0
      %p329 = por %p327, %p328
      %s330 = ssub.s32 %s23, %s30
      %p331 = scmp.eq.s32.totalorder %s330, 0
      %s333 = sadd.s32 %s332, 1
      %s334 = scalar_select %p331, %s332, %s333
      %p337 = pneg %p331
      %p338 = scmp.eq.s32.totalorder %s23, 1
      %p339 = por %p337, %p338
      %p340 = scmp.ne.s32.totalorder %s332, %s335
      %p341 = scmp.eq.s32.totalorder %s23, 0
      %p342 = por %p340, %p341
      %p343 = scmp.ne.s32.totalorder %s332, %s335
      %p344 = scmp.eq.s32.totalorder %s28, 1
      %p345 = por %p343, %p344
      %p346 = scmp.ne.s32.totalorder %s335, %s336
      %p347 = scmp.eq.s32.totalorder %s28, 0
      %p348 = por %p346, %p347
      %p349 = scmp.ne.s32.totalorder %s335, %s336
      %p350 = scmp.eq.s32.totalorder %s29, 1
      %p351 = por %p349, %p350
      %p353 = scmp.ne.s32.totalorder %s336, %s352
      %p354 = scmp.eq.s32.totalorder %s29, 0
      %p355 = por %p353, %p354
      %p356 = scmp.le.s32.totalorder 1, %s23
      %p357 = scmp.lt.s32.totalorder %s23, 3
      %p358 = pnand %p356, %p357
      %p359 = pneg %p358
      // Predicated region
      $region9: #{tpu_custom_call.1} parent=5 // pred_check
        _
      $region10: #{tpu_custom_call.1} parent=5 // pred_check_branch
        %361 = sbr.rel (%p358) target = $region12
      $region11: #{tpu_custom_call.1} parent=5 // pred_region
        %s362 = ssub.s32 %s23, 1
        // Predicated region
        $region13: #{tpu_custom_call.1} parent=11 // pred_check
          %p363 = pneg %p70
        $region14: #{tpu_custom_call.1} parent=11 // pred_check_branch
          %365 = sbr.rel (%p363) target = $region16
        $region15: #{tpu_custom_call.1} parent=11 // pred_region
          _
        $region16: #{tpu_custom_call.1} parent=11 // pred_fallthru
          _
        // Predicated region
        $region17: #{tpu_custom_call.1} parent=11 // pred_check
          %p366 = pneg %p91
        $region18: #{tpu_custom_call.1} parent=11 // pred_check_branch
          %368 = sbr.rel (%p366) target = $region20
        $region19: #{tpu_custom_call.1} parent=11 // pred_region
          _
        $region20: #{tpu_custom_call.1} parent=11 // pred_fallthru
          _
        // Predicated region
        $region21: #{tpu_custom_call.1} parent=11 // pred_check
          %p369 = pneg %p112
        $region22: #{tpu_custom_call.1} parent=11 // pred_check_branch
          %371 = sbr.rel (%p369) target = $region24
        $region23: #{tpu_custom_call.1} parent=11 // pred_region
          _
        $region24: #{tpu_custom_call.1} parent=11 // pred_fallthru
          _
        // Predicated region
        $region25: #{tpu_custom_call.1} parent=11 // pred_check
          %p372 = pneg %p133
        $region26: #{tpu_custom_call.1} parent=11 // pred_check_branch
          %374 = sbr.rel (%p372) target = $region28
        $region27: #{tpu_custom_call.1} parent=11 // pred_region
          _
        $region28: #{tpu_custom_call.1} parent=11 // pred_fallthru
          _
        // Predicated region
        $region29: #{tpu_custom_call.1} parent=11 // pred_check
          %p375 = pneg %p154
        $region30: #{tpu_custom_call.1} parent=11 // pred_check_branch
          %377 = sbr.rel (%p375) target = $region32
        $region31: #{tpu_custom_call.1} parent=11 // pred_region
          _
        $region32: #{tpu_custom_call.1} parent=11 // pred_fallthru
          _
        // Predicated region
        $region33: #{tpu_custom_call.1} parent=11 // pred_check
          %p378 = pneg %p175
        $region34: #{tpu_custom_call.1} parent=11 // pred_check_branch
          %380 = sbr.rel (%p378) target = $region36
        $region35: #{tpu_custom_call.1} parent=11 // pred_region
          _
        $region36: #{tpu_custom_call.1} parent=11 // pred_fallthru
          _
        // Predicated region
        $region37: #{tpu_custom_call.1} parent=11 // pred_check
          %p381 = pneg %p196
        $region38: #{tpu_custom_call.1} parent=11 // pred_check_branch
          %383 = sbr.rel (%p381) target = $region40
        $region39: #{tpu_custom_call.1} parent=11 // pred_region
          _
        $region40: #{tpu_custom_call.1} parent=11 // pred_fallthru
          _
        // Predicated region
        $region41: #{tpu_custom_call.1} parent=11 // pred_check
          %p384 = pneg %p217
        $region42: #{tpu_custom_call.1} parent=11 // pred_check_branch
          %386 = sbr.rel (%p384) target = $region44
        $region43: #{tpu_custom_call.1} parent=11 // pred_region
          _
        $region44: #{tpu_custom_call.1} parent=11 // pred_fallthru
          _
        // Predicated region
        $region45: #{tpu_custom_call.1} parent=11 // pred_check
          %p387 = pneg %p238
        $region46: #{tpu_custom_call.1} parent=11 // pred_check_branch
          %389 = sbr.rel (%p387) target = $region48
        $region47: #{tpu_custom_call.1} parent=11 // pred_region
          _
        $region48: #{tpu_custom_call.1} parent=11 // pred_fallthru
          _
        // Predicated region
        $region49: #{tpu_custom_call.1} parent=11 // pred_check
          %p390 = pneg %p259
        $region50: #{tpu_custom_call.1} parent=11 // pred_check_branch
          %392 = sbr.rel (%p390) target = $region52
        $region51: #{tpu_custom_call.1} parent=11 // pred_region
          _
        $region52: #{tpu_custom_call.1} parent=11 // pred_fallthru
          _
        // Predicated region
        $region53: #{tpu_custom_call.1} parent=11 // pred_check
          %p393 = pneg %p280
        $region54: #{tpu_custom_call.1} parent=11 // pred_check_branch
          %395 = sbr.rel (%p393) target = $region56
        $region55: #{tpu_custom_call.1} parent=11 // pred_region
          _
        $region56: #{tpu_custom_call.1} parent=11 // pred_fallthru
          _
        // Predicated region
        $region57: #{tpu_custom_call.1} parent=11 // pred_check
          %p396 = pneg %p301
        $region58: #{tpu_custom_call.1} parent=11 // pred_check_branch
          %398 = sbr.rel (%p396) target = $region60
        $region59: #{tpu_custom_call.1} parent=11 // pred_region
          _
        $region60: #{tpu_custom_call.1} parent=11 // pred_fallthru
          _
        // Predicated region
        $region61: #{tpu_custom_call.1} parent=11 // pred_check
          %p399 = pneg %p322
        $region62: #{tpu_custom_call.1} parent=11 // pred_check_branch
          %401 = sbr.rel (%p399) target = $region64
        $region63: #{tpu_custom_call.1} parent=11 // pred_region
          _
        $region64: #{tpu_custom_call.1} parent=11 // pred_fallthru
          _
      $region12: #{tpu_custom_call.1} parent=5 // pred_fallthru
        _
      %p402 = scmp.lt.s32.totalorder %s23, 2
      // Predicated region
      $region65: #{tpu_custom_call.1} parent=5 // pred_check
        %p403 = pneg %p402
      $region66: #{tpu_custom_call.1} parent=5 // pred_check_branch
        %405 = sbr.rel (%p403) target = $region68
      $region67: #{tpu_custom_call.1} parent=5 // pred_region
        // Predicated region
        $region69: #{tpu_custom_call.1} parent=67 // pred_check
          %p406 = pneg %p43
        $region70: #{tpu_custom_call.1} parent=67 // pred_check_branch
          %408 = sbr.rel (%p406) target = $region72
        $region71: #{tpu_custom_call.1} parent=67 // pred_region
          %p409 = scmp.lt.s32.totalorder %s23, 1
          %s410 = scalar_select %p409, %s23, 1
          %s411 = smul.addr %s410, 8
          %s412 = scalar_lea.vmem %s0, %s411
        $region72: #{tpu_custom_call.1} parent=67 // pred_fallthru
          _
      $region68: #{tpu_custom_call.1} parent=5 // pred_fallthru
        _
      %p413 = scmp.le.s32.totalorder 1, %s23
      %p414 = scmp.lt.s32.totalorder %s23, 3
      %p415 = pnand %p413, %p414
      %p416 = pneg %p415
      // Predicated region
      $region73: #{tpu_custom_call.1} parent=5 // pred_check
        _
      $region74: #{tpu_custom_call.1} parent=5 // pred_check_branch
        %418 = sbr.rel (%p415) target = $region76
      $region75: #{tpu_custom_call.1} parent=5 // pred_region
        %s419 = ssub.s32 %s23, 1
        %p420 = scmp.lt.s32.totalorder %s28, 1
        %s421 = scalar_select %p420, %s28, 1
        %s422 = smul.addr %s421, 8
        %s423 = scalar_lea.vmem %s0, %s422
        %p424 = pneg %p49
        %p425 = pneg %p46
        %p426 = pneg %p70
        %p427 = pneg %p67
        %p428 = pneg %p91
        %p429 = pneg %p88
        %p430 = pneg %p112
        %p431 = pneg %p109
        %p432 = pneg %p133
        %p433 = pneg %p130
        %p434 = pneg %p154
        %p435 = pneg %p151
        %p436 = pneg %p175
        %p437 = pneg %p172
        %p438 = pneg %p196
        %p439 = pneg %p193
        %p440 = pneg %p217
        %p441 = pneg %p214
        %p442 = pneg %p238
        %p443 = pneg %p235
        %p444 = pneg %p259
        %p445 = pneg %p256
        %p446 = pneg %p280
        %p447 = pneg %p277
        %p448 = pneg %p301
        %p449 = pneg %p298
        %p450 = pneg %p322
        %p451 = pneg %p319
        %p452 = pneg %p348
        %p453 = pneg %p345
        %s454 = sand.u32 %s335, 1
        %s455 = scalar_lea.sflag [#allocation3], %s454
        %s456 = sand.u32 %s335, 1
        %s457 = smul.addr %s456, 8
        %s458 = scalar_lea.vmem [#allocation2], %s457
        %p459 = scmp.lt.s32.totalorder %s28, 1
        %s460 = scalar_select %p459, %s28, 1
        %s461 = smul.addr %s460, 8
        %s462 = scalar_lea.vmem %s0, %s461
        %v464 = vld [vmem:[%s462] sm:$0xff]
        %v465 = vld [vmem:[%s2] sm:$0x1]
        %v466 = vld [vmem:[%s3] sm:$0x1]
        %vm467 = vcmask 261120
        %v468 = vsel %vm467, %v464, 0.0
        %469 = vadd.xlane.f32.xlu0 %v468
        %v470 = vpop.xlane.xlu0 %469
        %v471 = vrcp.pop 32.0
        %v472 = vmul.f32 %v470, %v471
        %v473 = vsub.f32 %v464, %v472
        %v474 = vmul.f32 %v473, %v473
        %v475 = vsel %vm467, %v474, 0.0
        %476 = vadd.xlane.f32.xlu0 %v475
        %v477 = vpop.xlane.xlu0 %476
        %v478 = vmul.f32 %v477, %v471
        %v479 = vadd.f32 %v478, 1e-05
        %v480 = vrsqrt.pop %v479
        %v481 = vmul.f32 %v473, %v480
        %v483 = vlaneseq
        %v484 = vshrl.u32 %v483, 7
        %v485 = vsub.s32 0, %v484
        %v486 = vrot.slane %v465, %v485
        %v488 = vmul.f32 %v481, %v486
        %v490 = vlaneseq
        %v491 = vshrl.u32 %v490, 7
        %v492 = vsub.s32 0, %v491
        %v493 = vrot.slane %v466, %v492
        %v495 = vadd.f32 %v488, %v493
        %v496 = vpack.c.bf16 %v495, %v495
        %v497 = vld [vmem:[%s4] sm:$0xf]
        %v498 = vld [vmem:[%s4 + $0x4] sm:$0xf]
        %v499 = vld [vmem:[%s4 + $0x8] sm:$0xf]
        %v500 = vld [vmem:[%s4 + $0xc] sm:$0xf]
        %v501 = vld [vmem:[%s5] sm:$0x1]
        %v503 = vlaneseq
        %v504 = vshrl.u32 %v503, 7
        %v505 = vsub.s32 0, %v504
        %v506 = vrot.slane %v501, %v505
        %v512 = vunpack.c.l.b16 %v497
        %v513 = vunpack.c.l.b16 %v498
        %v514 = vunpack.c.l.b16 %v499
        %v515 = vunpack.c.l.b16 %v500
        %v516 = vpack.c.b16 %v513, %v512
        %v517 = vpack.c.b16 %v515, %v514
        %v521 = vsel %vm467, %v496, 0
        %523 = vmatprep.subr.bf16.mxu0 0
        %524 = vmatpush1.bf16.msra.mxu0 %v516
        %525 = vmatprep.subr.bf16.mxu0 0
        %526 = vmatpush1.bf16.msra.mxu0 %v517
        %527 = vmatprep.subr.bf16.mxu0 0
        %528 = vmatpush1.bf16.msra.mxu0 0
        %529 = vmatprep.subr.bf16.mxu0 0
        %530 = vmatpush1.bf16.msra.mxu0 0
        %531 = vmatprep.subr.bf16.mxu0 0
        %532 = vmatpush1.bf16.msra.mxu0 0
        %533 = vmatprep.subr.bf16.mxu0 0
        %534 = vmatpush1.bf16.msra.mxu0 0
        %535 = vmatprep.subr.bf16.mxu0 0
        %536 = vmatpush1.bf16.msra.mxu0 0
        %537 = vmatprep.subr.bf16.mxu0 0
        %538 = vmatpush1.bf16.msra.mxu0 0
        %539 = vmatprep.subr.bf16.mxu0 0
        %540 = vmatpush1.bf16.msra.mxu0 0
        %541 = vmatprep.subr.bf16.mxu0 0
        %542 = vmatpush1.bf16.msra.mxu0 0
        %543 = vmatprep.subr.bf16.mxu0 0
        %544 = vmatpush1.bf16.msra.mxu0 0
        %545 = vmatprep.subr.bf16.mxu0 0
        %546 = vmatpush1.bf16.msra.mxu0 0
        %547 = vmatprep.subr.bf16.mxu0 0
        %548 = vmatpush1.bf16.msra.mxu0 0
        %549 = vmatprep.subr.bf16.mxu0 0
        %550 = vmatpush1.bf16.msra.mxu0 0
        %551 = vmatprep.subr.bf16.mxu0 0
        %552 = vmatpush1.bf16.msra.mxu0 0
        %553 = vmatprep.subr.bf16.mxu0 0
        %554 = vmatpush1.bf16.msra.mxu0 0
        %555 = vmatprep.mubr.bf16.mxu0 0
        %556 = vmatmul.mubr.bf16.gmra.mrb[0].mxu0 %v521
        %v557 = vpop.f32.mrb[0].mxu0
        %v558 = vadd.f32 %v506, %v557
        %v559 = vpop.f32.mrb[0].mxu0
        %v560 = vpop.f32.mrb[0].mxu0
        %v561 = vpop.f32.mrb[0].mxu0
        %562 = vdwg.mxu0
        %v563 = vpack.c.bf16 %v558, %v558
        %565 = vrot.lane.b32.xlu0 %v563, 120
        %v566 = vpop.permute.xlu0 %565
        %567 = vrot.lane.b32.xlu0 %v563, 112
        %v568 = vpop.permute.xlu0 %567
        %569 = vrot.lane.b32.xlu0 %v563, 104
        %v570 = vpop.permute.xlu0 %569
        %v572 = vunpack.c.l.s4 1983009808
        %v573 = vunpack.c.0.s8 %v572
        %v574 = vlaneseq
        %v575 = vshrl.u32 %v574, 7
        %v576 = vsub.s32 %v573, %v575
        %v577 = vrot.slane %v563, %v576
        %v580 = vunpack.c.l.s4 1983009808
        %v581 = vunpack.c.0.s8 %v580
        %v582 = vlaneseq
        %v583 = vshrl.u32 %v582, 7
        %v584 = vsub.s32 %v581, %v583
        %v585 = vrot.slane %v568, %v584
        %v586 = vcombine.low %v577, %v585
        %v587 = vcombine.high %v577, %v585
        %v589 = vunpack.c.l.s4 1934713408
        %v590 = vunpack.c.0.s8 %v589
        %v591 = vlaneseq
        %v592 = vshrl.u32 %v591, 7
        %v593 = vsub.s32 %v590, %v592
        %v594 = vrot.slane %v586, %v593
        %v596 = vunpack.c.l.s4 1934713408
        %v597 = vunpack.c.0.s8 %v596
        %v598 = vlaneseq
        %v599 = vshrl.u32 %v598, 7
        %v600 = vsub.s32 %v597, %v599
        %v601 = vrot.slane %v587, %v600
        %v602 = vcombine.high %v594, 0
        %v603 = vcombine.high %v601, 0
        %v606 = vunpack.c.l.s4 1983009808
        %v607 = vunpack.c.0.s8 %v606
        %v608 = vlaneseq
        %v609 = vshrl.u32 %v608, 7
        %v610 = vsub.s32 %v607, %v609
        %v611 = vrot.slane %v566, %v610
        %v614 = vunpack.c.l.s4 1983009808
        %v615 = vunpack.c.0.s8 %v614
        %v616 = vlaneseq
        %v617 = vshrl.u32 %v616, 7
        %v618 = vsub.s32 %v615, %v617
        %v619 = vrot.slane %v570, %v618
        %v620 = vcombine.low %v611, %v619
        %v621 = vcombine.high %v611, %v619
        %v623 = vunpack.c.l.s4 1934713408
        %v624 = vunpack.c.0.s8 %v623
        %v625 = vlaneseq
        %v626 = vshrl.u32 %v625, 7
        %v627 = vsub.s32 %v624, %v626
        %v628 = vrot.slane %v620, %v627
        %v630 = vunpack.c.l.s4 1934713408
        %v631 = vunpack.c.0.s8 %v630
        %v632 = vlaneseq
        %v633 = vshrl.u32 %v632, 7
        %v634 = vsub.s32 %v631, %v633
        %v635 = vrot.slane %v621, %v634
        %v636 = vcombine.high %v628, 0
        %v637 = vcombine.high %v635, 0
        %v640 = vpack.i.b16 %v628, %v594
        %v642 = vshrl.u32 %v594, 16
        %v643 = vshrl.u32 %v628, 16
        %v644 = vpack.i.b16 %v643, %v642
        %v648 = vpack.i.b16 %v636, %v602
        %v650 = vshrl.u32 %v602, 16
        %v651 = vshrl.u32 %v636, 16
        %v652 = vpack.i.b16 %v651, %v650
        %v656 = vpack.i.b16 %v635, %v601
        %v658 = vshrl.u32 %v601, 16
        %v659 = vshrl.u32 %v635, 16
        %v660 = vpack.i.b16 %v659, %v658
        %v664 = vpack.i.b16 %v637, %v603
        %v666 = vshrl.u32 %v603, 16
        %v667 = vshrl.u32 %v637, 16
        %v668 = vpack.i.b16 %v667, %v666
        %v670 = vcombine.low %v640, %v656
        %v672 = vunpack.c.l.s4 1983009808
        %v673 = vunpack.c.0.s8 %v672
        %v674 = vlaneseq
        %v675 = vshrl.u32 %v674, 7
        %v676 = vsub.s32 %v673, %v675
        %v677 = vrot.slane %v670, %v676
        %v678 = vcombine.low %v648, %v664
        %v680 = vunpack.c.l.s4 1983009808
        %v681 = vunpack.c.0.s8 %v680
        %v682 = vlaneseq
        %v683 = vshrl.u32 %v682, 7
        %v684 = vsub.s32 %v681, %v683
        %v685 = vrot.slane %v678, %v684
        %v686 = vcombine.low %v677, %v685
        %v688 = vunpack.c.l.s4 1934713408
        %v689 = vunpack.c.0.s8 %v688
        %v690 = vlaneseq
        %v691 = vshrl.u32 %v690, 7
        %v692 = vsub.s32 %v689, %v691
        %v693 = vrot.slane %v686, %v692
        %v694 = vcombine.high %v693, 0
        %v695 = vcombine.low %v644, %v660
        %v697 = vunpack.c.l.s4 1983009808
        %v698 = vunpack.c.0.s8 %v697
        %v699 = vlaneseq
        %v700 = vshrl.u32 %v699, 7
        %v701 = vsub.s32 %v698, %v700
        %v702 = vrot.slane %v695, %v701
        %v703 = vcombine.low %v652, %v668
        %v705 = vunpack.c.l.s4 1983009808
        %v706 = vunpack.c.0.s8 %v705
        %v707 = vlaneseq
        %v708 = vshrl.u32 %v707, 7
        %v709 = vsub.s32 %v706, %v708
        %v710 = vrot.slane %v703, %v709
        %v711 = vcombine.low %v702, %v710
        %v713 = vunpack.c.l.s4 1934713408
        %v714 = vunpack.c.0.s8 %v713
        %v715 = vlaneseq
        %v716 = vshrl.u32 %v715, 7
        %v717 = vsub.s32 %v714, %v716
        %v718 = vrot.slane %v711, %v717
        %v719 = vcombine.high %v718, 0
        %v722 = vpack.i.b16 %v718, %v693
        %v723 = vshrl.u32 %v693, 16
        %v724 = vshrl.u32 %v718, 16
        %v725 = vpack.i.b16 %v724, %v723
        %v728 = vpack.i.b16 %v719, %v694
        %v729 = vshrl.u32 %v694, 16
        %v730 = vshrl.u32 %v719, 16
        %v731 = vpack.i.b16 %v730, %v729
        %732 = vrot.lane.b32.xlu0 %v563, 96
        %v733 = vpop.permute.xlu0 %732
        %734 = vrot.lane.b32.xlu0 %v566, 96
        %v735 = vpop.permute.xlu0 %734
        %736 = vrot.lane.b32.xlu0 %v568, 96
        %v737 = vpop.permute.xlu0 %736
        %738 = vrot.lane.b32.xlu0 %v570, 96
        %v739 = vpop.permute.xlu0 %738
        %v742 = vunpack.c.l.s4 1983009808
        %v743 = vunpack.c.0.s8 %v742
        %v744 = vlaneseq
        %v745 = vshrl.u32 %v744, 7
        %v746 = vsub.s32 %v743, %v745
        %v747 = vrot.slane %v733, %v746
        %v750 = vunpack.c.l.s4 1983009808
        %v751 = vunpack.c.0.s8 %v750
        %v752 = vlaneseq
        %v753 = vshrl.u32 %v752, 7
        %v754 = vsub.s32 %v751, %v753
        %v755 = vrot.slane %v737, %v754
        %v756 = vcombine.low %v747, %v755
        %v757 = vcombine.high %v747, %v755
        %v759 = vunpack.c.l.s4 1934713408
        %v760 = vunpack.c.0.s8 %v759
        %v761 = vlaneseq
        %v762 = vshrl.u32 %v761, 7
        %v763 = vsub.s32 %v760, %v762
        %v764 = vrot.slane %v756, %v763
        %v766 = vunpack.c.l.s4 1934713408
        %v767 = vunpack.c.0.s8 %v766
        %v768 = vlaneseq
        %v769 = vshrl.u32 %v768, 7
        %v770 = vsub.s32 %v767, %v769
        %v771 = vrot.slane %v757, %v770
        %v772 = vcombine.high %v764, 0
        %v773 = vcombine.high %v771, 0
        %v776 = vunpack.c.l.s4 1983009808
        %v777 = vunpack.c.0.s8 %v776
        %v778 = vlaneseq
        %v779 = vshrl.u32 %v778, 7
        %v780 = vsub.s32 %v777, %v779
        %v781 = vrot.slane %v735, %v780
        %v784 = vunpack.c.l.s4 1983009808
        %v785 = vunpack.c.0.s8 %v784
        %v786 = vlaneseq
        %v787 = vshrl.u32 %v786, 7
        %v788 = vsub.s32 %v785, %v787
        %v789 = vrot.slane %v739, %v788
        %v790 = vcombine.low %v781, %v789
        %v791 = vcombine.high %v781, %v789
        %v793 = vunpack.c.l.s4 1934713408
        %v794 = vunpack.c.0.s8 %v793
        %v795 = vlaneseq
        %v796 = vshrl.u32 %v795, 7
        %v797 = vsub.s32 %v794, %v796
        %v798 = vrot.slane %v790, %v797
        %v800 = vunpack.c.l.s4 1934713408
        %v801 = vunpack.c.0.s8 %v800
        %v802 = vlaneseq
        %v803 = vshrl.u32 %v802, 7
        %v804 = vsub.s32 %v801, %v803
        %v805 = vrot.slane %v791, %v804
        %v806 = vcombine.high %v798, 0
        %v807 = vcombine.high %v805, 0
        %v810 = vpack.i.b16 %v798, %v764
        %v812 = vshrl.u32 %v764, 16
        %v813 = vshrl.u32 %v798, 16
        %v814 = vpack.i.b16 %v813, %v812
        %v818 = vpack.i.b16 %v806, %v772
        %v820 = vshrl.u32 %v772, 16
        %v821 = vshrl.u32 %v806, 16
        %v822 = vpack.i.b16 %v821, %v820
        %v826 = vpack.i.b16 %v805, %v771
        %v828 = vshrl.u32 %v771, 16
        %v829 = vshrl.u32 %v805, 16
        %v830 = vpack.i.b16 %v829, %v828
        %v834 = vpack.i.b16 %v807, %v773
        %v836 = vshrl.u32 %v773, 16
        %v837 = vshrl.u32 %v807, 16
        %v838 = vpack.i.b16 %v837, %v836
        %v840 = vcombine.low %v810, %v826
        %v842 = vunpack.c.l.s4 1983009808
        %v843 = vunpack.c.0.s8 %v842
        %v844 = vlaneseq
        %v845 = vshrl.u32 %v844, 7
        %v846 = vsub.s32 %v843, %v845
        %v847 = vrot.slane %v840, %v846
        %v848 = vcombine.low %v818, %v834
        %v850 = vunpack.c.l.s4 1983009808
        %v851 = vunpack.c.0.s8 %v850
        %v852 = vlaneseq
        %v853 = vshrl.u32 %v852, 7
        %v854 = vsub.s32 %v851, %v853
        %v855 = vrot.slane %v848, %v854
        %v856 = vcombine.low %v847, %v855
        %v858 = vunpack.c.l.s4 1934713408
        %v859 = vunpack.c.0.s8 %v858
        %v860 = vlaneseq
        %v861 = vshrl.u32 %v860, 7
        %v862 = vsub.s32 %v859, %v861
        %v863 = vrot.slane %v856, %v862
        %v864 = vcombine.high %v863, 0
        %v865 = vcombine.low %v814, %v830
        %v867 = vunpack.c.l.s4 1983009808
        %v868 = vunpack.c.0.s8 %v867
        %v869 = vlaneseq
        %v870 = vshrl.u32 %v869, 7
        %v871 = vsub.s32 %v868, %v870
        %v872 = vrot.slane %v865, %v871
        %v873 = vcombine.low %v822, %v838
        %v875 = vunpack.c.l.s4 1983009808
        %v876 = vunpack.c.0.s8 %v875
        %v877 = vlaneseq
        %v878 = vshrl.u32 %v877, 7
        %v879 = vsub.s32 %v876, %v878
        %v880 = vrot.slane %v873, %v879
        %v881 = vcombine.low %v872, %v880
        %v883 = vunpack.c.l.s4 1934713408
        %v884 = vunpack.c.0.s8 %v883
        %v885 = vlaneseq
        %v886 = vshrl.u32 %v885, 7
        %v887 = vsub.s32 %v884, %v886
        %v888 = vrot.slane %v881, %v887
        %v889 = vcombine.high %v888, 0
        %v892 = vpack.i.b16 %v888, %v863
        %v893 = vshrl.u32 %v863, 16
        %v894 = vshrl.u32 %v888, 16
        %v895 = vpack.i.b16 %v894, %v893
        %v898 = vpack.i.b16 %v889, %v864
        %v899 = vshrl.u32 %v864, 16
        %v900 = vshrl.u32 %v889, 16
        %v901 = vpack.i.b16 %v900, %v899
        %902 = vrot.lane.b32.xlu0 %v563, 64
        %v903 = vpop.permute.xlu0 %902
        %904 = vrot.lane.b32.xlu0 %v566, 64
        %v905 = vpop.permute.xlu0 %904
        %906 = vrot.lane.b32.xlu0 %v568, 64
        %v907 = vpop.permute.xlu0 %906
        %908 = vrot.lane.b32.xlu0 %v570, 64
        %v909 = vpop.permute.xlu0 %908
        %v912 = vunpack.c.l.s4 1983009808
        %v913 = vunpack.c.0.s8 %v912
        %v914 = vlaneseq
        %v915 = vshrl.u32 %v914, 7
        %v916 = vsub.s32 %v913, %v915
        %v917 = vrot.slane %v903, %v916
        %v920 = vunpack.c.l.s4 1983009808
        %v921 = vunpack.c.0.s8 %v920
        %v922 = vlaneseq
        %v923 = vshrl.u32 %v922, 7
        %v924 = vsub.s32 %v921, %v923
        %v925 = vrot.slane %v907, %v924
        %v926 = vcombine.low %v917, %v925
        %v927 = vcombine.high %v917, %v925
        %v929 = vunpack.c.l.s4 1934713408
        %v930 = vunpack.c.0.s8 %v929
        %v931 = vlaneseq
        %v932 = vshrl.u32 %v931, 7
        %v933 = vsub.s32 %v930, %v932
        %v934 = vrot.slane %v926, %v933
        %v936 = vunpack.c.l.s4 1934713408
        %v937 = vunpack.c.0.s8 %v936
        %v938 = vlaneseq
        %v939 = vshrl.u32 %v938, 7
        %v940 = vsub.s32 %v937, %v939
        %v941 = vrot.slane %v927, %v940
        %v942 = vcombine.high %v934, 0
        %v943 = vcombine.high %v941, 0
        %v946 = vunpack.c.l.s4 1983009808
        %v947 = vunpack.c.0.s8 %v946
        %v948 = vlaneseq
        %v949 = vshrl.u32 %v948, 7
        %v950 = vsub.s32 %v947, %v949
        %v951 = vrot.slane %v905, %v950
        %v954 = vunpack.c.l.s4 1983009808
        %v955 = vunpack.c.0.s8 %v954
        %v956 = vlaneseq
        %v957 = vshrl.u32 %v956, 7
        %v958 = vsub.s32 %v955, %v957
        %v959 = vrot.slane %v909, %v958
        %v960 = vcombine.low %v951, %v959
        %v961 = vcombine.high %v951, %v959
        %v963 = vunpack.c.l.s4 1934713408
        %v964 = vunpack.c.0.s8 %v963
        %v965 = vlaneseq
        %v966 = vshrl.u32 %v965, 7
        %v967 = vsub.s32 %v964, %v966
        %v968 = vrot.slane %v960, %v967
        %v970 = vunpack.c.l.s4 1934713408
        %v971 = vunpack.c.0.s8 %v970
        %v972 = vlaneseq
        %v973 = vshrl.u32 %v972, 7
        %v974 = vsub.s32 %v971, %v973
        %v975 = vrot.slane %v961, %v974
        %v976 = vcombine.high %v968, 0
        %v977 = vcombine.high %v975, 0
        %v980 = vpack.i.b16 %v968, %v934
        %v982 = vshrl.u32 %v934, 16
        %v983 = vshrl.u32 %v968, 16
        %v984 = vpack.i.b16 %v983, %v982
        %v988 = vpack.i.b16 %v976, %v942
        %v990 = vshrl.u32 %v942, 16
        %v991 = vshrl.u32 %v976, 16
        %v992 = vpack.i.b16 %v991, %v990
        %v996 = vpack.i.b16 %v975, %v941
        %v998 = vshrl.u32 %v941, 16
        %v999 = vshrl.u32 %v975, 16
        %v1000 = vpack.i.b16 %v999, %v998
        %v1004 = vpack.i.b16 %v977, %v943
        %v1006 = vshrl.u32 %v943, 16
        %v1007 = vshrl.u32 %v977, 16
        %v1008 = vpack.i.b16 %v1007, %v1006
        %v1010 = vcombine.low %v980, %v996
        %v1012 = vunpack.c.l.s4 1983009808
        %v1013 = vunpack.c.0.s8 %v1012
        %v1014 = vlaneseq
        %v1015 = vshrl.u32 %v1014, 7
        %v1016 = vsub.s32 %v1013, %v1015
        %v1017 = vrot.slane %v1010, %v1016
        %v1018 = vcombine.low %v988, %v1004
        %v1020 = vunpack.c.l.s4 1983009808
        %v1021 = vunpack.c.0.s8 %v1020
        %v1022 = vlaneseq
        %v1023 = vshrl.u32 %v1022, 7
        %v1024 = vsub.s32 %v1021, %v1023
        %v1025 = vrot.slane %v1018, %v1024
        %v1026 = vcombine.low %v1017, %v1025
        %v1028 = vunpack.c.l.s4 1934713408
        %v1029 = vunpack.c.0.s8 %v1028
        %v1030 = vlaneseq
        %v1031 = vshrl.u32 %v1030, 7
        %v1032 = vsub.s32 %v1029, %v1031
        %v1033 = vrot.slane %v1026, %v1032
        %v1034 = vcombine.high %v1033, 0
        %v1035 = vcombine.low %v984, %v1000
        %v1037 = vunpack.c.l.s4 1983009808
        %v1038 = vunpack.c.0.s8 %v1037
        %v1039 = vlaneseq
        %v1040 = vshrl.u32 %v1039, 7
        %v1041 = vsub.s32 %v1038, %v1040
        %v1042 = vrot.slane %v1035, %v1041
        %v1043 = vcombine.low %v992, %v1008
        %v1045 = vunpack.c.l.s4 1983009808
        %v1046 = vunpack.c.0.s8 %v1045
        %v1047 = vlaneseq
        %v1048 = vshrl.u32 %v1047, 7
        %v1049 = vsub.s32 %v1046, %v1048
        %v1050 = vrot.slane %v1043, %v1049
        %v1051 = vcombine.low %v1042, %v1050
        %v1053 = vunpack.c.l.s4 1934713408
        %v1054 = vunpack.c.0.s8 %v1053
        %v1055 = vlaneseq
        %v1056 = vshrl.u32 %v1055, 7
        %v1057 = vsub.s32 %v1054, %v1056
        %v1058 = vrot.slane %v1051, %v1057
        %v1059 = vcombine.high %v1058, 0
        %v1062 = vpack.i.b16 %v1058, %v1033
        %v1063 = vshrl.u32 %v1033, 16
        %v1064 = vshrl.u32 %v1058, 16
        %v1065 = vpack.i.b16 %v1064, %v1063
        %v1068 = vpack.i.b16 %v1059, %v1034
        %v1069 = vshrl.u32 %v1034, 16
        %v1070 = vshrl.u32 %v1059, 16
        %v1071 = vpack.i.b16 %v1070, %v1069
        %vm1072 = vcmask 64512
        %v1074 = vsel %vm1072, %v722, 0
        %v1077 = vsel %vm1072, %v892, 0
        %1079 = vmatprep.subr.bf16.mxu0 0
        %1080 = vmatpush1.bf16.xpose.msra.mxu0 %v1077
        %1081 = vmatprep.subr.bf16.mxu0 0
        %1082 = vmatpush1.bf16.xpose.msra.mxu0 0
        %1083 = vmatprep.subr.bf16.mxu0 0
        %1084 = vmatpush1.bf16.xpose.msra.mxu0 0
        %1085 = vmatprep.subr.bf16.mxu0 0
        %1086 = vmatpush1.bf16.xpose.msra.mxu0 0
        %1087 = vmatprep.subr.bf16.mxu0 0
        %1088 = vmatpush1.bf16.xpose.msra.mxu0 0
        %1089 = vmatprep.subr.bf16.mxu0 0
        %1090 = vmatpush1.bf16.xpose.msra.mxu0 0
        %1091 = vmatprep.subr.bf16.mxu0 0
        %1092 = vmatpush1.bf16.xpose.msra.mxu0 0
        %1093 = vmatprep.subr.bf16.mxu0 0
        %1094 = vmatpush1.bf16.xpose.msra.mxu0 0
        %1095 = vmatprep.subr.bf16.mxu0 0
        %1096 = vmatpush1.bf16.xpose.msra.mxu0 0
        %1097 = vmatprep.subr.bf16.mxu0 0
        %1098 = vmatpush1.bf16.xpose.msra.mxu0 0
        %1099 = vmatprep.subr.bf16.mxu0 0
        %1100 = vmatpush1.bf16.xpose.msra.mxu0 0
        %1101 = vmatprep.subr.bf16.mxu0 0
        %1102 = vmatpush1.bf16.xpose.msra.mxu0 0
        %1103 = vmatprep.subr.bf16.mxu0 0
        %1104 = vmatpush1.bf16.xpose.msra.mxu0 0
        %1105 = vmatprep.subr.bf16.mxu0 0
        %1106 = vmatpush1.bf16.xpose.msra.mxu0 0
        %1107 = vmatprep.subr.bf16.mxu0 0
        %1108 = vmatpush1.bf16.xpose.msra.mxu0 0
        %1109 = vmatprep.subr.bf16.mxu0 0
        %1110 = vmatpush1.bf16.xpose.msra.mxu0 0
        %1111 = vmatprep.mubr.bf16.mxu0 0
        %1112 = vmatmul.mubr.bf16.gmra.mrb[0].mxu0 %v1074
        %v1113 = vpop.f32.mrb[0].mxu0
        %v1114 = vadd.f32 0.0, %v1113
        %v1115 = vpop.f32.mrb[0].mxu0
        %v1116 = vpop.f32.mrb[0].mxu0
        %v1117 = vpop.f32.mrb[0].mxu0
        %1118 = vdwg.mxu0
        %v1120 = vsel %vm1072, %v725, 0
        %v1123 = vsel %vm1072, %v895, 0
        %1125 = vmatprep.subr.bf16.mxu0 0
        %1126 = vmatpush1.bf16.xpose.msra.mxu0 %v1123
        %1127 = vmatprep.subr.bf16.mxu0 0
        %1128 = vmatpush1.bf16.xpose.msra.mxu0 0
        %1129 = vmatprep.subr.bf16.mxu0 0
        %1130 = vmatpush1.bf16.xpose.msra.mxu0 0
        %1131 = vmatprep.subr.bf16.mxu0 0
        %1132 = vmatpush1.bf16.xpose.msra.mxu0 0
        %1133 = vmatprep.subr.bf16.mxu0 0
        %1134 = vmatpush1.bf16.xpose.msra.mxu0 0
        %1135 = vmatprep.subr.bf16.mxu0 0
        %1136 = vmatpush1.bf16.xpose.msra.mxu0 0
        %1137 = vmatprep.subr.bf16.mxu0 0
        %1138 = vmatpush1.bf16.xpose.msra.mxu0 0
        %1139 = vmatprep.subr.bf16.mxu0 0
        %1140 = vmatpush1.bf16.xpose.msra.mxu0 0
        %1141 = vmatprep.subr.bf16.mxu0 0
        %1142 = vmatpush1.bf16.xpose.msra.mxu0 0
        %1143 = vmatprep.subr.bf16.mxu0 0
        %1144 = vmatpush1.bf16.xpose.msra.mxu0 0
        %1145 = vmatprep.subr.bf16.mxu0 0
        %1146 = vmatpush1.bf16.xpose.msra.mxu0 0
        %1147 = vmatprep.subr.bf16.mxu0 0
        %1148 = vmatpush1.bf16.xpose.msra.mxu0 0
        %1149 = vmatprep.subr.bf16.mxu0 0
        %1150 = vmatpush1.bf16.xpose.msra.mxu0 0
        %1151 = vmatprep.subr.bf16.mxu0 0
        %1152 = vmatpush1.bf16.xpose.msra.mxu0 0
        %1153 = vmatprep.subr.bf16.mxu0 0
        %1154 = vmatpush1.bf16.xpose.msra.mxu0 0
        %1155 = vmatprep.subr.bf16.mxu0 0
        %1156 = vmatpush1.bf16.xpose.msra.mxu0 0
        %1157 = vmatprep.mubr.bf16.mxu0 0
        %1158 = vmatmul.mubr.bf16.gmra.mrb[0].mxu0 %v1120
        %v1159 = vpop.f32.mrb[0].mxu0
        %v1160 = vadd.f32 0.0, %v1159
        %v1161 = vpop.f32.mrb[0].mxu0
        %v1162 = vpop.f32.mrb[0].mxu0
        %v1163 = vpop.f32.mrb[0].mxu0
        %1164 = vdwg.mxu0
        %v1166 = vsel %vm1072, %v728, 0
        %v1169 = vsel %vm1072, %v898, 0
        %1171 = vmatprep.subr.bf16.mxu0 0
        %1172 = vmatpush1.bf16.xpose.msra.mxu0 %v1169
        %1173 = vmatprep.subr.bf16.mxu0 0
        %1174 = vmatpush1.bf16.xpose.msra.mxu0 0
        %1175 = vmatprep.subr.bf16.mxu0 0
        %1176 = vmatpush1.bf16.xpose.msra.mxu0 0
        %1177 = vmatprep.subr.bf16.mxu0 0
        %1178 = vmatpush1.bf16.xpose.msra.mxu0 0
        %1179 = vmatprep.subr.bf16.mxu0 0
        %1180 = vmatpush1.bf16.xpose.msra.mxu0 0
        %1181 = vmatprep.subr.bf16.mxu0 0
        %1182 = vmatpush1.bf16.xpose.msra.mxu0 0
        %1183 = vmatprep.subr.bf16.mxu0 0
        %1184 = vmatpush1.bf16.xpose.msra.mxu0 0
        %1185 = vmatprep.subr.bf16.mxu0 0
        %1186 = vmatpush1.bf16.xpose.msra.mxu0 0
        %1187 = vmatprep.subr.bf16.mxu0 0
        %1188 = vmatpush1.bf16.xpose.msra.mxu0 0
        %1189 = vmatprep.subr.bf16.mxu0 0
        %1190 = vmatpush1.bf16.xpose.msra.mxu0 0
        %1191 = vmatprep.subr.bf16.mxu0 0
        %1192 = vmatpush1.bf16.xpose.msra.mxu0 0
        %1193 = vmatprep.subr.bf16.mxu0 0
        %1194 = vmatpush1.bf16.xpose.msra.mxu0 0
        %1195 = vmatprep.subr.bf16.mxu0 0
        %1196 = vmatpush1.bf16.xpose.msra.mxu0 0
        %1197 = vmatprep.subr.bf16.mxu0 0
        %1198 = vmatpush1.bf16.xpose.msra.mxu0 0
        %1199 = vmatprep.subr.bf16.mxu0 0
        %1200 = vmatpush1.bf16.xpose.msra.mxu0 0
        %1201 = vmatprep.subr.bf16.mxu0 0
        %1202 = vmatpush1.bf16.xpose.msra.mxu0 0
        %1203 = vmatprep.mubr.bf16.mxu0 0
        %1204 = vmatmul.mubr.bf16.gmra.mrb[0].mxu0 %v1166
        %v1205 = vpop.f32.mrb[0].mxu0
        %v1206 = vadd.f32 0.0, %v1205
        %v1207 = vpop.f32.mrb[0].mxu0
        %v1208 = vpop.f32.mrb[0].mxu0
        %v1209 = vpop.f32.mrb[0].mxu0
        %1210 = vdwg.mxu0
        %v1212 = vsel %vm1072, %v731, 0
        %v1215 = vsel %vm1072, %v901, 0
        %1217 = vmatprep.subr.bf16.mxu0 0
        %1218 = vmatpush1.bf16.xpose.msra.mxu0 %v1215
        %1219 = vmatprep.subr.bf16.mxu0 0
        %1220 = vmatpush1.bf16.xpose.msra.mxu0 0
        %1221 = vmatprep.subr.bf16.mxu0 0
        %1222 = vmatpush1.bf16.xpose.msra.mxu0 0
        %1223 = vmatprep.subr.bf16.mxu0 0
        %1224 = vmatpush1.bf16.xpose.msra.mxu0 0
        %1225 = vmatprep.subr.bf16.mxu0 0
        %1226 = vmatpush1.bf16.xpose.msra.mxu0 0
        %1227 = vmatprep.subr.bf16.mxu0 0
        %1228 = vmatpush1.bf16.xpose.msra.mxu0 0
        %1229 = vmatprep.subr.bf16.mxu0 0
        %1230 = vmatpush1.bf16.xpose.msra.mxu0 0
        %1231 = vmatprep.subr.bf16.mxu0 0
        %1232 = vmatpush1.bf16.xpose.msra.mxu0 0
        %1233 = vmatprep.subr.bf16.mxu0 0
        %1234 = vmatpush1.bf16.xpose.msra.mxu0 0
        %1235 = vmatprep.subr.bf16.mxu0 0
        %1236 = vmatpush1.bf16.xpose.msra.mxu0 0
        %1237 = vmatprep.subr.bf16.mxu0 0
        %1238 = vmatpush1.bf16.xpose.msra.mxu0 0
        %1239 = vmatprep.subr.bf16.mxu0 0
        %1240 = vmatpush1.bf16.xpose.msra.mxu0 0
        %1241 = vmatprep.subr.bf16.mxu0 0
        %1242 = vmatpush1.bf16.xpose.msra.mxu0 0
        %1243 = vmatprep.subr.bf16.mxu0 0
        %1244 = vmatpush1.bf16.xpose.msra.mxu0 0
        %1245 = vmatprep.subr.bf16.mxu0 0
        %1246 = vmatpush1.bf16.xpose.msra.mxu0 0
        %1247 = vmatprep.subr.bf16.mxu0 0
        %1248 = vmatpush1.bf16.xpose.msra.mxu0 0
        %1249 = vmatprep.mubr.bf16.mxu0 0
        %1250 = vmatmul.mubr.bf16.gmra.mrb[0].mxu0 %v1212
        %v1251 = vpop.f32.mrb[0].mxu0
        %v1252 = vadd.f32 0.0, %v1251
        %v1253 = vpop.f32.mrb[0].mxu0
        %v1254 = vpop.f32.mrb[0].mxu0
        %v1255 = vpop.f32.mrb[0].mxu0
        %1256 = vdwg.mxu0
        %v1257 = vmul.f32 %v1114, 0.35355338
        %v1258 = vmul.f32 %v1160, 0.35355338
        %v1259 = vmul.f32 %v1206, 0.35355338
        %v1260 = vmul.f32 %v1252, 0.35355338
        %v1261 = vld [vmem:[%s1] sm:$0xff]
        %v1262 = vadd.f32 %v1257, %v1261
        %v1263 = vadd.f32 %v1258, %v1261
        %v1264 = vadd.f32 %v1259, %v1261
        %v1265 = vadd.f32 %v1260, %v1261
        %v1266 = vsel %vm1072, %v1262, -inf
        %1267 = vmax.xlane.f32.xlu0 %v1266
        %v1268 = vpop.xlane.xlu0 %1267
        %v1269 = vsel %vm1072, %v1263, -inf
        %1270 = vmax.xlane.f32.xlu0 %v1269
        %v1271 = vpop.xlane.xlu0 %1270
        %v1272 = vsel %vm1072, %v1264, -inf
        %1273 = vmax.xlane.f32.xlu0 %v1272
        %v1274 = vpop.xlane.xlu0 %1273
        %v1275 = vsel %vm1072, %v1265, -inf
        %1276 = vmax.xlane.f32.xlu0 %v1275
        %v1277 = vpop.xlane.xlu0 %1276
        %v1278 = vsub.f32 %v1262, %v1268
        %v1279 = vsub.f32 %v1263, %v1271
        %v1280 = vsub.f32 %v1264, %v1274
        %v1281 = vsub.f32 %v1265, %v1277
        %v1282 = vmul.f32 %v1278, 1.442695
        %v1283 = vpow.pop %v1282
        %v1284 = vmul.f32 %v1279, 1.442695
        %v1285 = vpow.pop %v1284
        %v1286 = vmul.f32 %v1280, 1.442695
        %v1287 = vpow.pop %v1286
        %v1288 = vmul.f32 %v1281, 1.442695
        %v1289 = vpow.pop %v1288
        %v1290 = vsel %vm1072, %v1283, 0.0
        %1291 = vadd.xlane.f32.xlu0 %v1290
        %v1292 = vpop.xlane.xlu0 %1291
        %v1293 = vsel %vm1072, %v1285, 0.0
        %1294 = vadd.xlane.f32.xlu0 %v1293
        %v1295 = vpop.xlane.xlu0 %1294
        %v1296 = vsel %vm1072, %v1287, 0.0
        %1297 = vadd.xlane.f32.xlu0 %v1296
        %v1298 = vpop.xlane.xlu0 %1297
        %v1299 = vsel %vm1072, %v1289, 0.0
        %1300 = vadd.xlane.f32.xlu0 %v1299
        %v1301 = vpop.xlane.xlu0 %1300
        %v1302 = vpack.c.bf16 %v1283, %v1283
        %v1303 = vpack.c.bf16 %v1285, %v1285
        %v1304 = vpack.c.bf16 %v1287, %v1287
        %v1305 = vpack.c.bf16 %v1289, %v1289
        %v1307 = vsel %vm1072, %v1302, 0
        %vm1309 = vcmask 1043456
        %v1311 = vsel %vm1309, %v1062, 0
        %1313 = vmatprep.subr.bf16.mxu0 0
        %1314 = vmatpush1.bf16.msra.mxu0 %v1311
        %1315 = vmatprep.subr.bf16.mxu0 0
        %1316 = vmatpush1.bf16.msra.mxu0 0
        %1317 = vmatprep.subr.bf16.mxu0 0
        %1318 = vmatpush1.bf16.msra.mxu0 0
        %1319 = vmatprep.subr.bf16.mxu0 0
        %1320 = vmatpush1.bf16.msra.mxu0 0
        %1321 = vmatprep.subr.bf16.mxu0 0
        %1322 = vmatpush1.bf16.msra.mxu0 0
        %1323 = vmatprep.subr.bf16.mxu0 0
        %1324 = vmatpush1.bf16.msra.mxu0 0
        %1325 = vmatprep.subr.bf16.mxu0 0
        %1326 = vmatpush1.bf16.msra.mxu0 0
        %1327 = vmatprep.subr.bf16.mxu0 0
        %1328 = vmatpush1.bf16.msra.mxu0 0
        %1329 = vmatprep.subr.bf16.mxu0 0
        %1330 = vmatpush1.bf16.msra.mxu0 0
        %1331 = vmatprep.subr.bf16.mxu0 0
        %1332 = vmatpush1.bf16.msra.mxu0 0
        %1333 = vmatprep.subr.bf16.mxu0 0
        %1334 = vmatpush1.bf16.msra.mxu0 0
        %1335 = vmatprep.subr.bf16.mxu0 0
        %1336 = vmatpush1.bf16.msra.mxu0 0
        %1337 = vmatprep.subr.bf16.mxu0 0
        %1338 = vmatpush1.bf16.msra.mxu0 0
        %1339 = vmatprep.subr.bf16.mxu0 0
        %1340 = vmatpush1.bf16.msra.mxu0 0
        %1341 = vmatprep.subr.bf16.mxu0 0
        %1342 = vmatpush1.bf16.msra.mxu0 0
        %1343 = vmatprep.subr.bf16.mxu0 0
        %1344 = vmatpush1.bf16.msra.mxu0 0
        %1345 = vmatprep.mubr.bf16.mxu0 0
        %1346 = vmatmul.mubr.bf16.gmra.mrb[0].mxu0 %v1307
        %v1347 = vpop.f32.mrb[0].mxu0
        %v1348 = vadd.f32 0.0, %v1347
        %v1349 = vpop.f32.mrb[0].mxu0
        %v1350 = vpop.f32.mrb[0].mxu0
        %v1351 = vpop.f32.mrb[0].mxu0
        %1352 = vdwg.mxu0
        %v1354 = vsel %vm1072, %v1303, 0
        %v1357 = vsel %vm1309, %v1065, 0
        %1359 = vmatprep.subr.bf16.mxu0 0
        %1360 = vmatpush1.bf16.msra.mxu0 %v1357
        %1361 = vmatprep.subr.bf16.mxu0 0
        %1362 = vmatpush1.bf16.msra.mxu0 0
        %1363 = vmatprep.subr.bf16.mxu0 0
        %1364 = vmatpush1.bf16.msra.mxu0 0
        %1365 = vmatprep.subr.bf16.mxu0 0
        %1366 = vmatpush1.bf16.msra.mxu0 0
        %1367 = vmatprep.subr.bf16.mxu0 0
        %1368 = vmatpush1.bf16.msra.mxu0 0
        %1369 = vmatprep.subr.bf16.mxu0 0
        %1370 = vmatpush1.bf16.msra.mxu0 0
        %1371 = vmatprep.subr.bf16.mxu0 0
        %1372 = vmatpush1.bf16.msra.mxu0 0
        %1373 = vmatprep.subr.bf16.mxu0 0
        %1374 = vmatpush1.bf16.msra.mxu0 0
        %1375 = vmatprep.subr.bf16.mxu0 0
        %1376 = vmatpush1.bf16.msra.mxu0 0
        %1377 = vmatprep.subr.bf16.mxu0 0
        %1378 = vmatpush1.bf16.msra.mxu0 0
        %1379 = vmatprep.subr.bf16.mxu0 0
        %1380 = vmatpush1.bf16.msra.mxu0 0
        %1381 = vmatprep.subr.bf16.mxu0 0
        %1382 = vmatpush1.bf16.msra.mxu0 0
        %1383 = vmatprep.subr.bf16.mxu0 0
        %1384 = vmatpush1.bf16.msra.mxu0 0
        %1385 = vmatprep.subr.bf16.mxu0 0
        %1386 = vmatpush1.bf16.msra.mxu0 0
        %1387 = vmatprep.subr.bf16.mxu0 0
        %1388 = vmatpush1.bf16.msra.mxu0 0
        %1389 = vmatprep.subr.bf16.mxu0 0
        %1390 = vmatpush1.bf16.msra.mxu0 0
        %1391 = vmatprep.mubr.bf16.mxu0 0
        %1392 = vmatmul.mubr.bf16.gmra.mrb[0].mxu0 %v1354
        %v1393 = vpop.f32.mrb[0].mxu0
        %v1394 = vadd.f32 0.0, %v1393
        %v1395 = vpop.f32.mrb[0].mxu0
        %v1396 = vpop.f32.mrb[0].mxu0
        %v1397 = vpop.f32.mrb[0].mxu0
        %1398 = vdwg.mxu0
        %v1400 = vsel %vm1072, %v1304, 0
        %v1403 = vsel %vm1309, %v1068, 0
        %1405 = vmatprep.subr.bf16.mxu0 0
        %1406 = vmatpush1.bf16.msra.mxu0 %v1403
        %1407 = vmatprep.subr.bf16.mxu0 0
        %1408 = vmatpush1.bf16.msra.mxu0 0
        %1409 = vmatprep.subr.bf16.mxu0 0
        %1410 = vmatpush1.bf16.msra.mxu0 0
        %1411 = vmatprep.subr.bf16.mxu0 0
        %1412 = vmatpush1.bf16.msra.mxu0 0
        %1413 = vmatprep.subr.bf16.mxu0 0
        %1414 = vmatpush1.bf16.msra.mxu0 0
        %1415 = vmatprep.subr.bf16.mxu0 0
        %1416 = vmatpush1.bf16.msra.mxu0 0
        %1417 = vmatprep.subr.bf16.mxu0 0
        %1418 = vmatpush1.bf16.msra.mxu0 0
        %1419 = vmatprep.subr.bf16.mxu0 0
        %1420 = vmatpush1.bf16.msra.mxu0 0
        %1421 = vmatprep.subr.bf16.mxu0 0
        %1422 = vmatpush1.bf16.msra.mxu0 0
        %1423 = vmatprep.subr.bf16.mxu0 0
        %1424 = vmatpush1.bf16.msra.mxu0 0
        %1425 = vmatprep.subr.bf16.mxu0 0
        %1426 = vmatpush1.bf16.msra.mxu0 0
        %1427 = vmatprep.subr.bf16.mxu0 0
        %1428 = vmatpush1.bf16.msra.mxu0 0
        %1429 = vmatprep.subr.bf16.mxu0 0
        %1430 = vmatpush1.bf16.msra.mxu0 0
        %1431 = vmatprep.subr.bf16.mxu0 0
        %1432 = vmatpush1.bf16.msra.mxu0 0
        %1433 = vmatprep.subr.bf16.mxu0 0
        %1434 = vmatpush1.bf16.msra.mxu0 0
        %1435 = vmatprep.subr.bf16.mxu0 0
        %1436 = vmatpush1.bf16.msra.mxu0 0
        %1437 = vmatprep.mubr.bf16.mxu0 0
        %1438 = vmatmul.mubr.bf16.gmra.mrb[0].mxu0 %v1400
        %v1439 = vpop.f32.mrb[0].mxu0
        %v1440 = vadd.f32 0.0, %v1439
        %v1441 = vpop.f32.mrb[0].mxu0
        %v1442 = vpop.f32.mrb[0].mxu0
        %v1443 = vpop.f32.mrb[0].mxu0
        %1444 = vdwg.mxu0
        %v1446 = vsel %vm1072, %v1305, 0
        %v1449 = vsel %vm1309, %v1071, 0
        %1451 = vmatprep.subr.bf16.mxu0 0
        %1452 = vmatpush1.bf16.msra.mxu0 %v1449
        %1453 = vmatprep.subr.bf16.mxu0 0
        %1454 = vmatpush1.bf16.msra.mxu0 0
        %1455 = vmatprep.subr.bf16.mxu0 0
        %1456 = vmatpush1.bf16.msra.mxu0 0
        %1457 = vmatprep.subr.bf16.mxu0 0
        %1458 = vmatpush1.bf16.msra.mxu0 0
        %1459 = vmatprep.subr.bf16.mxu0 0
        %1460 = vmatpush1.bf16.msra.mxu0 0
        %1461 = vmatprep.subr.bf16.mxu0 0
        %1462 = vmatpush1.bf16.msra.mxu0 0
        %1463 = vmatprep.subr.bf16.mxu0 0
        %1464 = vmatpush1.bf16.msra.mxu0 0
        %1465 = vmatprep.subr.bf16.mxu0 0
        %1466 = vmatpush1.bf16.msra.mxu0 0
        %1467 = vmatprep.subr.bf16.mxu0 0
        %1468 = vmatpush1.bf16.msra.mxu0 0
        %1469 = vmatprep.subr.bf16.mxu0 0
        %1470 = vmatpush1.bf16.msra.mxu0 0
        %1471 = vmatprep.subr.bf16.mxu0 0
        %1472 = vmatpush1.bf16.msra.mxu0 0
        %1473 = vmatprep.subr.bf16.mxu0 0
        %1474 = vmatpush1.bf16.msra.mxu0 0
        %1475 = vmatprep.subr.bf16.mxu0 0
        %1476 = vmatpush1.bf16.msra.mxu0 0
        %1477 = vmatprep.subr.bf16.mxu0 0
        %1478 = vmatpush1.bf16.msra.mxu0 0
        %1479 = vmatprep.subr.bf16.mxu0 0
        %1480 = vmatpush1.bf16.msra.mxu0 0
        %1481 = vmatprep.subr.bf16.mxu0 0
        %1482 = vmatpush1.bf16.msra.mxu0 0
        %1483 = vmatprep.mubr.bf16.mxu0 0
        %1484 = vmatmul.mubr.bf16.gmra.mrb[0].mxu0 %v1446
        %v1485 = vpop.f32.mrb[0].mxu0
        %v1486 = vadd.f32 0.0, %v1485
        %v1487 = vpop.f32.mrb[0].mxu0
        %v1488 = vpop.f32.mrb[0].mxu0
        %v1489 = vpop.f32.mrb[0].mxu0
        %1490 = vdwg.mxu0
        %v1491 = vrcp.pop %v1292
        %v1492 = vrcp.pop %v1295
        %v1493 = vrcp.pop %v1298
        %v1494 = vrcp.pop %v1301
        %v1495 = vmul.f32 %v1348, %v1491
        %v1496 = vmul.f32 %v1394, %v1492
        %v1497 = vmul.f32 %v1440, %v1493
        %v1498 = vmul.f32 %v1486, %v1494
        %v1499 = vcombine.low %v1495, %v1497
        %v1500 = vcombine.high %v1495, %v1497
        %v1502 = vunpack.c.l.s4 1983009808
        %v1503 = vunpack.c.0.s8 %v1502
        %v1504 = vlaneseq
        %v1505 = vshrl.u32 %v1504, 7
        %v1506 = vsub.s32 %v1503, %v1505
        %v1507 = vrot.slane %v1499, %v1506
        %v1509 = vunpack.c.l.s4 1983009808
        %v1510 = vunpack.c.0.s8 %v1509
        %v1511 = vlaneseq
        %v1512 = vshrl.u32 %v1511, 7
        %v1513 = vsub.s32 %v1510, %v1512
        %v1514 = vrot.slane %v1500, %v1513
        %v1515 = vcombine.low %v1496, %v1498
        %v1516 = vcombine.high %v1496, %v1498
        %v1518 = vunpack.c.l.s4 1983009808
        %v1519 = vunpack.c.0.s8 %v1518
        %v1520 = vlaneseq
        %v1521 = vshrl.u32 %v1520, 7
        %v1522 = vsub.s32 %v1519, %v1521
        %v1523 = vrot.slane %v1515, %v1522
        %v1525 = vunpack.c.l.s4 1983009808
        %v1526 = vunpack.c.0.s8 %v1525
        %v1527 = vlaneseq
        %v1528 = vshrl.u32 %v1527, 7
        %v1529 = vsub.s32 %v1526, %v1528
        %v1530 = vrot.slane %v1516, %v1529
        %v1531 = vcombine.low %v1507, %v1523
        %v1532 = vcombine.high %v1507, %v1523
        %v1534 = vunpack.c.l.s4 1934713408
        %v1535 = vunpack.c.0.s8 %v1534
        %v1536 = vlaneseq
        %v1537 = vshrl.u32 %v1536, 7
        %v1538 = vsub.s32 %v1535, %v1537
        %v1539 = vrot.slane %v1531, %v1538
        %v1541 = vunpack.c.l.s4 1934713408
        %v1542 = vunpack.c.0.s8 %v1541
        %v1543 = vlaneseq
        %v1544 = vshrl.u32 %v1543, 7
        %v1545 = vsub.s32 %v1542, %v1544
        %v1546 = vrot.slane %v1532, %v1545
        %v1547 = vcombine.low %v1514, %v1530
        %v1548 = vcombine.high %v1514, %v1530
        %v1550 = vunpack.c.l.s4 1934713408
        %v1551 = vunpack.c.0.s8 %v1550
        %v1552 = vlaneseq
        %v1553 = vshrl.u32 %v1552, 7
        %v1554 = vsub.s32 %v1551, %v1553
        %v1555 = vrot.slane %v1547, %v1554
        %v1557 = vunpack.c.l.s4 1934713408
        %v1558 = vunpack.c.0.s8 %v1557
        %v1559 = vlaneseq
        %v1560 = vshrl.u32 %v1559, 7
        %v1561 = vsub.s32 %v1558, %v1560
        %v1562 = vrot.slane %v1548, %v1561
        %v1563 = vcombine.high %v1539, 0.0
        %v1564 = vcombine.high %v1546, 0.0
        %v1565 = vcombine.high %v1555, 0.0
        %v1566 = vcombine.high %v1562, 0.0
        %v1567 = vcombine.low %v1539, %v1546
        %v1569 = vunpack.c.l.s4 1983009808
        %v1570 = vunpack.c.0.s8 %v1569
        %v1571 = vlaneseq
        %v1572 = vshrl.u32 %v1571, 7
        %v1573 = vsub.s32 %v1570, %v1572
        %v1574 = vrot.slane %v1567, %v1573
        %v1575 = vcombine.low %v1563, %v1564
        %v1577 = vunpack.c.l.s4 1983009808
        %v1578 = vunpack.c.0.s8 %v1577
        %v1579 = vlaneseq
        %v1580 = vshrl.u32 %v1579, 7
        %v1581 = vsub.s32 %v1578, %v1580
        %v1582 = vrot.slane %v1575, %v1581
        %v1583 = vcombine.low %v1555, %v1562
        %v1585 = vunpack.c.l.s4 1983009808
        %v1586 = vunpack.c.0.s8 %v1585
        %v1587 = vlaneseq
        %v1588 = vshrl.u32 %v1587, 7
        %v1589 = vsub.s32 %v1586, %v1588
        %v1590 = vrot.slane %v1583, %v1589
        %v1591 = vcombine.low %v1565, %v1566
        %v1593 = vunpack.c.l.s4 1983009808
        %v1594 = vunpack.c.0.s8 %v1593
        %v1595 = vlaneseq
        %v1596 = vshrl.u32 %v1595, 7
        %v1597 = vsub.s32 %v1594, %v1596
        %v1598 = vrot.slane %v1591, %v1597
        %v1599 = vcombine.low %v1574, %v1582
        %v1600 = vcombine.high %v1574, %v1582
        %v1602 = vunpack.c.l.s4 1934713408
        %v1603 = vunpack.c.0.s8 %v1602
        %v1604 = vlaneseq
        %v1605 = vshrl.u32 %v1604, 7
        %v1606 = vsub.s32 %v1603, %v1605
        %v1607 = vrot.slane %v1599, %v1606
        %v1609 = vunpack.c.l.s4 1934713408
        %v1610 = vunpack.c.0.s8 %v1609
        %v1611 = vlaneseq
        %v1612 = vshrl.u32 %v1611, 7
        %v1613 = vsub.s32 %v1610, %v1612
        %v1614 = vrot.slane %v1600, %v1613
        %v1615 = vcombine.low %v1590, %v1598
        %v1616 = vcombine.high %v1590, %v1598
        %v1618 = vunpack.c.l.s4 1934713408
        %v1619 = vunpack.c.0.s8 %v1618
        %v1620 = vlaneseq
        %v1621 = vshrl.u32 %v1620, 7
        %v1622 = vsub.s32 %v1619, %v1621
        %v1623 = vrot.slane %v1615, %v1622
        %v1625 = vunpack.c.l.s4 1934713408
        %v1626 = vunpack.c.0.s8 %v1625
        %v1627 = vlaneseq
        %v1628 = vshrl.u32 %v1627, 7
        %v1629 = vsub.s32 %v1626, %v1628
        %v1630 = vrot.slane %v1616, %v1629
        %v1631 = vcombine.low %v1607, %v1623
        %v1632 = vcombine.high %v1607, %v1623
        %v1633 = vcombine.low %v1614, %v1630
        %v1634 = vcombine.high %v1614, %v1630
        %1636 = vrot.lane.b32.xlu0 %v1632, 8
        %v1637 = vpop.permute.xlu0 %1636
        %1640 = vrot.lane.b32.xlu0 %v1633, 16
        %v1641 = vpop.permute.xlu0 %1640
        %1644 = vrot.lane.b32.xlu0 %v1634, 24
        %v1645 = vpop.permute.xlu0 %1644
        %v1647 = vsel %vm1072, %v1631, %v1637
        %vm1648 = vcmask 130048
        %v1649 = vsel %vm1648, %v1647, %v1641
        %vm1650 = vcmask 195584
        %v1651 = vsel %vm1650, %v1649, %v1645
        %v1652 = vpack.c.bf16 %v1651, %v1651
        %v1653 = vld [vmem:[%s6] sm:$0xf]
        %v1654 = vld [vmem:[%s6 + $0x4] sm:$0xf]
        %v1655 = vld [vmem:[%s6 + $0x8] sm:$0xf]
        %v1656 = vld [vmem:[%s6 + $0xc] sm:$0xf]
        %v1657 = vld [vmem:[%s7] sm:$0x1]
        %v1659 = vlaneseq
        %v1660 = vshrl.u32 %v1659, 7
        %v1661 = vsub.s32 0, %v1660
        %v1662 = vrot.slane %v1657, %v1661
        %v1668 = vunpack.c.l.b16 %v1653
        %v1669 = vunpack.c.l.b16 %v1654
        %v1670 = vunpack.c.l.b16 %v1655
        %v1671 = vunpack.c.l.b16 %v1656
        %v1672 = vpack.c.b16 %v1669, %v1668
        %v1673 = vpack.c.b16 %v1671, %v1670
        %v1677 = vsel %vm467, %v1652, 0
        %1679 = vmatprep.subr.bf16.mxu0 0
        %1680 = vmatpush1.bf16.msra.mxu0 %v1672
        %1681 = vmatprep.subr.bf16.mxu0 0
        %1682 = vmatpush1.bf16.msra.mxu0 %v1673
        %1683 = vmatprep.subr.bf16.mxu0 0
        %1684 = vmatpush1.bf16.msra.mxu0 0
        %1685 = vmatprep.subr.bf16.mxu0 0
        %1686 = vmatpush1.bf16.msra.mxu0 0
        %1687 = vmatprep.subr.bf16.mxu0 0
        %1688 = vmatpush1.bf16.msra.mxu0 0
        %1689 = vmatprep.subr.bf16.mxu0 0
        %1690 = vmatpush1.bf16.msra.mxu0 0
        %1691 = vmatprep.subr.bf16.mxu0 0
        %1692 = vmatpush1.bf16.msra.mxu0 0
        %1693 = vmatprep.subr.bf16.mxu0 0
        %1694 = vmatpush1.bf16.msra.mxu0 0
        %1695 = vmatprep.subr.bf16.mxu0 0
        %1696 = vmatpush1.bf16.msra.mxu0 0
        %1697 = vmatprep.subr.bf16.mxu0 0
        %1698 = vmatpush1.bf16.msra.mxu0 0
        %1699 = vmatprep.subr.bf16.mxu0 0
        %1700 = vmatpush1.bf16.msra.mxu0 0
        %1701 = vmatprep.subr.bf16.mxu0 0
        %1702 = vmatpush1.bf16.msra.mxu0 0
        %1703 = vmatprep.subr.bf16.mxu0 0
        %1704 = vmatpush1.bf16.msra.mxu0 0
        %1705 = vmatprep.subr.bf16.mxu0 0
        %1706 = vmatpush1.bf16.msra.mxu0 0
        %1707 = vmatprep.subr.bf16.mxu0 0
        %1708 = vmatpush1.bf16.msra.mxu0 0
        %1709 = vmatprep.subr.bf16.mxu0 0
        %1710 = vmatpush1.bf16.msra.mxu0 0
        %1711 = vmatprep.mubr.bf16.mxu0 0
        %1712 = vmatmul.mubr.bf16.gmra.mrb[0].mxu0 %v1677
        %v1713 = vpop.f32.mrb[0].mxu0
        %v1714 = vadd.f32 %v1662, %v1713
        %v1715 = vpop.f32.mrb[0].mxu0
        %v1716 = vpop.f32.mrb[0].mxu0
        %v1717 = vpop.f32.mrb[0].mxu0
        %1718 = vdwg.mxu0
        %v1719 = vadd.f32 %v464, %v1714
        %v1720 = vld [vmem:[%s8] sm:$0x1]
        %v1721 = vld [vmem:[%s9] sm:$0x1]
        %v1722 = vsel %vm467, %v1719, 0.0
        %1723 = vadd.xlane.f32.xlu0 %v1722
        %v1724 = vpop.xlane.xlu0 %1723
        %v1725 = vmul.f32 %v1724, %v471
        %v1726 = vsub.f32 %v1719, %v1725
        %v1727 = vmul.f32 %v1726, %v1726
        %v1728 = vsel %vm467, %v1727, 0.0
        %1729 = vadd.xlane.f32.xlu0 %v1728
        %v1730 = vpop.xlane.xlu0 %1729
        %v1731 = vmul.f32 %v1730, %v471
        %v1732 = vadd.f32 %v1731, 1e-05
        %v1733 = vrsqrt.pop %v1732
        %v1734 = vmul.f32 %v1726, %v1733
        %v1736 = vlaneseq
        %v1737 = vshrl.u32 %v1736, 7
        %v1738 = vsub.s32 0, %v1737
        %v1739 = vrot.slane %v1720, %v1738
        %v1741 = vmul.f32 %v1734, %v1739
        %v1743 = vlaneseq
        %v1744 = vshrl.u32 %v1743, 7
        %v1745 = vsub.s32 0, %v1744
        %v1746 = vrot.slane %v1721, %v1745
        %v1748 = vadd.f32 %v1741, %v1746
        %v1749 = vpack.c.bf16 %v1748, %v1748
        %v1750 = vld [vmem:[%s10] sm:$0xf]
        %v1751 = vld [vmem:[%s10 + $0x4] sm:$0xf]
        %v1752 = vld [vmem:[%s10 + $0x8] sm:$0xf]
        %v1753 = vld [vmem:[%s10 + $0xc] sm:$0xf]
        %v1754 = vld [vmem:[%s11] sm:$0x1]
        %v1756 = vlaneseq
        %v1757 = vshrl.u32 %v1756, 7
        %v1758 = vsub.s32 0, %v1757
        %v1759 = vrot.slane %v1754, %v1758
        %v1765 = vunpack.c.l.b16 %v1750
        %v1766 = vunpack.c.l.b16 %v1751
        %v1767 = vunpack.c.l.b16 %v1752
        %v1768 = vunpack.c.l.b16 %v1753
        %v1769 = vpack.c.b16 %v1766, %v1765
        %v1770 = vpack.c.b16 %v1768, %v1767
        %v1774 = vsel %vm467, %v1749, 0
        %1776 = vmatprep.subr.bf16.mxu0 0
        %1777 = vmatpush1.bf16.msra.mxu0 %v1769
        %1778 = vmatprep.subr.bf16.mxu0 0
        %1779 = vmatpush1.bf16.msra.mxu0 %v1770
        %1780 = vmatprep.subr.bf16.mxu0 0
        %1781 = vmatpush1.bf16.msra.mxu0 0
        %1782 = vmatprep.subr.bf16.mxu0 0
        %1783 = vmatpush1.bf16.msra.mxu0 0
        %1784 = vmatprep.subr.bf16.mxu0 0
        %1785 = vmatpush1.bf16.msra.mxu0 0
        %1786 = vmatprep.subr.bf16.mxu0 0
        %1787 = vmatpush1.bf16.msra.mxu0 0
        %1788 = vmatprep.subr.bf16.mxu0 0
        %1789 = vmatpush1.bf16.msra.mxu0 0
        %1790 = vmatprep.subr.bf16.mxu0 0
        %1791 = vmatpush1.bf16.msra.mxu0 0
        %1792 = vmatprep.subr.bf16.mxu0 0
        %1793 = vmatpush1.bf16.msra.mxu0 0
        %1794 = vmatprep.subr.bf16.mxu0 0
        %1795 = vmatpush1.bf16.msra.mxu0 0
        %1796 = vmatprep.subr.bf16.mxu0 0
        %1797 = vmatpush1.bf16.msra.mxu0 0
        %1798 = vmatprep.subr.bf16.mxu0 0
        %1799 = vmatpush1.bf16.msra.mxu0 0
        %1800 = vmatprep.subr.bf16.mxu0 0
        %1801 = vmatpush1.bf16.msra.mxu0 0
        %1802 = vmatprep.subr.bf16.mxu0 0
        %1803 = vmatpush1.bf16.msra.mxu0 0
        %1804 = vmatprep.subr.bf16.mxu0 0
        %1805 = vmatpush1.bf16.msra.mxu0 0
        %1806 = vmatprep.subr.bf16.mxu0 0
        %1807 = vmatpush1.bf16.msra.mxu0 0
        %1808 = vmatprep.mubr.bf16.mxu0 0
        %1809 = vmatmul.mubr.bf16.gmra.mrb[0].mxu0 %v1774
        %v1810 = vpop.f32.mrb[0].mxu0
        %v1811 = vadd.f32 %v1759, %v1810
        %v1812 = vpop.f32.mrb[0].mxu0
        %v1813 = vpop.f32.mrb[0].mxu0
        %v1814 = vpop.f32.mrb[0].mxu0
        %1815 = vdwg.mxu0
        %v1816 = vmul.f32 %v1811, 0.5
        %v1817 = vmul.f32 %v1811, %v1811
        %v1818 = vmul.f32 %v1811, %v1817
        %v1819 = vmul.f32 %v1818, 0.044715
        %v1820 = vadd.f32 %v1811, %v1819
        %v1821 = vmul.f32 %v1820, 0.7978846
        %v1822 = vtanh.pop %v1821
        %v1823 = vadd.f32 %v1822, 1.0
        %v1824 = vmul.f32 %v1816, %v1823
        %v1825 = vpack.c.bf16 %v1824, %v1824
        %v1826 = vld [vmem:[%s12] sm:$0xf]
        %v1827 = vld [vmem:[%s12 + $0x4] sm:$0xf]
        %v1828 = vld [vmem:[%s12 + $0x8] sm:$0xf]
        %v1829 = vld [vmem:[%s12 + $0xc] sm:$0xf]
        %v1830 = vld [vmem:[%s12 + $0x10] sm:$0xf]
        %v1831 = vld [vmem:[%s12 + $0x14] sm:$0xf]
        %v1832 = vld [vmem:[%s12 + $0x18] sm:$0xf]
        %v1833 = vld [vmem:[%s12 + $0x1c] sm:$0xf]
        %v1834 = vld [vmem:[%s12 + $0x20] sm:$0xf]
        %v1835 = vld [vmem:[%s12 + $0x24] sm:$0xf]
        %v1836 = vld [vmem:[%s12 + $0x28] sm:$0xf]
        %v1837 = vld [vmem:[%s12 + $0x2c] sm:$0xf]
        %v1838 = vld [vmem:[%s12 + $0x30] sm:$0xf]
        %v1839 = vld [vmem:[%s12 + $0x34] sm:$0xf]
        %v1840 = vld [vmem:[%s12 + $0x38] sm:$0xf]
        %v1841 = vld [vmem:[%s12 + $0x3c] sm:$0xf]
        %v1842 = vld [vmem:[%s13] sm:$0x1]
        %v1844 = vlaneseq
        %v1845 = vshrl.u32 %v1844, 7
        %v1846 = vsub.s32 0, %v1845
        %v1847 = vrot.slane %v1842, %v1846
        %v1865 = vunpack.c.l.b16 %v1826
        %v1866 = vunpack.c.l.b16 %v1827
        %v1867 = vunpack.c.l.b16 %v1828
        %v1868 = vunpack.c.l.b16 %v1829
        %v1869 = vunpack.c.l.b16 %v1830
        %v1870 = vunpack.c.l.b16 %v1831
        %v1871 = vunpack.c.l.b16 %v1832
        %v1872 = vunpack.c.l.b16 %v1833
        %v1873 = vunpack.c.l.b16 %v1834
        %v1874 = vunpack.c.l.b16 %v1835
        %v1875 = vunpack.c.l.b16 %v1836
        %v1876 = vunpack.c.l.b16 %v1837
        %v1877 = vunpack.c.l.b16 %v1838
        %v1878 = vunpack.c.l.b16 %v1839
        %v1879 = vunpack.c.l.b16 %v1840
        %v1880 = vunpack.c.l.b16 %v1841
        %v1881 = vpack.c.b16 %v1866, %v1865
        %v1882 = vpack.c.b16 %v1868, %v1867
        %v1883 = vpack.c.b16 %v1870, %v1869
        %v1884 = vpack.c.b16 %v1872, %v1871
        %v1885 = vpack.c.b16 %v1874, %v1873
        %v1886 = vpack.c.b16 %v1876, %v1875
        %v1887 = vpack.c.b16 %v1878, %v1877
        %v1888 = vpack.c.b16 %v1880, %v1879
        %1897 = vmatprep.subr.bf16.mxu0 0
        %1898 = vmatpush1.bf16.msra.mxu0 %v1881
        %1899 = vmatprep.subr.bf16.mxu0 0
        %1900 = vmatpush1.bf16.msra.mxu0 %v1882
        %1901 = vmatprep.subr.bf16.mxu0 0
        %1902 = vmatpush1.bf16.msra.mxu0 %v1883
        %1903 = vmatprep.subr.bf16.mxu0 0
        %1904 = vmatpush1.bf16.msra.mxu0 %v1884
        %1905 = vmatprep.subr.bf16.mxu0 0
        %1906 = vmatpush1.bf16.msra.mxu0 %v1885
        %1907 = vmatprep.subr.bf16.mxu0 0
        %1908 = vmatpush1.bf16.msra.mxu0 %v1886
        %1909 = vmatprep.subr.bf16.mxu0 0
        %1910 = vmatpush1.bf16.msra.mxu0 %v1887
        %1911 = vmatprep.subr.bf16.mxu0 0
        %1912 = vmatpush1.bf16.msra.mxu0 %v1888
        %1913 = vmatprep.subr.bf16.mxu0 0
        %1914 = vmatpush1.bf16.msra.mxu0 0
        %1915 = vmatprep.subr.bf16.mxu0 0
        %1916 = vmatpush1.bf16.msra.mxu0 0
        %1917 = vmatprep.subr.bf16.mxu0 0
        %1918 = vmatpush1.bf16.msra.mxu0 0
        %1919 = vmatprep.subr.bf16.mxu0 0
        %1920 = vmatpush1.bf16.msra.mxu0 0
        %1921 = vmatprep.subr.bf16.mxu0 0
        %1922 = vmatpush1.bf16.msra.mxu0 0
        %1923 = vmatprep.subr.bf16.mxu0 0
        %1924 = vmatpush1.bf16.msra.mxu0 0
        %1925 = vmatprep.subr.bf16.mxu0 0
        %1926 = vmatpush1.bf16.msra.mxu0 0
        %1927 = vmatprep.subr.bf16.mxu0 0
        %1928 = vmatpush1.bf16.msra.mxu0 0
        %1929 = vmatprep.mubr.bf16.mxu0 0
        %1930 = vmatmul.mubr.bf16.gmra.mrb[0].mxu0 %v1825
        %v1931 = vpop.f32.mrb[0].mxu0
        %v1932 = vadd.f32 %v1847, %v1931
        %v1933 = vpop.f32.mrb[0].mxu0
        %v1934 = vpop.f32.mrb[0].mxu0
        %v1935 = vpop.f32.mrb[0].mxu0
        %1936 = vdwg.mxu0
        %v1937 = vadd.f32 %v1719, %v1932
        %1938 = vst.msk [vmem:[%s458] sm:$0xff] %vm467, %v1937
        %s1939 = sand.u32 %s335, 1
        %s1940 = scalar_lea.sflag [#allocation3], %s1939
        %s1941 = sand.u32 %s335, 1
        %s1942 = smul.addr %s1941, 8
        %s1943 = scalar_lea.vmem [#allocation2], %s1942
        // Predicated region
        $region77: #{tpu_custom_call.1} parent=75 // pred_check
          %p1944 = pneg %p345
        $region78: #{tpu_custom_call.1} parent=75 // pred_check_branch
          %1946 = sbr.rel (%p1944) target = $region80
        $region79: #{tpu_custom_call.1} parent=75 // pred_region
          %s1948 = ssub.s32 128, 128
          %1949 = vsyncadd %s1940, %s1948
          %s1950 = smul.addr %s28, 128
          %s1951 = scalar_lea.hbm %s14, %s1950
          %s1953 = sshll.u32 %s1943, 4
          %s1954 = int_to_ptr.vmem [resolvable:$true] %s1953
          %1956 = dma.vmem_to_hbm [thread:$0]  %s1954, 128, %s1951, %s1940
        $region80: #{tpu_custom_call.1} parent=75 // pred_fallthru
          _
      $region76: #{tpu_custom_call.1} parent=5 // pred_fallthru
        _
      %p1957 = scmp.le.s32.totalorder 2, %s23
      // Predicated region
      $region81: #{tpu_custom_call.1} parent=5 // pred_check
        %p1958 = pneg %p1957
      $region82: #{tpu_custom_call.1} parent=5 // pred_check_branch
        %1960 = sbr.rel (%p1958) target = $region84
      $region83: #{tpu_custom_call.1} parent=5 // pred_region
        %s1961 = ssub.s32 %s23, 2
        // Predicated region
        $region85: #{tpu_custom_call.1} parent=83 // pred_check
          %p1962 = pneg %p351
        $region86: #{tpu_custom_call.1} parent=83 // pred_check_branch
          %1964 = sbr.rel (%p1962) target = $region88
        $region87: #{tpu_custom_call.1} parent=83 // pred_region
          %s1965 = sand.u32 %s336, 1
          %s1966 = scalar_lea.sflag [#allocation3], %s1965
          %s1967 = sand.u32 %s336, 1
          %s1968 = smul.addr %s1967, 8
          %s1969 = scalar_lea.vmem [#allocation2], %s1968
          %1970 = dma.done %s1966, 128
        $region88: #{tpu_custom_call.1} parent=83 // pred_fallthru
          _
      $region84: #{tpu_custom_call.1} parent=5 // pred_fallthru
        _
    $region6: #{tpu_custom_call.1} parent=1 // loop_footer
      %s27 = sadd.s32 1, %s23
    $region7: #{tpu_custom_call.1} parent=1 // loop_footer_branch
      %22 = sbr.rel target = $region3
    $region8: #{tpu_custom_call.1} parent=1 // loop_exit
      _
    %1971 = vsyncpa [#allocation3], 1
    %s1972 = scalar_lea.sflag [#allocation3], 1
    %1973 = vsyncpa %s1972, 1

</llo_original>
